<compile_context>
chip_gen: v7x
topology: tpu7x:2x2x1
jax: 0.10.0
libtpu: 0.0.40
codegen_flags: <defaults>
</compile_context>

<pallas_src>
import functools

import jax
import jax.numpy as jnp
from jax import lax
from jax.experimental import pallas as pl
from jax.experimental.pallas import tpu as pltpu

KERNEL = 3
STRIDE = 2
GROUPS = 32
EPS = 1e-5


def _range_mask(shape, value_axis, id_axis, span, dtype):
    """mask == 1 where (index along value_axis) // span == (index along id_axis).

    Built from 2-D iota + multiply/compare (no vector integer division)."""
    v = lax.broadcasted_iota(jnp.int32, shape, value_axis)
    i = lax.broadcasted_iota(jnp.int32, shape, id_axis)
    lo = i * span
    return ((v >= lo) & (v < lo + span)).astype(dtype)


def _dsb_kernel(x_ref, w_ref, p_ref, o_ref, *, bb, t_out, c, groups):
    # x_ref: (M, 2C) bf16   rows = [tap0 | tap1] for `bb` batches, M = bb*t_out
    # w_ref: (3C, C) bf16   folded conv weight, rows = [tap0 | tap1 | tap2]
    # p_ref: (3, C)  f32    packed [bias; gamma; beta]
    # o_ref: (M, C)  f32
    m = bb * t_out
    cpg = c // groups
    cnt = float(t_out * cpg)              # elements per (batch, group) for GN stats
    bbp = ((bb + 7) // 8) * 8             # batch dim padded to 8 sublanes

    params = p_ref[...]
    bias, gamma, beta = params[0:1], params[1:2], params[2:3]   # (1, C) each

    x01 = x_ref[...]                      # (M, 2C) bf16
    w = w_ref[...]                        # (3C, C) bf16
    w01 = w[: 2 * c, :]
    w2 = w[2 * c:, :]

    # ---- Conv1d(k=3, s=2): taps 0,1 as one K=2C MXU matmul; tap 2 via a
    # one-row shift of its unshifted partial product (f32 accumulation). ----
    y = jnp.dot(x01, w01, preferred_element_type=jnp.float32)           # (M, C)
    y2 = jnp.dot(x01[:, :c], w2, preferred_element_type=jnp.float32)    # (M, C)
    y2 = jnp.concatenate([y2[1:, :], jnp.zeros((1, c), jnp.float32)], axis=0)

    # not_last[r] = 0 where row r is the last output of its batch: that row's
    # tap-2 sample is the 'same'-padding zero, and this also kills the
    # cross-batch (and block wrap) leak introduced by the row shift.
    r_mb = lax.broadcasted_iota(jnp.int32, (m, bbp), 0)
    b_mb = lax.broadcasted_iota(jnp.int32, (m, bbp), 1)
    is_last = (r_mb == b_mb * t_out + (t_out - 1)).astype(jnp.float32)
    not_last = 1.0 - jnp.sum(is_last, axis=1, keepdims=True)            # (M, 1)

    y = y + not_last * y2 + bias                                        # (M, C)

    # ---- GroupNorm(32, C) per batch ----
    # Per-batch channel sums / sums-of-squares as bf16 segment matmuls (the
    # one-hot mask is exact in bf16), f32 accumulation, one-pass variance.
    seg_bm = _range_mask((bbp, m), 1, 0, t_out, jnp.bfloat16)           # (BBp, M)
    y_bf = y.astype(jnp.bfloat16)
    sum_bc = jnp.dot(seg_bm, y_bf, preferred_element_type=jnp.float32)          # (BBp, C)
    ssq_bc = jnp.dot(seg_bm, y_bf * y_bf, preferred_element_type=jnp.float32)   # (BBp, C)

    grp_cg = _range_mask((c, groups), 0, 1, cpg, jnp.float32)           # (C, G)
    grp_gc = _range_mask((groups, c), 1, 0, cpg, jnp.float32)           # (G, C)
    mean_bg = jnp.dot(sum_bc, grp_cg, preferred_element_type=jnp.float32) / cnt   # (BBp, G)
    ex2_bg = jnp.dot(ssq_bc, grp_cg, preferred_element_type=jnp.float32) / cnt
    var_bg = jnp.maximum(ex2_bg - mean_bg * mean_bg, 0.0)
    inv_bg = lax.rsqrt(var_bg + EPS)                                    # (BBp, G)
    # Padded batch rows (b >= bb) give inv = rsqrt(eps) ~ 316, but seg_mb below
    # never selects them, so they cannot contaminate real rows.

    # Fold gamma/beta into per-(batch, channel) scale/shift on tiny arrays.
    inv_bc = jnp.dot(inv_bg, grp_gc, preferred_element_type=jnp.float32)    # (BBp, C)
    mean_bc = jnp.dot(mean_bg, grp_gc, preferred_element_type=jnp.float32)  # (BBp, C)
    scale_bc = inv_bc * gamma
    shift_bc = beta - mean_bc * scale_bc

    # Single K=BBp scatter-back of [scale | shift] to rows, then one FMA+ReLU.
    seg_mb = _range_mask((m, bbp), 0, 1, t_out, jnp.float32)            # (M, BBp)
    ss_mc = jnp.dot(seg_mb, jnp.concatenate([scale_bc, shift_bc], axis=1),
                    preferred_element_type=jnp.float32)                 # (M, 2C)
    o_ref[...] = jnp.maximum(y * ss_mc[:, :c] + ss_mc[:, c:], 0.0).astype(o_ref.dtype)


def _tpu_flavor():
    """Return (is_v7x_like, per-step VMEM budget in bytes)."""
    kind = ""
    try:
        kind = jax.devices()[0].device_kind.lower()
    except Exception:
        pass
    is_v7 = "v7" in kind
    # v7x: 64 MiB physical VMEM per TC (2 TCs); v5e/v6e: 128 MiB, single TC.
    budget = (32 << 20) if is_v7 else (64 << 20)
    return is_v7, budget


def _block_vmem_bytes(rows, c):
    """Rough per-step VMEM footprint: double-buffered blocks + live f32 temps."""
    in_b = 2 * rows * (2 * c) * 2        # bf16 activation block x2
    out_b = 2 * rows * c * 4             # f32 output block x2
    w_b = 2 * KERNEL * c * c * 2         # bf16 weight x2 (constant index)
    tmp = 7 * rows * c * 4               # live (rows, C) f32 temporaries
    return in_b + out_b + w_b + tmp


def _batches_per_block(n, t_out, c, is_v7, vmem_budget):
    """Batches folded into the matmul M dimension per grid step.

    Row blocks must be 8-sublane aligned (or one block covering everything)."""
    target_rows = 512 if is_v7 else 1024     # v7x: smaller blocks, >=2 grid steps
    cands = [bbx for bbx in range(1, n + 1)
             if n % bbx == 0 and ((bbx * t_out) % 8 == 0 or bbx == n)]
    fits = [bbx for bbx in cands if _block_vmem_bytes(bbx * t_out, c) <= vmem_budget]
    cands = fits or [min(cands)]
    within = [bbx for bbx in cands if bbx * t_out <= target_rows] or [min(cands)]
    pick = max(within)
    if is_v7 and n // pick < 2:
        # Shard the grid across both TensorCores when the MXU stays fed
        # (>=256-row blocks); prefer an even number of steps for balance.
        alt = [bbx for bbx in within if n // bbx >= 2 and bbx * t_out >= 256]
        alt = alt or [bbx for bbx in within if n // bbx >= 2]
        if alt:
            even = [bbx for bbx in alt if (n // bbx) % 2 == 0]
            pick = max(even or alt)
    return pick


def dsb_forward(x_nct, w_oik, bias, gamma, beta):
    """x_nct: (N, C, T) f32, returns (N, C, T_out) f32 (PyTorch NCW layout)."""
    n, c, t = x_nct.shape
    assert c % GROUPS == 0

    # Unit1D 'same' padding logic (kernel=3, stride=2)
    if t % STRIDE == 0:
        pad = max(KERNEL - STRIDE, 0)
    else:
        pad = max(KERNEL - (t % STRIDE), 0)
    pad_f = pad // 2
    t_out = (t + pad - KERNEL) // STRIDE + 1
    assert t + pad_f == STRIDE * t_out   # k=3/s=2 'same' invariant

    # NCW -> NWC in bf16 (halves wrapper HBM traffic), pad front, and
    # de-interleave even/odd time samples with a FREE reshape:
    #   row i of x2d = [x[2i - pad_f] | x[2i + 1 - pad_f]]  (conv taps 0, 1).
    # Tap 2 (x[2i + 2 - pad_f]) is reconstructed in-kernel by a one-row shift.
    x_ntc = jnp.transpose(x_nct, (0, 2, 1)).astype(jnp.bfloat16)
    if pad_f:
        x_ntc = jnp.pad(x_ntc, ((0, 0), (pad_f, 0), (0, 0)))
    x2d = x_ntc.reshape(n * t_out, 2 * c)

    # conv weight (O, I, K) -> (K*I, O); row order [tap0 | tap1 | tap2]
    w_flat = (jnp.transpose(w_oik, (2, 1, 0))
              .reshape(KERNEL * c, c).astype(jnp.bfloat16))
    params = jnp.stack([bias, gamma, beta], axis=0).astype(jnp.float32)   # (3, C)

    is_v7, vmem_budget = _tpu_flavor()
    bb = _batches_per_block(n, t_out, c, is_v7, vmem_budget)
    nb = n // bb
    rows = bb * t_out

    # TODO(synk): for N==1 with very long sequences, add a time-tiling grid
    # axis with GN stats accumulated across steps (two-pass normalize) so v7x
    # can use both TensorCores and VMEM stays bounded.

    vmem_limit = int(min(vmem_budget,
                         max(16 << 20, int(1.3 * _block_vmem_bytes(rows, c)))))

    kernel = functools.partial(_dsb_kernel, bb=bb, t_out=t_out, c=c, groups=GROUPS)

    out2d = pl.pallas_call(
        kernel,
        out_shape=jax.ShapeDtypeStruct((n * t_out, c), jnp.float32),
        grid_spec=pltpu.PrefetchScalarGridSpec(
            num_scalar_prefetch=0,
            grid=(nb,),
            in_specs=[
                pl.BlockSpec((rows, 2 * c), lambda i: (i, 0)),     # [tap0|tap1] rows
                pl.BlockSpec((KERNEL * c, c), lambda i: (0, 0)),   # folded conv weight
                pl.BlockSpec((3, c), lambda i: (0, 0)),            # [bias; gamma; beta]
            ],
            out_specs=pl.BlockSpec((rows, c), lambda i: (i, 0)),
        ),
        compiler_params=pltpu.CompilerParams(
            dimension_semantics=("parallel",),
            vmem_limit_bytes=vmem_limit,
        ),
    )(x2d, w_flat, params)

    return jnp.transpose(out2d.reshape(n, t_out, c), (0, 2, 1))    # (N, C, T_out)


def dsb_reference(x_nct, w_oik, bias, gamma, beta):
    """Pure-JAX f32 reference matching the PyTorch module."""
    n, c, t = x_nct.shape
    if t % STRIDE == 0:
        pad = max(KERNEL - STRIDE, 0)
    else:
        pad = max(KERNEL - (t % STRIDE), 0)
    pad_f = pad // 2
    pad_b = pad - pad_f
    y = lax.conv_general_dilated(
        x_nct, w_oik, window_strides=(STRIDE,), padding=[(pad_f, pad_b)],
        dimension_numbers=("NCH", "OIH", "NCH"))
    y = y + bias[None, :, None]
    t_out = y.shape[-1]
    yg = y.reshape(n, GROUPS, c // GROUPS, t_out)
    mean = yg.mean(axis=(2, 3), keepdims=True)
    var = ((yg - mean) ** 2).mean(axis=(2, 3), keepdims=True)
    yn = ((yg - mean) * lax.rsqrt(var + EPS)).reshape(n, c, t_out)
    yn = yn * gamma[None, :, None] + beta[None, :, None]
    return jnp.maximum(yn, 0.0)


if __name__ == "__main__":
    # GroupNorm(32, 512) fixes channels at 512; keep batch/seq small.
    N, C, T = 2, 512, 16
    key = jax.random.PRNGKey(0)
    k1, k2, k3, k4, k5 = jax.random.split(key, 5)

    x = jax.random.normal(k1, (N, C, T), jnp.float32)
    w = jax.random.normal(k2, (C, C, KERNEL), jnp.float32) / jnp.sqrt(C * KERNEL)
    b = 0.01 * jax.random.normal(k3, (C,), jnp.float32)
    gamma = 1.0 + 0.1 * jax.random.normal(k4, (C,), jnp.float32)
    beta = 0.1 * jax.random.normal(k5, (C,), jnp.float32)

    out = dsb_forward(x, w, b, gamma, beta)
    out = jax.block_until_ready(out)

    ref = dsb_reference(x, w, b, gamma, beta)
    assert out.shape == ref.shape == (N, C, T // 2), (out.shape, ref.shape)
    # The kernel feeds the MXU bf16 activations/weights (f32 accumulate) and
    # computes GroupNorm stats from bf16-rounded activations, so it differs
    # from the f32 reference by bf16 input rounding (~1e-2..2e-2 worst case);
    # logic errors (padding/stride/tap-shift/group mapping) would be O(0.1..1).
    err = float(jnp.max(jnp.abs(out - ref)))
    assert err < 3e-2, f"max abs err {err}"
    print("KERNEL_OK")
</pallas_src>

<mosaic_0001>
module attributes {stable_mosaic.version = 11 : i64} {
  func.func @_dsb_kernel(%arg0: i32, %arg1: memref<16x1024xbf16, #tpu.memory_space<vmem>>, %arg2: memref<1536x512xbf16, #tpu.memory_space<vmem>>, %arg3: memref<3x512xf32, #tpu.memory_space<vmem>>, %arg4: memref<16x512xf32, #tpu.memory_space<vmem>>) attributes {dimension_semantics = [#tpu.dimension_semantics<parallel>], iteration_bounds = array<i64: 1>, scalar_prefetch = 0 : i64, scratch_operands = 0 : i64, tpu.core_type = #tpu.core_type<tc>, window_params = [{transform_indices = @transform_0, window_bounds = array<i64: 16, 1024>}, {pipeline_mode = #tpu.pipeline_mode<synchronous>, transform_indices = @transform_1, window_bounds = array<i64: 1536, 512>}, {pipeline_mode = #tpu.pipeline_mode<synchronous>, transform_indices = @transform_2, window_bounds = array<i64: 3, 512>}, {transform_indices = @transform_3, window_bounds = array<i64: 16, 512>}]} {
    %c0 = arith.constant 0 : index
    %c0_0 = arith.constant 0 : index
    %0 = vector.load %arg3[%c0, %c0_0] : memref<3x512xf32, #tpu.memory_space<vmem>>, vector<3x512xf32>
    %1 = vector.extract_strided_slice %0 {offsets = [0, 0], sizes = [1, 512], strides = [1, 1]} : vector<3x512xf32> to vector<1x512xf32>
    %2 = vector.extract_strided_slice %0 {offsets = [1, 0], sizes = [1, 512], strides = [1, 1]} : vector<3x512xf32> to vector<1x512xf32>
    %3 = vector.extract_strided_slice %0 {offsets = [2, 0], sizes = [1, 512], strides = [1, 1]} : vector<3x512xf32> to vector<1x512xf32>
    %c0_1 = arith.constant 0 : index
    %c0_2 = arith.constant 0 : index
    %4 = vector.load %arg1[%c0_1, %c0_2] : memref<16x1024xbf16, #tpu.memory_space<vmem>>, vector<16x1024xbf16>
    %c0_3 = arith.constant 0 : index
    %c0_4 = arith.constant 0 : index
    %5 = vector.load %arg2[%c0_3, %c0_4] : memref<1536x512xbf16, #tpu.memory_space<vmem>>, vector<1536x512xbf16>
    %6 = vector.extract_strided_slice %5 {offsets = [0, 0], sizes = [1024, 512], strides = [1, 1]} : vector<1536x512xbf16> to vector<1024x512xbf16>
    %7 = vector.extract_strided_slice %5 {offsets = [1024, 0], sizes = [512, 512], strides = [1, 1]} : vector<1536x512xbf16> to vector<512x512xbf16>
    %cst = arith.constant dense<0.000000e+00> : vector<16x512xf32>
    %8 = tpu.matmul %4, %6, %cst {dimension_numbers = #tpu.dot_dimension_numbers<[1], [0], [0], [1], [0, 0, 1, 1], [], []>} : vector<16x1024xbf16>, vector<1024x512xbf16>, vector<16x512xf32> -> vector<16x512xf32>
    %9 = vector.extract_strided_slice %4 {offsets = [0, 0], sizes = [16, 512], strides = [1, 1]} : vector<16x1024xbf16> to vector<16x512xbf16>
    %cst_5 = arith.constant dense<0.000000e+00> : vector<16x512xf32>
    %10 = tpu.matmul %9, %7, %cst_5 {dimension_numbers = #tpu.dot_dimension_numbers<[1], [0], [0], [1], [0, 0, 1, 1], [], []>} : vector<16x512xbf16>, vector<512x512xbf16>, vector<16x512xf32> -> vector<16x512xf32>
    %11 = vector.extract_strided_slice %10 {offsets = [1, 0], sizes = [15, 512], strides = [1, 1]} : vector<16x512xf32> to vector<15x512xf32>
    %cst_6 = arith.constant 0.000000e+00 : f32
    %12 = vector.broadcast %cst_6 : f32 to vector<1x512xf32>
    %13 = tpu.concatenate %11, %12 in 0 : vector<15x512xf32>, vector<1x512xf32> -> vector<16x512xf32>
    %14 = tpu.iota {dimensions = array<i32: 0>} : vector<16x8xi32>
    %15 = tpu.iota {dimensions = array<i32: 1>} : vector<16x8xi32>
    %c8_i32 = arith.constant 8 : i32
    %16 = vector.broadcast %c8_i32 : i32 to vector<16x8xi32>
    %17 = arith.muli %15, %16 : vector<16x8xi32>
    %c7_i32 = arith.constant 7 : i32
    %18 = vector.broadcast %c7_i32 : i32 to vector<16x8xi32>
    %19 = arith.addi %17, %18 : vector<16x8xi32>
    %20 = arith.cmpi eq, %14, %19 : vector<16x8xi32>
    %21 = arith.extui %20 : vector<16x8xi1> to vector<16x8xi32>
    %22 = arith.sitofp %21 : vector<16x8xi32> to vector<16x8xf32>
    %cst_7 = arith.constant dense<0.000000e+00> : vector<16xf32>
    %23 = vector.multi_reduction <add>, %22, %cst_7 [1] : vector<16x8xf32> to vector<16xf32>
    %24 = vector.shape_cast %23 : vector<16xf32> to vector<16x1xf32>
    %cst_8 = arith.constant 1.000000e+00 : f32
    %25 = vector.broadcast %cst_8 : f32 to vector<16x1xf32>
    %26 = arith.subf %25, %24 : vector<16x1xf32>
    %27 = vector.broadcast %26 : vector<16x1xf32> to vector<16x512xf32>
    %28 = arith.mulf %27, %13 : vector<16x512xf32>
    %29 = arith.addf %8, %28 : vector<16x512xf32>
    %30 = vector.broadcast %1 : vector<1x512xf32> to vector<16x512xf32>
    %31 = arith.addf %29, %30 : vector<16x512xf32>
    %32 = tpu.iota {dimensions = array<i32: 1>} : vector<8x16xi32>
    %33 = tpu.iota {dimensions = array<i32: 0>} : vector<8x16xi32>
    %c8_i32_9 = arith.constant 8 : i32
    %34 = vector.broadcast %c8_i32_9 : i32 to vector<8x16xi32>
    %35 = arith.muli %33, %34 : vector<8x16xi32>
    %36 = arith.cmpi sge, %32, %35 : vector<8x16xi32>
    %c8_i32_10 = arith.constant 8 : i32
    %37 = vector.broadcast %c8_i32_10 : i32 to vector<8x16xi32>
    %38 = arith.addi %35, %37 : vector<8x16xi32>
    %39 = arith.cmpi slt, %32, %38 : vector<8x16xi32>
    %40 = arith.andi %36, %39 : vector<8x16xi1>
    %41 = arith.extui %40 : vector<8x16xi1> to vector<8x16xi32>
    %42 = arith.sitofp %41 : vector<8x16xi32> to vector<8x16xf32>
    %43 = arith.truncf %42 : vector<8x16xf32> to vector<8x16xbf16>
    %44 = arith.truncf %31 : vector<16x512xf32> to vector<16x512xbf16>
    %cst_11 = arith.constant dense<0.000000e+00> : vector<8x512xf32>
    %45 = tpu.matmul %43, %44, %cst_11 {dimension_numbers = #tpu.dot_dimension_numbers<[1], [0], [0], [1], [0, 0, 1, 1], [], []>} : vector<8x16xbf16>, vector<16x512xbf16>, vector<8x512xf32> -> vector<8x512xf32>
    %46 = arith.mulf %44, %44 : vector<16x512xbf16>
    %cst_12 = arith.constant dense<0.000000e+00> : vector<8x512xf32>
    %47 = tpu.matmul %43, %46, %cst_12 {dimension_numbers = #tpu.dot_dimension_numbers<[1], [0], [0], [1], [0, 0, 1, 1], [], []>} : vector<8x16xbf16>, vector<16x512xbf16>, vector<8x512xf32> -> vector<8x512xf32>
    %48 = tpu.iota {dimensions = array<i32: 0>} : vector<512x32xi32>
    %49 = tpu.iota {dimensions = array<i32: 1>} : vector<512x32xi32>
    %c16_i32 = arith.constant 16 : i32
    %50 = vector.broadcast %c16_i32 : i32 to vector<512x32xi32>
    %51 = arith.muli %49, %50 : vector<512x32xi32>
    %52 = arith.cmpi sge, %48, %51 : vector<512x32xi32>
    %c16_i32_13 = arith.constant 16 : i32
    %53 = vector.broadcast %c16_i32_13 : i32 to vector<512x32xi32>
    %54 = arith.addi %51, %53 : vector<512x32xi32>
    %55 = arith.cmpi slt, %48, %54 : vector<512x32xi32>
    %56 = arith.andi %52, %55 : vector<512x32xi1>
    %57 = arith.extui %56 : vector<512x32xi1> to vector<512x32xi32>
    %58 = arith.sitofp %57 : vector<512x32xi32> to vector<512x32xf32>
    %59 = tpu.iota {dimensions = array<i32: 1>} : vector<32x512xi32>
    %60 = tpu.iota {dimensions = array<i32: 0>} : vector<32x512xi32>
    %c16_i32_14 = arith.constant 16 : i32
    %61 = vector.broadcast %c16_i32_14 : i32 to vector<32x512xi32>
    %62 = arith.muli %60, %61 : vector<32x512xi32>
    %63 = arith.cmpi sge, %59, %62 : vector<32x512xi32>
    %c16_i32_15 = arith.constant 16 : i32
    %64 = vector.broadcast %c16_i32_15 : i32 to vector<32x512xi32>
    %65 = arith.addi %62, %64 : vector<32x512xi32>
    %66 = arith.cmpi slt, %59, %65 : vector<32x512xi32>
    %67 = arith.andi %63, %66 : vector<32x512xi1>
    %68 = arith.extui %67 : vector<32x512xi1> to vector<32x512xi32>
    %69 = arith.sitofp %68 : vector<32x512xi32> to vector<32x512xf32>
    %cst_16 = arith.constant dense<0.000000e+00> : vector<8x32xf32>
    %70 = tpu.matmul %45, %58, %cst_16 {dimension_numbers = #tpu.dot_dimension_numbers<[1], [0], [0], [1], [0, 0, 1, 1], [], []>} : vector<8x512xf32>, vector<512x32xf32>, vector<8x32xf32> -> vector<8x32xf32>
    %cst_17 = arith.constant 1.280000e+02 : f32
    %71 = vector.broadcast %cst_17 : f32 to vector<8x32xf32>
    %72 = arith.divf %70, %71 : vector<8x32xf32>
    %cst_18 = arith.constant dense<0.000000e+00> : vector<8x32xf32>
    %73 = tpu.matmul %47, %58, %cst_18 {dimension_numbers = #tpu.dot_dimension_numbers<[1], [0], [0], [1], [0, 0, 1, 1], [], []>} : vector<8x512xf32>, vector<512x32xf32>, vector<8x32xf32> -> vector<8x32xf32>
    %cst_19 = arith.constant 1.280000e+02 : f32
    %74 = vector.broadcast %cst_19 : f32 to vector<8x32xf32>
    %75 = arith.divf %73, %74 : vector<8x32xf32>
    %76 = arith.mulf %72, %72 : vector<8x32xf32>
    %77 = arith.subf %75, %76 : vector<8x32xf32>
    %cst_20 = arith.constant 0.000000e+00 : f32
    %78 = vector.broadcast %cst_20 : f32 to vector<8x32xf32>
    %79 = arith.maximumf %77, %78 : vector<8x32xf32>
    %cst_21 = arith.constant 9.99999974E-6 : f32
    %80 = vector.broadcast %cst_21 : f32 to vector<8x32xf32>
    %81 = arith.addf %79, %80 : vector<8x32xf32>
    %82 = math.rsqrt %81 : vector<8x32xf32>
    %cst_22 = arith.constant dense<0.000000e+00> : vector<8x512xf32>
    %83 = tpu.matmul %82, %69, %cst_22 {dimension_numbers = #tpu.dot_dimension_numbers<[1], [0], [0], [1], [0, 0, 1, 1], [], []>} : vector<8x32xf32>, vector<32x512xf32>, vector<8x512xf32> -> vector<8x512xf32>
    %cst_23 = arith.constant dense<0.000000e+00> : vector<8x512xf32>
    %84 = tpu.matmul %72, %69, %cst_23 {dimension_numbers = #tpu.dot_dimension_numbers<[1], [0], [0], [1], [0, 0, 1, 1], [], []>} : vector<8x32xf32>, vector<32x512xf32>, vector<8x512xf32> -> vector<8x512xf32>
    %85 = vector.broadcast %2 : vector<1x512xf32> to vector<8x512xf32>
    %86 = arith.mulf %83, %85 : vector<8x512xf32>
    %87 = arith.mulf %84, %86 : vector<8x512xf32>
    %88 = vector.broadcast %3 : vector<1x512xf32> to vector<8x512xf32>
    %89 = arith.subf %88, %87 : vector<8x512xf32>
    %90 = tpu.iota {dimensions = array<i32: 0>} : vector<16x8xi32>
    %91 = tpu.iota {dimensions = array<i32: 1>} : vector<16x8xi32>
    %c8_i32_24 = arith.constant 8 : i32
    %92 = vector.broadcast %c8_i32_24 : i32 to vector<16x8xi32>
    %93 = arith.muli %91, %92 : vector<16x8xi32>
    %94 = arith.cmpi sge, %90, %93 : vector<16x8xi32>
    %c8_i32_25 = arith.constant 8 : i32
    %95 = vector.broadcast %c8_i32_25 : i32 to vector<16x8xi32>
    %96 = arith.addi %93, %95 : vector<16x8xi32>
    %97 = arith.cmpi slt, %90, %96 : vector<16x8xi32>
    %98 = arith.andi %94, %97 : vector<16x8xi1>
    %99 = arith.extui %98 : vector<16x8xi1> to vector<16x8xi32>
    %100 = arith.sitofp %99 : vector<16x8xi32> to vector<16x8xf32>
    %101 = tpu.concatenate %86, %89 in 1 : vector<8x512xf32>, vector<8x512xf32> -> vector<8x1024xf32>
    %cst_26 = arith.constant dense<0.000000e+00> : vector<16x1024xf32>
    %102 = tpu.matmul %100, %101, %cst_26 {dimension_numbers = #tpu.dot_dimension_numbers<[1], [0], [0], [1], [0, 0, 1, 1], [], []>} : vector<16x8xf32>, vector<8x1024xf32>, vector<16x1024xf32> -> vector<16x1024xf32>
    %103 = vector.extract_strided_slice %102 {offsets = [0, 0], sizes = [16, 512], strides = [1, 1]} : vector<16x1024xf32> to vector<16x512xf32>
    %104 = arith.mulf %31, %103 : vector<16x512xf32>
    %105 = vector.extract_strided_slice %102 {offsets = [0, 512], sizes = [16, 512], strides = [1, 1]} : vector<16x1024xf32> to vector<16x512xf32>
    %106 = arith.addf %104, %105 : vector<16x512xf32>
    %cst_27 = arith.constant 0.000000e+00 : f32
    %107 = vector.broadcast %cst_27 : f32 to vector<16x512xf32>
    %108 = arith.maximumf %106, %107 : vector<16x512xf32>
    %c0_28 = arith.constant 0 : index
    %c0_29 = arith.constant 0 : index
    %109 = vector.load %arg4[%c0_28, %c0_29] : memref<16x512xf32, #tpu.memory_space<vmem>>, vector<16x512xf32>
    tpu.vector_store %arg4[%c0_28, %c0_29], %108 {strides = array<i32>} : memref<16x512xf32, #tpu.memory_space<vmem>>, vector<16x512xf32>,
    return
  }
  func.func @transform_0(%arg0: i32) -> (i32, i32) {
    %c0_i32 = arith.constant 0 : i32
    %c0_i32_0 = arith.constant 0 : i32
    return %arg0, %c0_i32 : i32, i32
  }
  func.func @transform_1(%arg0: i32) -> (i32, i32) {
    %c0_i32 = arith.constant 0 : i32
    %c0_i32_0 = arith.constant 0 : i32
    %c0_i32_1 = arith.constant 0 : i32
    return %c0_i32, %c0_i32_0 : i32, i32
  }
  func.func @transform_2(%arg0: i32) -> (i32, i32) {
    %c0_i32 = arith.constant 0 : i32
    %c0_i32_0 = arith.constant 0 : i32
    %c0_i32_1 = arith.constant 0 : i32
    return %c0_i32, %c0_i32_0 : i32, i32
  }
  func.func @transform_3(%arg0: i32) -> (i32, i32) {
    %c0_i32 = arith.constant 0 : i32
    %c0_i32_0 = arith.constant 0 : i32
    return %arg0, %c0_i32 : i32, i32
  }
}

</mosaic_0001>

<llo_original>
// kernel: tpu_custom_call.1
$region0: #{tpu_custom_call.1}
  #allocation0 [shape = 'u32[]', space=smem, size = 0x4, offset = 0x4, fixed_abs, tag = 'smem constant byte address 0x4 - core index']
  #allocation1 [shape = 'u32[144,128]{1,0:T(1,128)}', space=vmem, size = 0x12000, scoped, tag = 'internal scratch']
  %s0 = inlined_call_operand.hbm [shape: bf16[16,1024], index: 0, kind: input, shape index: {}]
  %s1 = inlined_call_operand.hbm [shape: bf16[1536,512], index: 1, kind: input, shape index: {}]
  %s2 = inlined_call_operand.hbm [shape: f32[3,512], index: 2, kind: input, shape index: {}]
  %s3 = inlined_call_operand.hbm [shape: f32[16,512], index: 3, kind: output, shape index: {}]
  %s4 = sld [smem:[#allocation0]]
  $region34: #{tpu_custom_call.1} parent=0
    _
  %s6 = ssub.s32 1, %s4
  %s7 = scalar_select 0, %s6, %s4
  $region1: #{tpu_custom_call.1} parent=0
    #allocation2 [shape = 'u8[32768]{0}', space=vmem, size = 0x8000, scoped, tag = 'input window, operand 0, single buffered']
    #allocation3 [shape = 's32[1]{0}', space=sflag, size = 0x4, scoped, tag = 'scoped memory for tpu_custom_call.1']
    #allocation4 [shape = 's32[1]{0}', space=sflag, size = 0x4, scoped, tag = 'scoped memory for tpu_custom_call.1']
    #allocation5 [shape = 'u8[1572864]{0}', space=vmem, size = 0x180000, scoped, tag = 'input window, operand 1, single buffered']
    #allocation6 [shape = 's32[1]{0}', space=sflag, size = 0x4, scoped, tag = 'scoped memory for tpu_custom_call.1']
    #allocation7 [shape = 'u8[8192]{0}', space=vmem, size = 0x2000, scoped, tag = 'input window, operand 2, single buffered']
    #allocation8 [shape = 'u8[32768]{0}', space=vmem, size = 0x8000, scoped, tag = 'output window, operand 0, single buffered']
    %8 = vsyncpa [#allocation3], 0
    %9 = vsyncpa [#allocation6], 0
    %10 = vsyncpa [#allocation4], 0
    // Predicated region
    $region2: #{tpu_custom_call.1} parent=1 // pred_check
      _
    $region3: #{tpu_custom_call.1} parent=1 // pred_check_branch
      %12 = sbr.rel (0) target = $region5
    $region4: #{tpu_custom_call.1} parent=1 // pred_region
      %s14 = ssub.s32 1024, 1024
      %15 = vsyncadd [#allocation3], %s14
      %s16 = sshll.u32 [#allocation2], 4
      %s17 = int_to_ptr.vmem [resolvable:$true] %s16
      %22 = dma.hbm_to_vmem [thread:$0]  %s0, 1024, %s17, [#allocation3], 512, 512, 32
    $region5: #{tpu_custom_call.1} parent=1 // pred_fallthru
      _
    // Predicated region
    $region6: #{tpu_custom_call.1} parent=1 // pred_check
      _
    $region7: #{tpu_custom_call.1} parent=1 // pred_check_branch
      %24 = sbr.rel (0) target = $region9
    $region8: #{tpu_custom_call.1} parent=1 // pred_region
      %s26 = ssub.s32 49152, 49152
      %27 = vsyncadd [#allocation6], %s26
      %s28 = sshll.u32 [#allocation5], 4
      %s29 = int_to_ptr.vmem [resolvable:$true] %s28
      %34 = dma.hbm_to_vmem [thread:$0]  %s1, 49152, %s29, [#allocation6], 256, 256, 16
    $region9: #{tpu_custom_call.1} parent=1 // pred_fallthru
      _
    // Predicated region
    $region10: #{tpu_custom_call.1} parent=1 // pred_check
      _
    $region11: #{tpu_custom_call.1} parent=1 // pred_check_branch
      %36 = sbr.rel (0) target = $region13
    $region12: #{tpu_custom_call.1} parent=1 // pred_region
      %s38 = ssub.s32 256, 256
      %39 = vsyncadd [#allocation6], %s38
      %s41 = sshll.u32 [#allocation7], 4
      %s42 = int_to_ptr.vmem [resolvable:$true] %s41
      %44 = dma.hbm_to_vmem [thread:$0]  %s2, 256, %s42, [#allocation6]
    $region13: #{tpu_custom_call.1} parent=1 // pred_fallthru
      _
    // Predicated region
    $region14: #{tpu_custom_call.1} parent=1 // pred_check
      _
    $region15: #{tpu_custom_call.1} parent=1 // pred_check_branch
      %46 = sbr.rel (0) target = $region17
    $region16: #{tpu_custom_call.1} parent=1 // pred_region
      %47 = dma.done [#allocation3], 1024
    $region17: #{tpu_custom_call.1} parent=1 // pred_fallthru
      _
    // Predicated region
    $region18: #{tpu_custom_call.1} parent=1 // pred_check
      _
    $region19: #{tpu_custom_call.1} parent=1 // pred_check_branch
      %49 = sbr.rel (0) target = $region21
    $region20: #{tpu_custom_call.1} parent=1 // pred_region
      %50 = dma.done [#allocation6], 49152
    $region21: #{tpu_custom_call.1} parent=1 // pred_fallthru
      _
    // Predicated region
    $region22: #{tpu_custom_call.1} parent=1 // pred_check
      _
    $region23: #{tpu_custom_call.1} parent=1 // pred_check_branch
      %52 = sbr.rel (0) target = $region25
    $region24: #{tpu_custom_call.1} parent=1 // pred_region
      %53 = dma.done [#allocation6], 256
    $region25: #{tpu_custom_call.1} parent=1 // pred_fallthru
      _
    %v55 = vld [vmem:[#allocation7] sm:$0x77]
    %v56 = vld [vmem:[#allocation7 + $0x8] sm:$0x77]
    %v57 = vld [vmem:[#allocation2] sm:$0xff]
    %v58 = vld [vmem:[#allocation2 + $0x8] sm:$0xff]
    %v59 = vld [vmem:[#allocation2 + $0x10] sm:$0xff]
    %v60 = vld [vmem:[#allocation2 + $0x18] sm:$0xff]
    %v61 = vld [vmem:[#allocation2 + $0x20] sm:$0xff]
    %v62 = vld [vmem:[#allocation2 + $0x28] sm:$0xff]
    %v63 = vld [vmem:[#allocation2 + $0x30] sm:$0xff]
    %v64 = vld [vmem:[#allocation2 + $0x38] sm:$0xff]
    %v65 = vld [vmem:[#allocation5] sm:$0xff]
    %v66 = vld [vmem:[#allocation5 + $0x8] sm:$0xff]
    %v67 = vld [vmem:[#allocation5 + $0x10] sm:$0xff]
    %v68 = vld [vmem:[#allocation5 + $0x18] sm:$0xff]
    %v69 = vld [vmem:[#allocation5 + $0x20] sm:$0xff]
    %v70 = vld [vmem:[#allocation5 + $0x28] sm:$0xff]
    %v71 = vld [vmem:[#allocation5 + $0x30] sm:$0xff]
    %v72 = vld [vmem:[#allocation5 + $0x38] sm:$0xff]
    %v73 = vld [vmem:[#allocation5 + $0x40] sm:$0xff]
    %v74 = vld [vmem:[#allocation5 + $0x48] sm:$0xff]
    %v75 = vld [vmem:[#allocation5 + $0x50] sm:$0xff]
    %v76 = vld [vmem:[#allocation5 + $0x58] sm:$0xff]
    %v77 = vld [vmem:[#allocation5 + $0x60] sm:$0xff]
    %v78 = vld [vmem:[#allocation5 + $0x68] sm:$0xff]
    %v79 = vld [vmem:[#allocation5 + $0x70] sm:$0xff]
    %v80 = vld [vmem:[#allocation5 + $0x78] sm:$0xff]
    %v81 = vld [vmem:[#allocation5 + $0x80] sm:$0xff]
    %v82 = vld [vmem:[#allocation5 + $0x88] sm:$0xff]
    %v83 = vld [vmem:[#allocation5 + $0x90] sm:$0xff]
    %v84 = vld [vmem:[#allocation5 + $0x98] sm:$0xff]
    %v85 = vld [vmem:[#allocation5 + $0xa0] sm:$0xff]
    %v86 = vld [vmem:[#allocation5 + $0xa8] sm:$0xff]
    %v87 = vld [vmem:[#allocation5 + $0xb0] sm:$0xff]
    %v88 = vld [vmem:[#allocation5 + $0xb8] sm:$0xff]
    %v89 = vld [vmem:[#allocation5 + $0xc0] sm:$0xff]
    %v90 = vld [vmem:[#allocation5 + $0xc8] sm:$0xff]
    %v91 = vld [vmem:[#allocation5 + $0xd0] sm:$0xff]
    %v92 = vld [vmem:[#allocation5 + $0xd8] sm:$0xff]
    %v93 = vld [vmem:[#allocation5 + $0xe0] sm:$0xff]
    %v94 = vld [vmem:[#allocation5 + $0xe8] sm:$0xff]
    %v95 = vld [vmem:[#allocation5 + $0xf0] sm:$0xff]
    %v96 = vld [vmem:[#allocation5 + $0xf8] sm:$0xff]
    %v97 = vld [vmem:[#allocation5 + $0x100] sm:$0xff]
    %v98 = vld [vmem:[#allocation5 + $0x108] sm:$0xff]
    %v99 = vld [vmem:[#allocation5 + $0x110] sm:$0xff]
    %v100 = vld [vmem:[#allocation5 + $0x118] sm:$0xff]
    %v101 = vld [vmem:[#allocation5 + $0x120] sm:$0xff]
    %v102 = vld [vmem:[#allocation5 + $0x128] sm:$0xff]
    %v103 = vld [vmem:[#allocation5 + $0x130] sm:$0xff]
    %v104 = vld [vmem:[#allocation5 + $0x138] sm:$0xff]
    %v105 = vld [vmem:[#allocation5 + $0x140] sm:$0xff]
    %v106 = vld [vmem:[#allocation5 + $0x148] sm:$0xff]
    %v107 = vld [vmem:[#allocation5 + $0x150] sm:$0xff]
    %v108 = vld [vmem:[#allocation5 + $0x158] sm:$0xff]
    %v109 = vld [vmem:[#allocation5 + $0x160] sm:$0xff]
    %v110 = vld [vmem:[#allocation5 + $0x168] sm:$0xff]
    %v111 = vld [vmem:[#allocation5 + $0x170] sm:$0xff]
    %v112 = vld [vmem:[#allocation5 + $0x178] sm:$0xff]
    %v113 = vld [vmem:[#allocation5 + $0x180] sm:$0xff]
    %v114 = vld [vmem:[#allocation5 + $0x188] sm:$0xff]
    %v115 = vld [vmem:[#allocation5 + $0x190] sm:$0xff]
    %v116 = vld [vmem:[#allocation5 + $0x198] sm:$0xff]
    %v117 = vld [vmem:[#allocation5 + $0x1a0] sm:$0xff]
    %v118 = vld [vmem:[#allocation5 + $0x1a8] sm:$0xff]
    %v119 = vld [vmem:[#allocation5 + $0x1b0] sm:$0xff]
    %v120 = vld [vmem:[#allocation5 + $0x1b8] sm:$0xff]
    %v121 = vld [vmem:[#allocation5 + $0x1c0] sm:$0xff]
    %v122 = vld [vmem:[#allocation5 + $0x1c8] sm:$0xff]
    %v123 = vld [vmem:[#allocation5 + $0x1d0] sm:$0xff]
    %v124 = vld [vmem:[#allocation5 + $0x1d8] sm:$0xff]
    %v125 = vld [vmem:[#allocation5 + $0x1e0] sm:$0xff]
    %v126 = vld [vmem:[#allocation5 + $0x1e8] sm:$0xff]
    %v127 = vld [vmem:[#allocation5 + $0x1f0] sm:$0xff]
    %v128 = vld [vmem:[#allocation5 + $0x1f8] sm:$0xff]
    %v129 = vld [vmem:[#allocation5 + $0x200] sm:$0xff]
    %v130 = vld [vmem:[#allocation5 + $0x208] sm:$0xff]
    %v131 = vld [vmem:[#allocation5 + $0x210] sm:$0xff]
    %v132 = vld [vmem:[#allocation5 + $0x218] sm:$0xff]
    %v133 = vld [vmem:[#allocation5 + $0x220] sm:$0xff]
    %v134 = vld [vmem:[#allocation5 + $0x228] sm:$0xff]
    %v135 = vld [vmem:[#allocation5 + $0x230] sm:$0xff]
    %v136 = vld [vmem:[#allocation5 + $0x238] sm:$0xff]
    %v137 = vld [vmem:[#allocation5 + $0x240] sm:$0xff]
    %v138 = vld [vmem:[#allocation5 + $0x248] sm:$0xff]
    %v139 = vld [vmem:[#allocation5 + $0x250] sm:$0xff]
    %v140 = vld [vmem:[#allocation5 + $0x258] sm:$0xff]
    %v141 = vld [vmem:[#allocation5 + $0x260] sm:$0xff]
    %v142 = vld [vmem:[#allocation5 + $0x268] sm:$0xff]
    %v143 = vld [vmem:[#allocation5 + $0x270] sm:$0xff]
    %v144 = vld [vmem:[#allocation5 + $0x278] sm:$0xff]
    %v145 = vld [vmem:[#allocation5 + $0x280] sm:$0xff]
    %v146 = vld [vmem:[#allocation5 + $0x288] sm:$0xff]
    %v147 = vld [vmem:[#allocation5 + $0x290] sm:$0xff]
    %v148 = vld [vmem:[#allocation5 + $0x298] sm:$0xff]
    %v149 = vld [vmem:[#allocation5 + $0x2a0] sm:$0xff]
    %v150 = vld [vmem:[#allocation5 + $0x2a8] sm:$0xff]
    %v151 = vld [vmem:[#allocation5 + $0x2b0] sm:$0xff]
    %v152 = vld [vmem:[#allocation5 + $0x2b8] sm:$0xff]
    %v153 = vld [vmem:[#allocation5 + $0x2c0] sm:$0xff]
    %v154 = vld [vmem:[#allocation5 + $0x2c8] sm:$0xff]
    %v155 = vld [vmem:[#allocation5 + $0x2d0] sm:$0xff]
    %v156 = vld [vmem:[#allocation5 + $0x2d8] sm:$0xff]
    %v157 = vld [vmem:[#allocation5 + $0x2e0] sm:$0xff]
    %v158 = vld [vmem:[#allocation5 + $0x2e8] sm:$0xff]
    %v159 = vld [vmem:[#allocation5 + $0x2f0] sm:$0xff]
    %v160 = vld [vmem:[#allocation5 + $0x2f8] sm:$0xff]
    %v161 = vld [vmem:[#allocation5 + $0x300] sm:$0xff]
    %v162 = vld [vmem:[#allocation5 + $0x308] sm:$0xff]
    %v163 = vld [vmem:[#allocation5 + $0x310] sm:$0xff]
    %v164 = vld [vmem:[#allocation5 + $0x318] sm:$0xff]
    %v165 = vld [vmem:[#allocation5 + $0x320] sm:$0xff]
    %v166 = vld [vmem:[#allocation5 + $0x328] sm:$0xff]
    %v167 = vld [vmem:[#allocation5 + $0x330] sm:$0xff]
    %v168 = vld [vmem:[#allocation5 + $0x338] sm:$0xff]
    %v169 = vld [vmem:[#allocation5 + $0x340] sm:$0xff]
    %v170 = vld [vmem:[#allocation5 + $0x348] sm:$0xff]
    %v171 = vld [vmem:[#allocation5 + $0x350] sm:$0xff]
    %v172 = vld [vmem:[#allocation5 + $0x358] sm:$0xff]
    %v173 = vld [vmem:[#allocation5 + $0x360] sm:$0xff]
    %v174 = vld [vmem:[#allocation5 + $0x368] sm:$0xff]
    %v175 = vld [vmem:[#allocation5 + $0x370] sm:$0xff]
    %v176 = vld [vmem:[#allocation5 + $0x378] sm:$0xff]
    %v177 = vld [vmem:[#allocation5 + $0x380] sm:$0xff]
    %v178 = vld [vmem:[#allocation5 + $0x388] sm:$0xff]
    %v179 = vld [vmem:[#allocation5 + $0x390] sm:$0xff]
    %v180 = vld [vmem:[#allocation5 + $0x398] sm:$0xff]
    %v181 = vld [vmem:[#allocation5 + $0x3a0] sm:$0xff]
    %v182 = vld [vmem:[#allocation5 + $0x3a8] sm:$0xff]
    %v183 = vld [vmem:[#allocation5 + $0x3b0] sm:$0xff]
    %v184 = vld [vmem:[#allocation5 + $0x3b8] sm:$0xff]
    %v185 = vld [vmem:[#allocation5 + $0x3c0] sm:$0xff]
    %v186 = vld [vmem:[#allocation5 + $0x3c8] sm:$0xff]
    %v187 = vld [vmem:[#allocation5 + $0x3d0] sm:$0xff]
    %v188 = vld [vmem:[#allocation5 + $0x3d8] sm:$0xff]
    %v189 = vld [vmem:[#allocation5 + $0x3e0] sm:$0xff]
    %v190 = vld [vmem:[#allocation5 + $0x3e8] sm:$0xff]
    %v191 = vld [vmem:[#allocation5 + $0x3f0] sm:$0xff]
    %v192 = vld [vmem:[#allocation5 + $0x3f8] sm:$0xff]
    %v193 = vld [vmem:[#allocation5 + $0x400] sm:$0xff]
    %v194 = vld [vmem:[#allocation5 + $0x408] sm:$0xff]
    %v195 = vld [vmem:[#allocation5 + $0x410] sm:$0xff]
    %v196 = vld [vmem:[#allocation5 + $0x418] sm:$0xff]
    %v197 = vld [vmem:[#allocation5 + $0x420] sm:$0xff]
    %v198 = vld [vmem:[#allocation5 + $0x428] sm:$0xff]
    %v199 = vld [vmem:[#allocation5 + $0x430] sm:$0xff]
    %v200 = vld [vmem:[#allocation5 + $0x438] sm:$0xff]
    %v201 = vld [vmem:[#allocation5 + $0x440] sm:$0xff]
    %v202 = vld [vmem:[#allocation5 + $0x448] sm:$0xff]
    %v203 = vld [vmem:[#allocation5 + $0x450] sm:$0xff]
    %v204 = vld [vmem:[#allocation5 + $0x458] sm:$0xff]
    %v205 = vld [vmem:[#allocation5 + $0x460] sm:$0xff]
    %v206 = vld [vmem:[#allocation5 + $0x468] sm:$0xff]
    %v207 = vld [vmem:[#allocation5 + $0x470] sm:$0xff]
    %v208 = vld [vmem:[#allocation5 + $0x478] sm:$0xff]
    %v209 = vld [vmem:[#allocation5 + $0x480] sm:$0xff]
    %v210 = vld [vmem:[#allocation5 + $0x488] sm:$0xff]
    %v211 = vld [vmem:[#allocation5 + $0x490] sm:$0xff]
    %v212 = vld [vmem:[#allocation5 + $0x498] sm:$0xff]
    %v213 = vld [vmem:[#allocation5 + $0x4a0] sm:$0xff]
    %v214 = vld [vmem:[#allocation5 + $0x4a8] sm:$0xff]
    %v215 = vld [vmem:[#allocation5 + $0x4b0] sm:$0xff]
    %v216 = vld [vmem:[#allocation5 + $0x4b8] sm:$0xff]
    %v217 = vld [vmem:[#allocation5 + $0x4c0] sm:$0xff]
    %v218 = vld [vmem:[#allocation5 + $0x4c8] sm:$0xff]
    %v219 = vld [vmem:[#allocation5 + $0x4d0] sm:$0xff]
    %v220 = vld [vmem:[#allocation5 + $0x4d8] sm:$0xff]
    %v221 = vld [vmem:[#allocation5 + $0x4e0] sm:$0xff]
    %v222 = vld [vmem:[#allocation5 + $0x4e8] sm:$0xff]
    %v223 = vld [vmem:[#allocation5 + $0x4f0] sm:$0xff]
    %v224 = vld [vmem:[#allocation5 + $0x4f8] sm:$0xff]
    %v225 = vld [vmem:[#allocation5 + $0x500] sm:$0xff]
    %v226 = vld [vmem:[#allocation5 + $0x508] sm:$0xff]
    %v227 = vld [vmem:[#allocation5 + $0x510] sm:$0xff]
    %v228 = vld [vmem:[#allocation5 + $0x518] sm:$0xff]
    %v229 = vld [vmem:[#allocation5 + $0x520] sm:$0xff]
    %v230 = vld [vmem:[#allocation5 + $0x528] sm:$0xff]
    %v231 = vld [vmem:[#allocation5 + $0x530] sm:$0xff]
    %v232 = vld [vmem:[#allocation5 + $0x538] sm:$0xff]
    %v233 = vld [vmem:[#allocation5 + $0x540] sm:$0xff]
    %v234 = vld [vmem:[#allocation5 + $0x548] sm:$0xff]
    %v235 = vld [vmem:[#allocation5 + $0x550] sm:$0xff]
    %v236 = vld [vmem:[#allocation5 + $0x558] sm:$0xff]
    %v237 = vld [vmem:[#allocation5 + $0x560] sm:$0xff]
    %v238 = vld [vmem:[#allocation5 + $0x568] sm:$0xff]
    %v239 = vld [vmem:[#allocation5 + $0x570] sm:$0xff]
    %v240 = vld [vmem:[#allocation5 + $0x578] sm:$0xff]
    %v241 = vld [vmem:[#allocation5 + $0x580] sm:$0xff]
    %v242 = vld [vmem:[#allocation5 + $0x588] sm:$0xff]
    %v243 = vld [vmem:[#allocation5 + $0x590] sm:$0xff]
    %v244 = vld [vmem:[#allocation5 + $0x598] sm:$0xff]
    %v245 = vld [vmem:[#allocation5 + $0x5a0] sm:$0xff]
    %v246 = vld [vmem:[#allocation5 + $0x5a8] sm:$0xff]
    %v247 = vld [vmem:[#allocation5 + $0x5b0] sm:$0xff]
    %v248 = vld [vmem:[#allocation5 + $0x5b8] sm:$0xff]
    %v249 = vld [vmem:[#allocation5 + $0x5c0] sm:$0xff]
    %v250 = vld [vmem:[#allocation5 + $0x5c8] sm:$0xff]
    %v251 = vld [vmem:[#allocation5 + $0x5d0] sm:$0xff]
    %v252 = vld [vmem:[#allocation5 + $0x5d8] sm:$0xff]
    %v253 = vld [vmem:[#allocation5 + $0x5e0] sm:$0xff]
    %v254 = vld [vmem:[#allocation5 + $0x5e8] sm:$0xff]
    %v255 = vld [vmem:[#allocation5 + $0x5f0] sm:$0xff]
    %v256 = vld [vmem:[#allocation5 + $0x5f8] sm:$0xff]
    %v257 = vld [vmem:[#allocation5 + $0x600] sm:$0xff]
    %v258 = vld [vmem:[#allocation5 + $0x608] sm:$0xff]
    %v259 = vld [vmem:[#allocation5 + $0x610] sm:$0xff]
    %v260 = vld [vmem:[#allocation5 + $0x618] sm:$0xff]
    %v261 = vld [vmem:[#allocation5 + $0x620] sm:$0xff]
    %v262 = vld [vmem:[#allocation5 + $0x628] sm:$0xff]
    %v263 = vld [vmem:[#allocation5 + $0x630] sm:$0xff]
    %v264 = vld [vmem:[#allocation5 + $0x638] sm:$0xff]
    %v265 = vld [vmem:[#allocation5 + $0x640] sm:$0xff]
    %v266 = vld [vmem:[#allocation5 + $0x648] sm:$0xff]
    %v267 = vld [vmem:[#allocation5 + $0x650] sm:$0xff]
    %v268 = vld [vmem:[#allocation5 + $0x658] sm:$0xff]
    %v269 = vld [vmem:[#allocation5 + $0x660] sm:$0xff]
    %v270 = vld [vmem:[#allocation5 + $0x668] sm:$0xff]
    %v271 = vld [vmem:[#allocation5 + $0x670] sm:$0xff]
    %v272 = vld [vmem:[#allocation5 + $0x678] sm:$0xff]
    %v273 = vld [vmem:[#allocation5 + $0x680] sm:$0xff]
    %v274 = vld [vmem:[#allocation5 + $0x688] sm:$0xff]
    %v275 = vld [vmem:[#allocation5 + $0x690] sm:$0xff]
    %v276 = vld [vmem:[#allocation5 + $0x698] sm:$0xff]
    %v277 = vld [vmem:[#allocation5 + $0x6a0] sm:$0xff]
    %v278 = vld [vmem:[#allocation5 + $0x6a8] sm:$0xff]
    %v279 = vld [vmem:[#allocation5 + $0x6b0] sm:$0xff]
    %v280 = vld [vmem:[#allocation5 + $0x6b8] sm:$0xff]
    %v281 = vld [vmem:[#allocation5 + $0x6c0] sm:$0xff]
    %v282 = vld [vmem:[#allocation5 + $0x6c8] sm:$0xff]
    %v283 = vld [vmem:[#allocation5 + $0x6d0] sm:$0xff]
    %v284 = vld [vmem:[#allocation5 + $0x6d8] sm:$0xff]
    %v285 = vld [vmem:[#allocation5 + $0x6e0] sm:$0xff]
    %v286 = vld [vmem:[#allocation5 + $0x6e8] sm:$0xff]
    %v287 = vld [vmem:[#allocation5 + $0x6f0] sm:$0xff]
    %v288 = vld [vmem:[#allocation5 + $0x6f8] sm:$0xff]
    %v289 = vld [vmem:[#allocation5 + $0x700] sm:$0xff]
    %v290 = vld [vmem:[#allocation5 + $0x708] sm:$0xff]
    %v291 = vld [vmem:[#allocation5 + $0x710] sm:$0xff]
    %v292 = vld [vmem:[#allocation5 + $0x718] sm:$0xff]
    %v293 = vld [vmem:[#allocation5 + $0x720] sm:$0xff]
    %v294 = vld [vmem:[#allocation5 + $0x728] sm:$0xff]
    %v295 = vld [vmem:[#allocation5 + $0x730] sm:$0xff]
    %v296 = vld [vmem:[#allocation5 + $0x738] sm:$0xff]
    %v297 = vld [vmem:[#allocation5 + $0x740] sm:$0xff]
    %v298 = vld [vmem:[#allocation5 + $0x748] sm:$0xff]
    %v299 = vld [vmem:[#allocation5 + $0x750] sm:$0xff]
    %v300 = vld [vmem:[#allocation5 + $0x758] sm:$0xff]
    %v301 = vld [vmem:[#allocation5 + $0x760] sm:$0xff]
    %v302 = vld [vmem:[#allocation5 + $0x768] sm:$0xff]
    %v303 = vld [vmem:[#allocation5 + $0x770] sm:$0xff]
    %v304 = vld [vmem:[#allocation5 + $0x778] sm:$0xff]
    %v305 = vld [vmem:[#allocation5 + $0x780] sm:$0xff]
    %v306 = vld [vmem:[#allocation5 + $0x788] sm:$0xff]
    %v307 = vld [vmem:[#allocation5 + $0x790] sm:$0xff]
    %v308 = vld [vmem:[#allocation5 + $0x798] sm:$0xff]
    %v309 = vld [vmem:[#allocation5 + $0x7a0] sm:$0xff]
    %v310 = vld [vmem:[#allocation5 + $0x7a8] sm:$0xff]
    %v311 = vld [vmem:[#allocation5 + $0x7b0] sm:$0xff]
    %v312 = vld [vmem:[#allocation5 + $0x7b8] sm:$0xff]
    %v313 = vld [vmem:[#allocation5 + $0x7c0] sm:$0xff]
    %v314 = vld [vmem:[#allocation5 + $0x7c8] sm:$0xff]
    %v315 = vld [vmem:[#allocation5 + $0x7d0] sm:$0xff]
    %v316 = vld [vmem:[#allocation5 + $0x7d8] sm:$0xff]
    %v317 = vld [vmem:[#allocation5 + $0x7e0] sm:$0xff]
    %v318 = vld [vmem:[#allocation5 + $0x7e8] sm:$0xff]
    %v319 = vld [vmem:[#allocation5 + $0x7f0] sm:$0xff]
    %v320 = vld [vmem:[#allocation5 + $0x7f8] sm:$0xff]
    %v321 = vld [vmem:[#allocation5 + $0x800] sm:$0xff]
    %v322 = vld [vmem:[#allocation5 + $0x808] sm:$0xff]
    %v323 = vld [vmem:[#allocation5 + $0x810] sm:$0xff]
    %v324 = vld [vmem:[#allocation5 + $0x818] sm:$0xff]
    %v325 = vld [vmem:[#allocation5 + $0x820] sm:$0xff]
    %v326 = vld [vmem:[#allocation5 + $0x828] sm:$0xff]
    %v327 = vld [vmem:[#allocation5 + $0x830] sm:$0xff]
    %v328 = vld [vmem:[#allocation5 + $0x838] sm:$0xff]
    %v329 = vld [vmem:[#allocation5 + $0x840] sm:$0xff]
    %v330 = vld [vmem:[#allocation5 + $0x848] sm:$0xff]
    %v331 = vld [vmem:[#allocation5 + $0x850] sm:$0xff]
    %v332 = vld [vmem:[#allocation5 + $0x858] sm:$0xff]
    %v333 = vld [vmem:[#allocation5 + $0x860] sm:$0xff]
    %v334 = vld [vmem:[#allocation5 + $0x868] sm:$0xff]
    %v335 = vld [vmem:[#allocation5 + $0x870] sm:$0xff]
    %v336 = vld [vmem:[#allocation5 + $0x878] sm:$0xff]
    %v337 = vld [vmem:[#allocation5 + $0x880] sm:$0xff]
    %v338 = vld [vmem:[#allocation5 + $0x888] sm:$0xff]
    %v339 = vld [vmem:[#allocation5 + $0x890] sm:$0xff]
    %v340 = vld [vmem:[#allocation5 + $0x898] sm:$0xff]
    %v341 = vld [vmem:[#allocation5 + $0x8a0] sm:$0xff]
    %v342 = vld [vmem:[#allocation5 + $0x8a8] sm:$0xff]
    %v343 = vld [vmem:[#allocation5 + $0x8b0] sm:$0xff]
    %v344 = vld [vmem:[#allocation5 + $0x8b8] sm:$0xff]
    %v345 = vld [vmem:[#allocation5 + $0x8c0] sm:$0xff]
    %v346 = vld [vmem:[#allocation5 + $0x8c8] sm:$0xff]
    %v347 = vld [vmem:[#allocation5 + $0x8d0] sm:$0xff]
    %v348 = vld [vmem:[#allocation5 + $0x8d8] sm:$0xff]
    %v349 = vld [vmem:[#allocation5 + $0x8e0] sm:$0xff]
    %v350 = vld [vmem:[#allocation5 + $0x8e8] sm:$0xff]
    %v351 = vld [vmem:[#allocation5 + $0x8f0] sm:$0xff]
    %v352 = vld [vmem:[#allocation5 + $0x8f8] sm:$0xff]
    %v353 = vld [vmem:[#allocation5 + $0x900] sm:$0xff]
    %v354 = vld [vmem:[#allocation5 + $0x908] sm:$0xff]
    %v355 = vld [vmem:[#allocation5 + $0x910] sm:$0xff]
    %v356 = vld [vmem:[#allocation5 + $0x918] sm:$0xff]
    %v357 = vld [vmem:[#allocation5 + $0x920] sm:$0xff]
    %v358 = vld [vmem:[#allocation5 + $0x928] sm:$0xff]
    %v359 = vld [vmem:[#allocation5 + $0x930] sm:$0xff]
    %v360 = vld [vmem:[#allocation5 + $0x938] sm:$0xff]
    %v361 = vld [vmem:[#allocation5 + $0x940] sm:$0xff]
    %v362 = vld [vmem:[#allocation5 + $0x948] sm:$0xff]
    %v363 = vld [vmem:[#allocation5 + $0x950] sm:$0xff]
    %v364 = vld [vmem:[#allocation5 + $0x958] sm:$0xff]
    %v365 = vld [vmem:[#allocation5 + $0x960] sm:$0xff]
    %v366 = vld [vmem:[#allocation5 + $0x968] sm:$0xff]
    %v367 = vld [vmem:[#allocation5 + $0x970] sm:$0xff]
    %v368 = vld [vmem:[#allocation5 + $0x978] sm:$0xff]
    %v369 = vld [vmem:[#allocation5 + $0x980] sm:$0xff]
    %v370 = vld [vmem:[#allocation5 + $0x988] sm:$0xff]
    %v371 = vld [vmem:[#allocation5 + $0x990] sm:$0xff]
    %v372 = vld [vmem:[#allocation5 + $0x998] sm:$0xff]
    %v373 = vld [vmem:[#allocation5 + $0x9a0] sm:$0xff]
    %v374 = vld [vmem:[#allocation5 + $0x9a8] sm:$0xff]
    %v375 = vld [vmem:[#allocation5 + $0x9b0] sm:$0xff]
    %v376 = vld [vmem:[#allocation5 + $0x9b8] sm:$0xff]
    %v377 = vld [vmem:[#allocation5 + $0x9c0] sm:$0xff]
    %v378 = vld [vmem:[#allocation5 + $0x9c8] sm:$0xff]
    %v379 = vld [vmem:[#allocation5 + $0x9d0] sm:$0xff]
    %v380 = vld [vmem:[#allocation5 + $0x9d8] sm:$0xff]
    %v381 = vld [vmem:[#allocation5 + $0x9e0] sm:$0xff]
    %v382 = vld [vmem:[#allocation5 + $0x9e8] sm:$0xff]
    %v383 = vld [vmem:[#allocation5 + $0x9f0] sm:$0xff]
    %v384 = vld [vmem:[#allocation5 + $0x9f8] sm:$0xff]
    %v385 = vld [vmem:[#allocation5 + $0xa00] sm:$0xff]
    %v386 = vld [vmem:[#allocation5 + $0xa08] sm:$0xff]
    %v387 = vld [vmem:[#allocation5 + $0xa10] sm:$0xff]
    %v388 = vld [vmem:[#allocation5 + $0xa18] sm:$0xff]
    %v389 = vld [vmem:[#allocation5 + $0xa20] sm:$0xff]
    %v390 = vld [vmem:[#allocation5 + $0xa28] sm:$0xff]
    %v391 = vld [vmem:[#allocation5 + $0xa30] sm:$0xff]
    %v392 = vld [vmem:[#allocation5 + $0xa38] sm:$0xff]
    %v393 = vld [vmem:[#allocation5 + $0xa40] sm:$0xff]
    %v394 = vld [vmem:[#allocation5 + $0xa48] sm:$0xff]
    %v395 = vld [vmem:[#allocation5 + $0xa50] sm:$0xff]
    %v396 = vld [vmem:[#allocation5 + $0xa58] sm:$0xff]
    %v397 = vld [vmem:[#allocation5 + $0xa60] sm:$0xff]
    %v398 = vld [vmem:[#allocation5 + $0xa68] sm:$0xff]
    %v399 = vld [vmem:[#allocation5 + $0xa70] sm:$0xff]
    %v400 = vld [vmem:[#allocation5 + $0xa78] sm:$0xff]
    %v401 = vld [vmem:[#allocation5 + $0xa80] sm:$0xff]
    %v402 = vld [vmem:[#allocation5 + $0xa88] sm:$0xff]
    %v403 = vld [vmem:[#allocation5 + $0xa90] sm:$0xff]
    %v404 = vld [vmem:[#allocation5 + $0xa98] sm:$0xff]
    %v405 = vld [vmem:[#allocation5 + $0xaa0] sm:$0xff]
    %v406 = vld [vmem:[#allocation5 + $0xaa8] sm:$0xff]
    %v407 = vld [vmem:[#allocation5 + $0xab0] sm:$0xff]
    %v408 = vld [vmem:[#allocation5 + $0xab8] sm:$0xff]
    %v409 = vld [vmem:[#allocation5 + $0xac0] sm:$0xff]
    %v410 = vld [vmem:[#allocation5 + $0xac8] sm:$0xff]
    %v411 = vld [vmem:[#allocation5 + $0xad0] sm:$0xff]
    %v412 = vld [vmem:[#allocation5 + $0xad8] sm:$0xff]
    %v413 = vld [vmem:[#allocation5 + $0xae0] sm:$0xff]
    %v414 = vld [vmem:[#allocation5 + $0xae8] sm:$0xff]
    %v415 = vld [vmem:[#allocation5 + $0xaf0] sm:$0xff]
    %v416 = vld [vmem:[#allocation5 + $0xaf8] sm:$0xff]
    %v417 = vld [vmem:[#allocation5 + $0xb00] sm:$0xff]
    %v418 = vld [vmem:[#allocation5 + $0xb08] sm:$0xff]
    %v419 = vld [vmem:[#allocation5 + $0xb10] sm:$0xff]
    %v420 = vld [vmem:[#allocation5 + $0xb18] sm:$0xff]
    %v421 = vld [vmem:[#allocation5 + $0xb20] sm:$0xff]
    %v422 = vld [vmem:[#allocation5 + $0xb28] sm:$0xff]
    %v423 = vld [vmem:[#allocation5 + $0xb30] sm:$0xff]
    %v424 = vld [vmem:[#allocation5 + $0xb38] sm:$0xff]
    %v425 = vld [vmem:[#allocation5 + $0xb40] sm:$0xff]
    %v426 = vld [vmem:[#allocation5 + $0xb48] sm:$0xff]
    %v427 = vld [vmem:[#allocation5 + $0xb50] sm:$0xff]
    %v428 = vld [vmem:[#allocation5 + $0xb58] sm:$0xff]
    %v429 = vld [vmem:[#allocation5 + $0xb60] sm:$0xff]
    %v430 = vld [vmem:[#allocation5 + $0xb68] sm:$0xff]
    %v431 = vld [vmem:[#allocation5 + $0xb70] sm:$0xff]
    %v432 = vld [vmem:[#allocation5 + $0xb78] sm:$0xff]
    %v433 = vld [vmem:[#allocation5 + $0xb80] sm:$0xff]
    %v434 = vld [vmem:[#allocation5 + $0xb88] sm:$0xff]
    %v435 = vld [vmem:[#allocation5 + $0xb90] sm:$0xff]
    %v436 = vld [vmem:[#allocation5 + $0xb98] sm:$0xff]
    %v437 = vld [vmem:[#allocation5 + $0xba0] sm:$0xff]
    %v438 = vld [vmem:[#allocation5 + $0xba8] sm:$0xff]
    %v439 = vld [vmem:[#allocation5 + $0xbb0] sm:$0xff]
    %v440 = vld [vmem:[#allocation5 + $0xbb8] sm:$0xff]
    %v441 = vld [vmem:[#allocation5 + $0xbc0] sm:$0xff]
    %v442 = vld [vmem:[#allocation5 + $0xbc8] sm:$0xff]
    %v443 = vld [vmem:[#allocation5 + $0xbd0] sm:$0xff]
    %v444 = vld [vmem:[#allocation5 + $0xbd8] sm:$0xff]
    %v445 = vld [vmem:[#allocation5 + $0xbe0] sm:$0xff]
    %v446 = vld [vmem:[#allocation5 + $0xbe8] sm:$0xff]
    %v447 = vld [vmem:[#allocation5 + $0xbf0] sm:$0xff]
    %v448 = vld [vmem:[#allocation5 + $0xbf8] sm:$0xff]
    %v453 = vunpack.c.l.b16 %v57
    %v454 = vunpack.c.h.b16 %v57
    %v455 = vunpack.c.l.b16 %v58
    %v456 = vunpack.c.h.b16 %v58
    %v457 = vunpack.c.l.b16 %v61
    %v458 = vunpack.c.h.b16 %v61
    %v459 = vunpack.c.l.b16 %v62
    %v460 = vunpack.c.h.b16 %v62
    %v461 = vpack.c.b16 %v457, %v453
    %v462 = vpack.c.b16 %v458, %v454
    %v463 = vpack.c.b16 %v459, %v455
    %v464 = vpack.c.b16 %v460, %v456
    %v597 = vunpack.c.l.b16 %v321
    %v598 = vunpack.c.h.b16 %v321
    %v599 = vunpack.c.l.b16 %v322
    %v600 = vunpack.c.h.b16 %v322
    %v601 = vunpack.c.l.b16 %v323
    %v602 = vunpack.c.h.b16 %v323
    %v603 = vunpack.c.l.b16 %v324
    %v604 = vunpack.c.h.b16 %v324
    %v605 = vunpack.c.l.b16 %v325
    %v606 = vunpack.c.h.b16 %v325
    %v607 = vunpack.c.l.b16 %v326
    %v608 = vunpack.c.h.b16 %v326
    %v609 = vunpack.c.l.b16 %v327
    %v610 = vunpack.c.h.b16 %v327
    %v611 = vunpack.c.l.b16 %v328
    %v612 = vunpack.c.h.b16 %v328
    %v613 = vunpack.c.l.b16 %v329
    %v614 = vunpack.c.h.b16 %v329
    %v615 = vunpack.c.l.b16 %v330
    %v616 = vunpack.c.h.b16 %v330
    %v617 = vunpack.c.l.b16 %v331
    %v618 = vunpack.c.h.b16 %v331
    %v619 = vunpack.c.l.b16 %v332
    %v620 = vunpack.c.h.b16 %v332
    %v621 = vunpack.c.l.b16 %v333
    %v622 = vunpack.c.h.b16 %v333
    %v623 = vunpack.c.l.b16 %v334
    %v624 = vunpack.c.h.b16 %v334
    %v625 = vunpack.c.l.b16 %v335
    %v626 = vunpack.c.h.b16 %v335
    %v627 = vunpack.c.l.b16 %v336
    %v628 = vunpack.c.h.b16 %v336
    %v629 = vunpack.c.l.b16 %v337
    %v630 = vunpack.c.h.b16 %v337
    %v631 = vunpack.c.l.b16 %v338
    %v632 = vunpack.c.h.b16 %v338
    %v633 = vunpack.c.l.b16 %v339
    %v634 = vunpack.c.h.b16 %v339
    %v635 = vunpack.c.l.b16 %v340
    %v636 = vunpack.c.h.b16 %v340
    %v637 = vunpack.c.l.b16 %v341
    %v638 = vunpack.c.h.b16 %v341
    %v639 = vunpack.c.l.b16 %v342
    %v640 = vunpack.c.h.b16 %v342
    %v641 = vunpack.c.l.b16 %v343
    %v642 = vunpack.c.h.b16 %v343
    %v643 = vunpack.c.l.b16 %v344
    %v644 = vunpack.c.h.b16 %v344
    %v645 = vunpack.c.l.b16 %v345
    %v646 = vunpack.c.h.b16 %v345
    %v647 = vunpack.c.l.b16 %v346
    %v648 = vunpack.c.h.b16 %v346
    %v649 = vunpack.c.l.b16 %v347
    %v650 = vunpack.c.h.b16 %v347
    %v651 = vunpack.c.l.b16 %v348
    %v652 = vunpack.c.h.b16 %v348
    %v653 = vunpack.c.l.b16 %v349
    %v654 = vunpack.c.h.b16 %v349
    %v655 = vunpack.c.l.b16 %v350
    %v656 = vunpack.c.h.b16 %v350
    %v657 = vunpack.c.l.b16 %v351
    %v658 = vunpack.c.h.b16 %v351
    %v659 = vunpack.c.l.b16 %v352
    %v660 = vunpack.c.h.b16 %v352
    %v661 = vunpack.c.l.b16 %v353
    %v662 = vunpack.c.h.b16 %v353
    %v663 = vunpack.c.l.b16 %v354
    %v664 = vunpack.c.h.b16 %v354
    %v665 = vunpack.c.l.b16 %v355
    %v666 = vunpack.c.h.b16 %v355
    %v667 = vunpack.c.l.b16 %v356
    %v668 = vunpack.c.h.b16 %v356
    %v669 = vunpack.c.l.b16 %v357
    %v670 = vunpack.c.h.b16 %v357
    %v671 = vunpack.c.l.b16 %v358
    %v672 = vunpack.c.h.b16 %v358
    %v673 = vunpack.c.l.b16 %v359
    %v674 = vunpack.c.h.b16 %v359
    %v675 = vunpack.c.l.b16 %v360
    %v676 = vunpack.c.h.b16 %v360
    %v677 = vunpack.c.l.b16 %v361
    %v678 = vunpack.c.h.b16 %v361
    %v679 = vunpack.c.l.b16 %v362
    %v680 = vunpack.c.h.b16 %v362
    %v681 = vunpack.c.l.b16 %v363
    %v682 = vunpack.c.h.b16 %v363
    %v683 = vunpack.c.l.b16 %v364
    %v684 = vunpack.c.h.b16 %v364
    %v685 = vunpack.c.l.b16 %v365
    %v686 = vunpack.c.h.b16 %v365
    %v687 = vunpack.c.l.b16 %v366
    %v688 = vunpack.c.h.b16 %v366
    %v689 = vunpack.c.l.b16 %v367
    %v690 = vunpack.c.h.b16 %v367
    %v691 = vunpack.c.l.b16 %v368
    %v692 = vunpack.c.h.b16 %v368
    %v693 = vunpack.c.l.b16 %v369
    %v694 = vunpack.c.h.b16 %v369
    %v695 = vunpack.c.l.b16 %v370
    %v696 = vunpack.c.h.b16 %v370
    %v697 = vunpack.c.l.b16 %v371
    %v698 = vunpack.c.h.b16 %v371
    %v699 = vunpack.c.l.b16 %v372
    %v700 = vunpack.c.h.b16 %v372
    %v701 = vunpack.c.l.b16 %v373
    %v702 = vunpack.c.h.b16 %v373
    %v703 = vunpack.c.l.b16 %v374
    %v704 = vunpack.c.h.b16 %v374
    %v705 = vunpack.c.l.b16 %v375
    %v706 = vunpack.c.h.b16 %v375
    %v707 = vunpack.c.l.b16 %v376
    %v708 = vunpack.c.h.b16 %v376
    %v709 = vunpack.c.l.b16 %v377
    %v710 = vunpack.c.h.b16 %v377
    %v711 = vunpack.c.l.b16 %v378
    %v712 = vunpack.c.h.b16 %v378
    %v713 = vunpack.c.l.b16 %v379
    %v714 = vunpack.c.h.b16 %v379
    %v715 = vunpack.c.l.b16 %v380
    %v716 = vunpack.c.h.b16 %v380
    %v717 = vunpack.c.l.b16 %v381
    %v718 = vunpack.c.h.b16 %v381
    %v719 = vunpack.c.l.b16 %v382
    %v720 = vunpack.c.h.b16 %v382
    %v721 = vunpack.c.l.b16 %v383
    %v722 = vunpack.c.h.b16 %v383
    %v723 = vunpack.c.l.b16 %v384
    %v724 = vunpack.c.h.b16 %v384
    %v725 = vunpack.c.l.b16 %v385
    %v726 = vunpack.c.h.b16 %v385
    %v727 = vunpack.c.l.b16 %v386
    %v728 = vunpack.c.h.b16 %v386
    %v729 = vunpack.c.l.b16 %v387
    %v730 = vunpack.c.h.b16 %v387
    %v731 = vunpack.c.l.b16 %v388
    %v732 = vunpack.c.h.b16 %v388
    %v733 = vunpack.c.l.b16 %v389
    %v734 = vunpack.c.h.b16 %v389
    %v735 = vunpack.c.l.b16 %v390
    %v736 = vunpack.c.h.b16 %v390
    %v737 = vunpack.c.l.b16 %v391
    %v738 = vunpack.c.h.b16 %v391
    %v739 = vunpack.c.l.b16 %v392
    %v740 = vunpack.c.h.b16 %v392
    %v741 = vunpack.c.l.b16 %v393
    %v742 = vunpack.c.h.b16 %v393
    %v743 = vunpack.c.l.b16 %v394
    %v744 = vunpack.c.h.b16 %v394
    %v745 = vunpack.c.l.b16 %v395
    %v746 = vunpack.c.h.b16 %v395
    %v747 = vunpack.c.l.b16 %v396
    %v748 = vunpack.c.h.b16 %v396
    %v749 = vunpack.c.l.b16 %v397
    %v750 = vunpack.c.h.b16 %v397
    %v751 = vunpack.c.l.b16 %v398
    %v752 = vunpack.c.h.b16 %v398
    %v753 = vunpack.c.l.b16 %v399
    %v754 = vunpack.c.h.b16 %v399
    %v755 = vunpack.c.l.b16 %v400
    %v756 = vunpack.c.h.b16 %v400
    %v757 = vunpack.c.l.b16 %v401
    %v758 = vunpack.c.h.b16 %v401
    %v759 = vunpack.c.l.b16 %v402
    %v760 = vunpack.c.h.b16 %v402
    %v761 = vunpack.c.l.b16 %v403
    %v762 = vunpack.c.h.b16 %v403
    %v763 = vunpack.c.l.b16 %v404
    %v764 = vunpack.c.h.b16 %v404
    %v765 = vunpack.c.l.b16 %v405
    %v766 = vunpack.c.h.b16 %v405
    %v767 = vunpack.c.l.b16 %v406
    %v768 = vunpack.c.h.b16 %v406
    %v769 = vunpack.c.l.b16 %v407
    %v770 = vunpack.c.h.b16 %v407
    %v771 = vunpack.c.l.b16 %v408
    %v772 = vunpack.c.h.b16 %v408
    %v773 = vunpack.c.l.b16 %v409
    %v774 = vunpack.c.h.b16 %v409
    %v775 = vunpack.c.l.b16 %v410
    %v776 = vunpack.c.h.b16 %v410
    %v777 = vunpack.c.l.b16 %v411
    %v778 = vunpack.c.h.b16 %v411
    %v779 = vunpack.c.l.b16 %v412
    %v780 = vunpack.c.h.b16 %v412
    %v781 = vunpack.c.l.b16 %v413
    %v782 = vunpack.c.h.b16 %v413
    %v783 = vunpack.c.l.b16 %v414
    %v784 = vunpack.c.h.b16 %v414
    %v785 = vunpack.c.l.b16 %v415
    %v786 = vunpack.c.h.b16 %v415
    %v787 = vunpack.c.l.b16 %v416
    %v788 = vunpack.c.h.b16 %v416
    %v789 = vunpack.c.l.b16 %v417
    %v790 = vunpack.c.h.b16 %v417
    %v791 = vunpack.c.l.b16 %v418
    %v792 = vunpack.c.h.b16 %v418
    %v793 = vunpack.c.l.b16 %v419
    %v794 = vunpack.c.h.b16 %v419
    %v795 = vunpack.c.l.b16 %v420
    %v796 = vunpack.c.h.b16 %v420
    %v797 = vunpack.c.l.b16 %v421
    %v798 = vunpack.c.h.b16 %v421
    %v799 = vunpack.c.l.b16 %v422
    %v800 = vunpack.c.h.b16 %v422
    %v801 = vunpack.c.l.b16 %v423
    %v802 = vunpack.c.h.b16 %v423
    %v803 = vunpack.c.l.b16 %v424
    %v804 = vunpack.c.h.b16 %v424
    %v805 = vunpack.c.l.b16 %v425
    %v806 = vunpack.c.h.b16 %v425
    %v807 = vunpack.c.l.b16 %v426
    %v808 = vunpack.c.h.b16 %v426
    %v809 = vunpack.c.l.b16 %v427
    %v810 = vunpack.c.h.b16 %v427
    %v811 = vunpack.c.l.b16 %v428
    %v812 = vunpack.c.h.b16 %v428
    %v813 = vunpack.c.l.b16 %v429
    %v814 = vunpack.c.h.b16 %v429
    %v815 = vunpack.c.l.b16 %v430
    %v816 = vunpack.c.h.b16 %v430
    %v817 = vunpack.c.l.b16 %v431
    %v818 = vunpack.c.h.b16 %v431
    %v819 = vunpack.c.l.b16 %v432
    %v820 = vunpack.c.h.b16 %v432
    %v821 = vunpack.c.l.b16 %v433
    %v822 = vunpack.c.h.b16 %v433
    %v823 = vunpack.c.l.b16 %v434
    %v824 = vunpack.c.h.b16 %v434
    %v825 = vunpack.c.l.b16 %v435
    %v826 = vunpack.c.h.b16 %v435
    %v827 = vunpack.c.l.b16 %v436
    %v828 = vunpack.c.h.b16 %v436
    %v829 = vunpack.c.l.b16 %v437
    %v830 = vunpack.c.h.b16 %v437
    %v831 = vunpack.c.l.b16 %v438
    %v832 = vunpack.c.h.b16 %v438
    %v833 = vunpack.c.l.b16 %v439
    %v834 = vunpack.c.h.b16 %v439
    %v835 = vunpack.c.l.b16 %v440
    %v836 = vunpack.c.h.b16 %v440
    %v837 = vunpack.c.l.b16 %v441
    %v838 = vunpack.c.h.b16 %v441
    %v839 = vunpack.c.l.b16 %v442
    %v840 = vunpack.c.h.b16 %v442
    %v841 = vunpack.c.l.b16 %v443
    %v842 = vunpack.c.h.b16 %v443
    %v843 = vunpack.c.l.b16 %v444
    %v844 = vunpack.c.h.b16 %v444
    %v845 = vunpack.c.l.b16 %v445
    %v846 = vunpack.c.h.b16 %v445
    %v847 = vunpack.c.l.b16 %v446
    %v848 = vunpack.c.h.b16 %v446
    %v849 = vunpack.c.l.b16 %v447
    %v850 = vunpack.c.h.b16 %v447
    %v851 = vunpack.c.l.b16 %v448
    %v852 = vunpack.c.h.b16 %v448
    %v853 = vpack.c.b16 %v601, %v597
    %v854 = vpack.c.b16 %v602, %v598
    %v855 = vpack.c.b16 %v603, %v599
    %v856 = vpack.c.b16 %v604, %v600
    %v857 = vpack.c.b16 %v609, %v605
    %v858 = vpack.c.b16 %v610, %v606
    %v859 = vpack.c.b16 %v611, %v607
    %v860 = vpack.c.b16 %v612, %v608
    %v861 = vpack.c.b16 %v617, %v613
    %v862 = vpack.c.b16 %v618, %v614
    %v863 = vpack.c.b16 %v619, %v615
    %v864 = vpack.c.b16 %v620, %v616
    %v865 = vpack.c.b16 %v625, %v621
    %v866 = vpack.c.b16 %v626, %v622
    %v867 = vpack.c.b16 %v627, %v623
    %v868 = vpack.c.b16 %v628, %v624
    %v869 = vpack.c.b16 %v633, %v629
    %v870 = vpack.c.b16 %v634, %v630
    %v871 = vpack.c.b16 %v635, %v631
    %v872 = vpack.c.b16 %v636, %v632
    %v873 = vpack.c.b16 %v641, %v637
    %v874 = vpack.c.b16 %v642, %v638
    %v875 = vpack.c.b16 %v643, %v639
    %v876 = vpack.c.b16 %v644, %v640
    %v877 = vpack.c.b16 %v649, %v645
    %v878 = vpack.c.b16 %v650, %v646
    %v879 = vpack.c.b16 %v651, %v647
    %v880 = vpack.c.b16 %v652, %v648
    %v881 = vpack.c.b16 %v657, %v653
    %v882 = vpack.c.b16 %v658, %v654
    %v883 = vpack.c.b16 %v659, %v655
    %v884 = vpack.c.b16 %v660, %v656
    %v885 = vpack.c.b16 %v665, %v661
    %v886 = vpack.c.b16 %v666, %v662
    %v887 = vpack.c.b16 %v667, %v663
    %v888 = vpack.c.b16 %v668, %v664
    %v889 = vpack.c.b16 %v673, %v669
    %v890 = vpack.c.b16 %v674, %v670
    %v891 = vpack.c.b16 %v675, %v671
    %v892 = vpack.c.b16 %v676, %v672
    %v893 = vpack.c.b16 %v681, %v677
    %v894 = vpack.c.b16 %v682, %v678
    %v895 = vpack.c.b16 %v683, %v679
    %v896 = vpack.c.b16 %v684, %v680
    %v897 = vpack.c.b16 %v689, %v685
    %v898 = vpack.c.b16 %v690, %v686
    %v899 = vpack.c.b16 %v691, %v687
    %v900 = vpack.c.b16 %v692, %v688
    %v901 = vpack.c.b16 %v697, %v693
    %v902 = vpack.c.b16 %v698, %v694
    %v903 = vpack.c.b16 %v699, %v695
    %v904 = vpack.c.b16 %v700, %v696
    %v905 = vpack.c.b16 %v705, %v701
    %v906 = vpack.c.b16 %v706, %v702
    %v907 = vpack.c.b16 %v707, %v703
    %v908 = vpack.c.b16 %v708, %v704
    %v909 = vpack.c.b16 %v713, %v709
    %v910 = vpack.c.b16 %v714, %v710
    %v911 = vpack.c.b16 %v715, %v711
    %v912 = vpack.c.b16 %v716, %v712
    %v913 = vpack.c.b16 %v721, %v717
    %v914 = vpack.c.b16 %v722, %v718
    %v915 = vpack.c.b16 %v723, %v719
    %v916 = vpack.c.b16 %v724, %v720
    %v917 = vpack.c.b16 %v729, %v725
    %v918 = vpack.c.b16 %v730, %v726
    %v919 = vpack.c.b16 %v731, %v727
    %v920 = vpack.c.b16 %v732, %v728
    %v921 = vpack.c.b16 %v737, %v733
    %v922 = vpack.c.b16 %v738, %v734
    %v923 = vpack.c.b16 %v739, %v735
    %v924 = vpack.c.b16 %v740, %v736
    %v925 = vpack.c.b16 %v745, %v741
    %v926 = vpack.c.b16 %v746, %v742
    %v927 = vpack.c.b16 %v747, %v743
    %v928 = vpack.c.b16 %v748, %v744
    %v929 = vpack.c.b16 %v753, %v749
    %v930 = vpack.c.b16 %v754, %v750
    %v931 = vpack.c.b16 %v755, %v751
    %v932 = vpack.c.b16 %v756, %v752
    %v933 = vpack.c.b16 %v761, %v757
    %v934 = vpack.c.b16 %v762, %v758
    %v935 = vpack.c.b16 %v763, %v759
    %v936 = vpack.c.b16 %v764, %v760
    %v937 = vpack.c.b16 %v769, %v765
    %v938 = vpack.c.b16 %v770, %v766
    %v939 = vpack.c.b16 %v771, %v767
    %v940 = vpack.c.b16 %v772, %v768
    %v941 = vpack.c.b16 %v777, %v773
    %v942 = vpack.c.b16 %v778, %v774
    %v943 = vpack.c.b16 %v779, %v775
    %v944 = vpack.c.b16 %v780, %v776
    %v945 = vpack.c.b16 %v785, %v781
    %v946 = vpack.c.b16 %v786, %v782
    %v947 = vpack.c.b16 %v787, %v783
    %v948 = vpack.c.b16 %v788, %v784
    %v949 = vpack.c.b16 %v793, %v789
    %v950 = vpack.c.b16 %v794, %v790
    %v951 = vpack.c.b16 %v795, %v791
    %v952 = vpack.c.b16 %v796, %v792
    %v953 = vpack.c.b16 %v801, %v797
    %v954 = vpack.c.b16 %v802, %v798
    %v955 = vpack.c.b16 %v803, %v799
    %v956 = vpack.c.b16 %v804, %v800
    %v957 = vpack.c.b16 %v809, %v805
    %v958 = vpack.c.b16 %v810, %v806
    %v959 = vpack.c.b16 %v811, %v807
    %v960 = vpack.c.b16 %v812, %v808
    %v961 = vpack.c.b16 %v817, %v813
    %v962 = vpack.c.b16 %v818, %v814
    %v963 = vpack.c.b16 %v819, %v815
    %v964 = vpack.c.b16 %v820, %v816
    %v965 = vpack.c.b16 %v825, %v821
    %v966 = vpack.c.b16 %v826, %v822
    %v967 = vpack.c.b16 %v827, %v823
    %v968 = vpack.c.b16 %v828, %v824
    %v969 = vpack.c.b16 %v833, %v829
    %v970 = vpack.c.b16 %v834, %v830
    %v971 = vpack.c.b16 %v835, %v831
    %v972 = vpack.c.b16 %v836, %v832
    %v973 = vpack.c.b16 %v841, %v837
    %v974 = vpack.c.b16 %v842, %v838
    %v975 = vpack.c.b16 %v843, %v839
    %v976 = vpack.c.b16 %v844, %v840
    %v977 = vpack.c.b16 %v849, %v845
    %v978 = vpack.c.b16 %v850, %v846
    %v979 = vpack.c.b16 %v851, %v847
    %v980 = vpack.c.b16 %v852, %v848
    %1109 = vmatprep.subr.bf16.mxu0 %v854
    %1110 = vmatpush1.bf16.msra.mxu0 %v853
    %1111 = vmatprep.subr.bf16.mxu0 %v858
    %1112 = vmatpush1.bf16.msra.mxu0 %v857
    %1113 = vmatprep.subr.bf16.mxu0 %v862
    %1114 = vmatpush1.bf16.msra.mxu0 %v861
    %1115 = vmatprep.subr.bf16.mxu0 %v866
    %1116 = vmatpush1.bf16.msra.mxu0 %v865
    %1117 = vmatprep.subr.bf16.mxu0 %v870
    %1118 = vmatpush1.bf16.msra.mxu0 %v869
    %1119 = vmatprep.subr.bf16.mxu0 %v874
    %1120 = vmatpush1.bf16.msra.mxu0 %v873
    %1121 = vmatprep.subr.bf16.mxu0 %v878
    %1122 = vmatpush1.bf16.msra.mxu0 %v877
    %1123 = vmatprep.subr.bf16.mxu0 %v882
    %1124 = vmatpush1.bf16.msra.mxu0 %v881
    %1125 = vmatprep.subr.bf16.mxu0 %v886
    %1126 = vmatpush1.bf16.msra.mxu0 %v885
    %1127 = vmatprep.subr.bf16.mxu0 %v890
    %1128 = vmatpush1.bf16.msra.mxu0 %v889
    %1129 = vmatprep.subr.bf16.mxu0 %v894
    %1130 = vmatpush1.bf16.msra.mxu0 %v893
    %1131 = vmatprep.subr.bf16.mxu0 %v898
    %1132 = vmatpush1.bf16.msra.mxu0 %v897
    %1133 = vmatprep.subr.bf16.mxu0 %v902
    %1134 = vmatpush1.bf16.msra.mxu0 %v901
    %1135 = vmatprep.subr.bf16.mxu0 %v906
    %1136 = vmatpush1.bf16.msra.mxu0 %v905
    %1137 = vmatprep.subr.bf16.mxu0 %v910
    %1138 = vmatpush1.bf16.msra.mxu0 %v909
    %1139 = vmatprep.subr.bf16.mxu0 %v914
    %1140 = vmatpush1.bf16.msra.mxu0 %v913
    %1141 = vmatprep.mubr.bf16.mxu0 %v462
    %1142 = vmatmul.mubr.bf16.gmra.mrb[0].mxu0 %v461
    %v1143 = vpop.f32.mrb[0].mxu0
    %v1144 = vadd.f32 0.0, %v1143
    %v1145 = vpop.f32.mrb[0].mxu0
    %v1146 = vadd.f32 0.0, %v1145
    %v1147 = vpop.f32.mrb[0].mxu0
    %v1148 = vadd.f32 0.0, %v1147
    %v1149 = vpop.f32.mrb[0].mxu0
    %v1150 = vadd.f32 0.0, %v1149
    %1151 = vdwg.mxu0
    %1152 = vmatprep.subr.bf16.mxu0 %v918
    %1153 = vmatpush1.bf16.msra.mxu0 %v917
    %1154 = vmatprep.subr.bf16.mxu0 %v922
    %1155 = vmatpush1.bf16.msra.mxu0 %v921
    %1156 = vmatprep.subr.bf16.mxu0 %v926
    %1157 = vmatpush1.bf16.msra.mxu0 %v925
    %1158 = vmatprep.subr.bf16.mxu0 %v930
    %1159 = vmatpush1.bf16.msra.mxu0 %v929
    %1160 = vmatprep.subr.bf16.mxu0 %v934
    %1161 = vmatpush1.bf16.msra.mxu0 %v933
    %1162 = vmatprep.subr.bf16.mxu0 %v938
    %1163 = vmatpush1.bf16.msra.mxu0 %v937
    %1164 = vmatprep.subr.bf16.mxu0 %v942
    %1165 = vmatpush1.bf16.msra.mxu0 %v941
    %1166 = vmatprep.subr.bf16.mxu0 %v946
    %1167 = vmatpush1.bf16.msra.mxu0 %v945
    %1168 = vmatprep.subr.bf16.mxu0 %v950
    %1169 = vmatpush1.bf16.msra.mxu0 %v949
    %1170 = vmatprep.subr.bf16.mxu0 %v954
    %1171 = vmatpush1.bf16.msra.mxu0 %v953
    %1172 = vmatprep.subr.bf16.mxu0 %v958
    %1173 = vmatpush1.bf16.msra.mxu0 %v957
    %1174 = vmatprep.subr.bf16.mxu0 %v962
    %1175 = vmatpush1.bf16.msra.mxu0 %v961
    %1176 = vmatprep.subr.bf16.mxu0 %v966
    %1177 = vmatpush1.bf16.msra.mxu0 %v965
    %1178 = vmatprep.subr.bf16.mxu0 %v970
    %1179 = vmatpush1.bf16.msra.mxu0 %v969
    %1180 = vmatprep.subr.bf16.mxu0 %v974
    %1181 = vmatpush1.bf16.msra.mxu0 %v973
    %1182 = vmatprep.subr.bf16.mxu0 %v978
    %1183 = vmatpush1.bf16.msra.mxu0 %v977
    %1184 = vmatprep.mubr.bf16.mxu0 %v464
    %1185 = vmatmul.mubr.bf16.gmra.mrb[0].mxu0 %v463
    %v1186 = vpop.f32.mrb[0].mxu0
    %v1187 = vadd.f32 %v1144, %v1186
    %v1188 = vpop.f32.mrb[0].mxu0
    %v1189 = vadd.f32 %v1146, %v1188
    %v1190 = vpop.f32.mrb[0].mxu0
    %v1191 = vadd.f32 %v1148, %v1190
    %v1192 = vpop.f32.mrb[0].mxu0
    %v1193 = vadd.f32 %v1150, %v1192
    %1194 = vdwg.mxu0
    %1195 = vmatprep.subr.bf16.mxu0 %v856
    %1196 = vmatpush1.bf16.msra.mxu0 %v855
    %1197 = vmatprep.subr.bf16.mxu0 %v860
    %1198 = vmatpush1.bf16.msra.mxu0 %v859
    %1199 = vmatprep.subr.bf16.mxu0 %v864
    %1200 = vmatpush1.bf16.msra.mxu0 %v863
    %1201 = vmatprep.subr.bf16.mxu0 %v868
    %1202 = vmatpush1.bf16.msra.mxu0 %v867
    %1203 = vmatprep.subr.bf16.mxu0 %v872
    %1204 = vmatpush1.bf16.msra.mxu0 %v871
    %1205 = vmatprep.subr.bf16.mxu0 %v876
    %1206 = vmatpush1.bf16.msra.mxu0 %v875
    %1207 = vmatprep.subr.bf16.mxu0 %v880
    %1208 = vmatpush1.bf16.msra.mxu0 %v879
    %1209 = vmatprep.subr.bf16.mxu0 %v884
    %1210 = vmatpush1.bf16.msra.mxu0 %v883
    %1211 = vmatprep.subr.bf16.mxu0 %v888
    %1212 = vmatpush1.bf16.msra.mxu0 %v887
    %1213 = vmatprep.subr.bf16.mxu0 %v892
    %1214 = vmatpush1.bf16.msra.mxu0 %v891
    %1215 = vmatprep.subr.bf16.mxu0 %v896
    %1216 = vmatpush1.bf16.msra.mxu0 %v895
    %1217 = vmatprep.subr.bf16.mxu0 %v900
    %1218 = vmatpush1.bf16.msra.mxu0 %v899
    %1219 = vmatprep.subr.bf16.mxu0 %v904
    %1220 = vmatpush1.bf16.msra.mxu0 %v903
    %1221 = vmatprep.subr.bf16.mxu0 %v908
    %1222 = vmatpush1.bf16.msra.mxu0 %v907
    %1223 = vmatprep.subr.bf16.mxu0 %v912
    %1224 = vmatpush1.bf16.msra.mxu0 %v911
    %1225 = vmatprep.subr.bf16.mxu0 %v916
    %1226 = vmatpush1.bf16.msra.mxu0 %v915
    %1227 = vmatprep.mubr.bf16.mxu0 %v462
    %1228 = vmatmul.mubr.bf16.gmra.mrb[0].mxu0 %v461
    %v1229 = vpop.f32.mrb[0].mxu0
    %v1230 = vadd.f32 0.0, %v1229
    %v1231 = vpop.f32.mrb[0].mxu0
    %v1232 = vadd.f32 0.0, %v1231
    %v1233 = vpop.f32.mrb[0].mxu0
    %v1234 = vadd.f32 0.0, %v1233
    %v1235 = vpop.f32.mrb[0].mxu0
    %v1236 = vadd.f32 0.0, %v1235
    %1237 = vdwg.mxu0
    %1238 = vmatprep.subr.bf16.mxu0 %v920
    %1239 = vmatpush1.bf16.msra.mxu0 %v919
    %1240 = vmatprep.subr.bf16.mxu0 %v924
    %1241 = vmatpush1.bf16.msra.mxu0 %v923
    %1242 = vmatprep.subr.bf16.mxu0 %v928
    %1243 = vmatpush1.bf16.msra.mxu0 %v927
    %1244 = vmatprep.subr.bf16.mxu0 %v932
    %1245 = vmatpush1.bf16.msra.mxu0 %v931
    %1246 = vmatprep.subr.bf16.mxu0 %v936
    %1247 = vmatpush1.bf16.msra.mxu0 %v935
    %1248 = vmatprep.subr.bf16.mxu0 %v940
    %1249 = vmatpush1.bf16.msra.mxu0 %v939
    %1250 = vmatprep.subr.bf16.mxu0 %v944
    %1251 = vmatpush1.bf16.msra.mxu0 %v943
    %1252 = vmatprep.subr.bf16.mxu0 %v948
    %1253 = vmatpush1.bf16.msra.mxu0 %v947
    %1254 = vmatprep.subr.bf16.mxu0 %v952
    %1255 = vmatpush1.bf16.msra.mxu0 %v951
    %1256 = vmatprep.subr.bf16.mxu0 %v956
    %1257 = vmatpush1.bf16.msra.mxu0 %v955
    %1258 = vmatprep.subr.bf16.mxu0 %v960
    %1259 = vmatpush1.bf16.msra.mxu0 %v959
    %1260 = vmatprep.subr.bf16.mxu0 %v964
    %1261 = vmatpush1.bf16.msra.mxu0 %v963
    %1262 = vmatprep.subr.bf16.mxu0 %v968
    %1263 = vmatpush1.bf16.msra.mxu0 %v967
    %1264 = vmatprep.subr.bf16.mxu0 %v972
    %1265 = vmatpush1.bf16.msra.mxu0 %v971
    %1266 = vmatprep.subr.bf16.mxu0 %v976
    %1267 = vmatpush1.bf16.msra.mxu0 %v975
    %1268 = vmatprep.subr.bf16.mxu0 %v980
    %1269 = vmatpush1.bf16.msra.mxu0 %v979
    %1270 = vmatprep.mubr.bf16.mxu0 %v464
    %1271 = vmatmul.mubr.bf16.gmra.mrb[0].mxu0 %v463
    %v1272 = vpop.f32.mrb[0].mxu0
    %v1273 = vadd.f32 %v1230, %v1272
    %v1274 = vpop.f32.mrb[0].mxu0
    %v1275 = vadd.f32 %v1232, %v1274
    %v1276 = vpop.f32.mrb[0].mxu0
    %v1277 = vadd.f32 %v1234, %v1276
    %v1278 = vpop.f32.mrb[0].mxu0
    %v1279 = vadd.f32 %v1236, %v1278
    %1280 = vdwg.mxu0
    %vm1289 = vcmask 1046528
    %v1290 = vrot.slane %v1187, 1
    %v1291 = vrot.slane %v1191, 1
    %v1292 = vsel %vm1289, %v1290, %v1291
    %v1293 = vrot.slane %v1189, 1
    %v1294 = vrot.slane %v1193, 1
    %v1295 = vsel %vm1289, %v1293, %v1294
    %v1296 = vrot.slane %v1273, 1
    %v1297 = vrot.slane %v1277, 1
    %v1298 = vsel %vm1289, %v1296, %v1297
    %v1299 = vrot.slane %v1275, 1
    %v1300 = vrot.slane %v1279, 1
    %v1301 = vsel %vm1289, %v1299, %v1300
    %v1310 = vsel %vm1289, %v1291, 0.0
    %v1311 = vsel %vm1289, %v1294, 0.0
    %v1312 = vsel %vm1289, %v1297, 0.0
    %v1313 = vsel %vm1289, %v1300, 0.0
    %v1314 = vlaneseq
    %v1315 = vshrl.u32 %v1314, 7
    %v1316 = vadd.s32 %v1315, 8
    %v1317 = vlaneseq
    %v1318 = vand.u32 %v1317, 127
    %v1319 = vmul.u32 %v1318, 8
    %v1320 = vadd.s32 %v1319, 7
    %vm1321 = vcmp.eq.s32.totalorder %v1315, %v1320
    %vm1322 = vcmp.eq.s32.totalorder %v1316, %v1320
    %v1323 = vsel %vm1321, 1, 0
    %v1324 = vsel %vm1322, 1, 0
    %v1325 = vcvt.s32.f32 %v1323
    %v1326 = vcvt.s32.f32 %v1324
    %vm1327 = vcmask 64512
    %v1328 = vsel %vm1327, %v1325, 0.0
    %1329 = vadd.xlane.f32.xlu0 %v1328
    %v1330 = vpop.xlane.xlu0 %1329
    %v1331 = vsel %vm1327, %v1326, 0.0
    %1332 = vadd.xlane.f32.xlu0 %v1331
    %v1333 = vpop.xlane.xlu0 %1332
    %v1334 = vsub.f32 1.0, %v1330
    %v1335 = vsub.f32 1.0, %v1333
    %v1336 = vmul.f32 %v1334, %v1292
    %v1337 = vmul.f32 %v1334, %v1295
    %v1338 = vmul.f32 %v1334, %v1298
    %v1339 = vmul.f32 %v1334, %v1301
    %v1340 = vmul.f32 %v1335, %v1310
    %v1341 = vmul.f32 %v1335, %v1311
    %v1342 = vmul.f32 %v1335, %v1312
    %v1343 = vmul.f32 %v1335, %v1313
    %v1348 = vunpack.c.l.b16 %v59
    %v1349 = vunpack.c.h.b16 %v59
    %v1350 = vunpack.c.l.b16 %v60
    %v1351 = vunpack.c.h.b16 %v60
    %v1352 = vunpack.c.l.b16 %v63
    %v1353 = vunpack.c.h.b16 %v63
    %v1354 = vunpack.c.l.b16 %v64
    %v1355 = vunpack.c.h.b16 %v64
    %v1356 = vpack.c.b16 %v1352, %v1348
    %v1357 = vpack.c.b16 %v1353, %v1349
    %v1358 = vpack.c.b16 %v1354, %v1350
    %v1359 = vpack.c.b16 %v1355, %v1351
    %v1620 = vunpack.c.l.b16 %v65
    %v1621 = vunpack.c.h.b16 %v65
    %v1622 = vunpack.c.l.b16 %v66
    %v1623 = vunpack.c.h.b16 %v66
    %v1624 = vunpack.c.l.b16 %v67
    %v1625 = vunpack.c.h.b16 %v67
    %v1626 = vunpack.c.l.b16 %v68
    %v1627 = vunpack.c.h.b16 %v68
    %v1628 = vunpack.c.l.b16 %v69
    %v1629 = vunpack.c.h.b16 %v69
    %v1630 = vunpack.c.l.b16 %v70
    %v1631 = vunpack.c.h.b16 %v70
    %v1632 = vunpack.c.l.b16 %v71
    %v1633 = vunpack.c.h.b16 %v71
    %v1634 = vunpack.c.l.b16 %v72
    %v1635 = vunpack.c.h.b16 %v72
    %v1636 = vunpack.c.l.b16 %v73
    %v1637 = vunpack.c.h.b16 %v73
    %v1638 = vunpack.c.l.b16 %v74
    %v1639 = vunpack.c.h.b16 %v74
    %v1640 = vunpack.c.l.b16 %v75
    %v1641 = vunpack.c.h.b16 %v75
    %v1642 = vunpack.c.l.b16 %v76
    %v1643 = vunpack.c.h.b16 %v76
    %v1644 = vunpack.c.l.b16 %v77
    %v1645 = vunpack.c.h.b16 %v77
    %v1646 = vunpack.c.l.b16 %v78
    %v1647 = vunpack.c.h.b16 %v78
    %v1648 = vunpack.c.l.b16 %v79
    %v1649 = vunpack.c.h.b16 %v79
    %v1650 = vunpack.c.l.b16 %v80
    %v1651 = vunpack.c.h.b16 %v80
    %v1652 = vunpack.c.l.b16 %v81
    %v1653 = vunpack.c.h.b16 %v81
    %v1654 = vunpack.c.l.b16 %v82
    %v1655 = vunpack.c.h.b16 %v82
    %v1656 = vunpack.c.l.b16 %v83
    %v1657 = vunpack.c.h.b16 %v83
    %v1658 = vunpack.c.l.b16 %v84
    %v1659 = vunpack.c.h.b16 %v84
    %v1660 = vunpack.c.l.b16 %v85
    %v1661 = vunpack.c.h.b16 %v85
    %v1662 = vunpack.c.l.b16 %v86
    %v1663 = vunpack.c.h.b16 %v86
    %v1664 = vunpack.c.l.b16 %v87
    %v1665 = vunpack.c.h.b16 %v87
    %v1666 = vunpack.c.l.b16 %v88
    %v1667 = vunpack.c.h.b16 %v88
    %v1668 = vunpack.c.l.b16 %v89
    %v1669 = vunpack.c.h.b16 %v89
    %v1670 = vunpack.c.l.b16 %v90
    %v1671 = vunpack.c.h.b16 %v90
    %v1672 = vunpack.c.l.b16 %v91
    %v1673 = vunpack.c.h.b16 %v91
    %v1674 = vunpack.c.l.b16 %v92
    %v1675 = vunpack.c.h.b16 %v92
    %v1676 = vunpack.c.l.b16 %v93
    %v1677 = vunpack.c.h.b16 %v93
    %v1678 = vunpack.c.l.b16 %v94
    %v1679 = vunpack.c.h.b16 %v94
    %v1680 = vunpack.c.l.b16 %v95
    %v1681 = vunpack.c.h.b16 %v95
    %v1682 = vunpack.c.l.b16 %v96
    %v1683 = vunpack.c.h.b16 %v96
    %v1684 = vunpack.c.l.b16 %v97
    %v1685 = vunpack.c.h.b16 %v97
    %v1686 = vunpack.c.l.b16 %v98
    %v1687 = vunpack.c.h.b16 %v98
    %v1688 = vunpack.c.l.b16 %v99
    %v1689 = vunpack.c.h.b16 %v99
    %v1690 = vunpack.c.l.b16 %v100
    %v1691 = vunpack.c.h.b16 %v100
    %v1692 = vunpack.c.l.b16 %v101
    %v1693 = vunpack.c.h.b16 %v101
    %v1694 = vunpack.c.l.b16 %v102
    %v1695 = vunpack.c.h.b16 %v102
    %v1696 = vunpack.c.l.b16 %v103
    %v1697 = vunpack.c.h.b16 %v103
    %v1698 = vunpack.c.l.b16 %v104
    %v1699 = vunpack.c.h.b16 %v104
    %v1700 = vunpack.c.l.b16 %v105
    %v1701 = vunpack.c.h.b16 %v105
    %v1702 = vunpack.c.l.b16 %v106
    %v1703 = vunpack.c.h.b16 %v106
    %v1704 = vunpack.c.l.b16 %v107
    %v1705 = vunpack.c.h.b16 %v107
    %v1706 = vunpack.c.l.b16 %v108
    %v1707 = vunpack.c.h.b16 %v108
    %v1708 = vunpack.c.l.b16 %v109
    %v1709 = vunpack.c.h.b16 %v109
    %v1710 = vunpack.c.l.b16 %v110
    %v1711 = vunpack.c.h.b16 %v110
    %v1712 = vunpack.c.l.b16 %v111
    %v1713 = vunpack.c.h.b16 %v111
    %v1714 = vunpack.c.l.b16 %v112
    %v1715 = vunpack.c.h.b16 %v112
    %v1716 = vunpack.c.l.b16 %v113
    %v1717 = vunpack.c.h.b16 %v113
    %v1718 = vunpack.c.l.b16 %v114
    %v1719 = vunpack.c.h.b16 %v114
    %v1720 = vunpack.c.l.b16 %v115
    %v1721 = vunpack.c.h.b16 %v115
    %v1722 = vunpack.c.l.b16 %v116
    %v1723 = vunpack.c.h.b16 %v116
    %v1724 = vunpack.c.l.b16 %v117
    %v1725 = vunpack.c.h.b16 %v117
    %v1726 = vunpack.c.l.b16 %v118
    %v1727 = vunpack.c.h.b16 %v118
    %v1728 = vunpack.c.l.b16 %v119
    %v1729 = vunpack.c.h.b16 %v119
    %v1730 = vunpack.c.l.b16 %v120
    %v1731 = vunpack.c.h.b16 %v120
    %v1732 = vunpack.c.l.b16 %v121
    %v1733 = vunpack.c.h.b16 %v121
    %v1734 = vunpack.c.l.b16 %v122
    %v1735 = vunpack.c.h.b16 %v122
    %v1736 = vunpack.c.l.b16 %v123
    %v1737 = vunpack.c.h.b16 %v123
    %v1738 = vunpack.c.l.b16 %v124
    %v1739 = vunpack.c.h.b16 %v124
    %v1740 = vunpack.c.l.b16 %v125
    %v1741 = vunpack.c.h.b16 %v125
    %v1742 = vunpack.c.l.b16 %v126
    %v1743 = vunpack.c.h.b16 %v126
    %v1744 = vunpack.c.l.b16 %v127
    %v1745 = vunpack.c.h.b16 %v127
    %v1746 = vunpack.c.l.b16 %v128
    %v1747 = vunpack.c.h.b16 %v128
    %v1748 = vunpack.c.l.b16 %v129
    %v1749 = vunpack.c.h.b16 %v129
    %v1750 = vunpack.c.l.b16 %v130
    %v1751 = vunpack.c.h.b16 %v130
    %v1752 = vunpack.c.l.b16 %v131
    %v1753 = vunpack.c.h.b16 %v131
    %v1754 = vunpack.c.l.b16 %v132
    %v1755 = vunpack.c.h.b16 %v132
    %v1756 = vunpack.c.l.b16 %v133
    %v1757 = vunpack.c.h.b16 %v133
    %v1758 = vunpack.c.l.b16 %v134
    %v1759 = vunpack.c.h.b16 %v134
    %v1760 = vunpack.c.l.b16 %v135
    %v1761 = vunpack.c.h.b16 %v135
    %v1762 = vunpack.c.l.b16 %v136
    %v1763 = vunpack.c.h.b16 %v136
    %v1764 = vunpack.c.l.b16 %v137
    %v1765 = vunpack.c.h.b16 %v137
    %v1766 = vunpack.c.l.b16 %v138
    %v1767 = vunpack.c.h.b16 %v138
    %v1768 = vunpack.c.l.b16 %v139
    %v1769 = vunpack.c.h.b16 %v139
    %v1770 = vunpack.c.l.b16 %v140
    %v1771 = vunpack.c.h.b16 %v140
    %v1772 = vunpack.c.l.b16 %v141
    %v1773 = vunpack.c.h.b16 %v141
    %v1774 = vunpack.c.l.b16 %v142
    %v1775 = vunpack.c.h.b16 %v142
    %v1776 = vunpack.c.l.b16 %v143
    %v1777 = vunpack.c.h.b16 %v143
    %v1778 = vunpack.c.l.b16 %v144
    %v1779 = vunpack.c.h.b16 %v144
    %v1780 = vunpack.c.l.b16 %v145
    %v1781 = vunpack.c.h.b16 %v145
    %v1782 = vunpack.c.l.b16 %v146
    %v1783 = vunpack.c.h.b16 %v146
    %v1784 = vunpack.c.l.b16 %v147
    %v1785 = vunpack.c.h.b16 %v147
    %v1786 = vunpack.c.l.b16 %v148
    %v1787 = vunpack.c.h.b16 %v148
    %v1788 = vunpack.c.l.b16 %v149
    %v1789 = vunpack.c.h.b16 %v149
    %v1790 = vunpack.c.l.b16 %v150
    %v1791 = vunpack.c.h.b16 %v150
    %v1792 = vunpack.c.l.b16 %v151
    %v1793 = vunpack.c.h.b16 %v151
    %v1794 = vunpack.c.l.b16 %v152
    %v1795 = vunpack.c.h.b16 %v152
    %v1796 = vunpack.c.l.b16 %v153
    %v1797 = vunpack.c.h.b16 %v153
    %v1798 = vunpack.c.l.b16 %v154
    %v1799 = vunpack.c.h.b16 %v154
    %v1800 = vunpack.c.l.b16 %v155
    %v1801 = vunpack.c.h.b16 %v155
    %v1802 = vunpack.c.l.b16 %v156
    %v1803 = vunpack.c.h.b16 %v156
    %v1804 = vunpack.c.l.b16 %v157
    %v1805 = vunpack.c.h.b16 %v157
    %v1806 = vunpack.c.l.b16 %v158
    %v1807 = vunpack.c.h.b16 %v158
    %v1808 = vunpack.c.l.b16 %v159
    %v1809 = vunpack.c.h.b16 %v159
    %v1810 = vunpack.c.l.b16 %v160
    %v1811 = vunpack.c.h.b16 %v160
    %v1812 = vunpack.c.l.b16 %v161
    %v1813 = vunpack.c.h.b16 %v161
    %v1814 = vunpack.c.l.b16 %v162
    %v1815 = vunpack.c.h.b16 %v162
    %v1816 = vunpack.c.l.b16 %v163
    %v1817 = vunpack.c.h.b16 %v163
    %v1818 = vunpack.c.l.b16 %v164
    %v1819 = vunpack.c.h.b16 %v164
    %v1820 = vunpack.c.l.b16 %v165
    %v1821 = vunpack.c.h.b16 %v165
    %v1822 = vunpack.c.l.b16 %v166
    %v1823 = vunpack.c.h.b16 %v166
    %v1824 = vunpack.c.l.b16 %v167
    %v1825 = vunpack.c.h.b16 %v167
    %v1826 = vunpack.c.l.b16 %v168
    %v1827 = vunpack.c.h.b16 %v168
    %v1828 = vunpack.c.l.b16 %v169
    %v1829 = vunpack.c.h.b16 %v169
    %v1830 = vunpack.c.l.b16 %v170
    %v1831 = vunpack.c.h.b16 %v170
    %v1832 = vunpack.c.l.b16 %v171
    %v1833 = vunpack.c.h.b16 %v171
    %v1834 = vunpack.c.l.b16 %v172
    %v1835 = vunpack.c.h.b16 %v172
    %v1836 = vunpack.c.l.b16 %v173
    %v1837 = vunpack.c.h.b16 %v173
    %v1838 = vunpack.c.l.b16 %v174
    %v1839 = vunpack.c.h.b16 %v174
    %v1840 = vunpack.c.l.b16 %v175
    %v1841 = vunpack.c.h.b16 %v175
    %v1842 = vunpack.c.l.b16 %v176
    %v1843 = vunpack.c.h.b16 %v176
    %v1844 = vunpack.c.l.b16 %v177
    %v1845 = vunpack.c.h.b16 %v177
    %v1846 = vunpack.c.l.b16 %v178
    %v1847 = vunpack.c.h.b16 %v178
    %v1848 = vunpack.c.l.b16 %v179
    %v1849 = vunpack.c.h.b16 %v179
    %v1850 = vunpack.c.l.b16 %v180
    %v1851 = vunpack.c.h.b16 %v180
    %v1852 = vunpack.c.l.b16 %v181
    %v1853 = vunpack.c.h.b16 %v181
    %v1854 = vunpack.c.l.b16 %v182
    %v1855 = vunpack.c.h.b16 %v182
    %v1856 = vunpack.c.l.b16 %v183
    %v1857 = vunpack.c.h.b16 %v183
    %v1858 = vunpack.c.l.b16 %v184
    %v1859 = vunpack.c.h.b16 %v184
    %v1860 = vunpack.c.l.b16 %v185
    %v1861 = vunpack.c.h.b16 %v185
    %v1862 = vunpack.c.l.b16 %v186
    %v1863 = vunpack.c.h.b16 %v186
    %v1864 = vunpack.c.l.b16 %v187
    %v1865 = vunpack.c.h.b16 %v187
    %v1866 = vunpack.c.l.b16 %v188
    %v1867 = vunpack.c.h.b16 %v188
    %v1868 = vunpack.c.l.b16 %v189
    %v1869 = vunpack.c.h.b16 %v189
    %v1870 = vunpack.c.l.b16 %v190
    %v1871 = vunpack.c.h.b16 %v190
    %v1872 = vunpack.c.l.b16 %v191
    %v1873 = vunpack.c.h.b16 %v191
    %v1874 = vunpack.c.l.b16 %v192
    %v1875 = vunpack.c.h.b16 %v192
    %v1876 = vunpack.c.l.b16 %v193
    %v1877 = vunpack.c.h.b16 %v193
    %v1878 = vunpack.c.l.b16 %v194
    %v1879 = vunpack.c.h.b16 %v194
    %v1880 = vunpack.c.l.b16 %v195
    %v1881 = vunpack.c.h.b16 %v195
    %v1882 = vunpack.c.l.b16 %v196
    %v1883 = vunpack.c.h.b16 %v196
    %v1884 = vunpack.c.l.b16 %v197
    %v1885 = vunpack.c.h.b16 %v197
    %v1886 = vunpack.c.l.b16 %v198
    %v1887 = vunpack.c.h.b16 %v198
    %v1888 = vunpack.c.l.b16 %v199
    %v1889 = vunpack.c.h.b16 %v199
    %v1890 = vunpack.c.l.b16 %v200
    %v1891 = vunpack.c.h.b16 %v200
    %v1892 = vunpack.c.l.b16 %v201
    %v1893 = vunpack.c.h.b16 %v201
    %v1894 = vunpack.c.l.b16 %v202
    %v1895 = vunpack.c.h.b16 %v202
    %v1896 = vunpack.c.l.b16 %v203
    %v1897 = vunpack.c.h.b16 %v203
    %v1898 = vunpack.c.l.b16 %v204
    %v1899 = vunpack.c.h.b16 %v204
    %v1900 = vunpack.c.l.b16 %v205
    %v1901 = vunpack.c.h.b16 %v205
    %v1902 = vunpack.c.l.b16 %v206
    %v1903 = vunpack.c.h.b16 %v206
    %v1904 = vunpack.c.l.b16 %v207
    %v1905 = vunpack.c.h.b16 %v207
    %v1906 = vunpack.c.l.b16 %v208
    %v1907 = vunpack.c.h.b16 %v208
    %v1908 = vunpack.c.l.b16 %v209
    %v1909 = vunpack.c.h.b16 %v209
    %v1910 = vunpack.c.l.b16 %v210
    %v1911 = vunpack.c.h.b16 %v210
    %v1912 = vunpack.c.l.b16 %v211
    %v1913 = vunpack.c.h.b16 %v211
    %v1914 = vunpack.c.l.b16 %v212
    %v1915 = vunpack.c.h.b16 %v212
    %v1916 = vunpack.c.l.b16 %v213
    %v1917 = vunpack.c.h.b16 %v213
    %v1918 = vunpack.c.l.b16 %v214
    %v1919 = vunpack.c.h.b16 %v214
    %v1920 = vunpack.c.l.b16 %v215
    %v1921 = vunpack.c.h.b16 %v215
    %v1922 = vunpack.c.l.b16 %v216
    %v1923 = vunpack.c.h.b16 %v216
    %v1924 = vunpack.c.l.b16 %v217
    %v1925 = vunpack.c.h.b16 %v217
    %v1926 = vunpack.c.l.b16 %v218
    %v1927 = vunpack.c.h.b16 %v218
    %v1928 = vunpack.c.l.b16 %v219
    %v1929 = vunpack.c.h.b16 %v219
    %v1930 = vunpack.c.l.b16 %v220
    %v1931 = vunpack.c.h.b16 %v220
    %v1932 = vunpack.c.l.b16 %v221
    %v1933 = vunpack.c.h.b16 %v221
    %v1934 = vunpack.c.l.b16 %v222
    %v1935 = vunpack.c.h.b16 %v222
    %v1936 = vunpack.c.l.b16 %v223
    %v1937 = vunpack.c.h.b16 %v223
    %v1938 = vunpack.c.l.b16 %v224
    %v1939 = vunpack.c.h.b16 %v224
    %v1940 = vunpack.c.l.b16 %v225
    %v1941 = vunpack.c.h.b16 %v225
    %v1942 = vunpack.c.l.b16 %v226
    %v1943 = vunpack.c.h.b16 %v226
    %v1944 = vunpack.c.l.b16 %v227
    %v1945 = vunpack.c.h.b16 %v227
    %v1946 = vunpack.c.l.b16 %v228
    %v1947 = vunpack.c.h.b16 %v228
    %v1948 = vunpack.c.l.b16 %v229
    %v1949 = vunpack.c.h.b16 %v229
    %v1950 = vunpack.c.l.b16 %v230
    %v1951 = vunpack.c.h.b16 %v230
    %v1952 = vunpack.c.l.b16 %v231
    %v1953 = vunpack.c.h.b16 %v231
    %v1954 = vunpack.c.l.b16 %v232
    %v1955 = vunpack.c.h.b16 %v232
    %v1956 = vunpack.c.l.b16 %v233
    %v1957 = vunpack.c.h.b16 %v233
    %v1958 = vunpack.c.l.b16 %v234
    %v1959 = vunpack.c.h.b16 %v234
    %v1960 = vunpack.c.l.b16 %v235
    %v1961 = vunpack.c.h.b16 %v235
    %v1962 = vunpack.c.l.b16 %v236
    %v1963 = vunpack.c.h.b16 %v236
    %v1964 = vunpack.c.l.b16 %v237
    %v1965 = vunpack.c.h.b16 %v237
    %v1966 = vunpack.c.l.b16 %v238
    %v1967 = vunpack.c.h.b16 %v238
    %v1968 = vunpack.c.l.b16 %v239
    %v1969 = vunpack.c.h.b16 %v239
    %v1970 = vunpack.c.l.b16 %v240
    %v1971 = vunpack.c.h.b16 %v240
    %v1972 = vunpack.c.l.b16 %v241
    %v1973 = vunpack.c.h.b16 %v241
    %v1974 = vunpack.c.l.b16 %v242
    %v1975 = vunpack.c.h.b16 %v242
    %v1976 = vunpack.c.l.b16 %v243
    %v1977 = vunpack.c.h.b16 %v243
    %v1978 = vunpack.c.l.b16 %v244
    %v1979 = vunpack.c.h.b16 %v244
    %v1980 = vunpack.c.l.b16 %v245
    %v1981 = vunpack.c.h.b16 %v245
    %v1982 = vunpack.c.l.b16 %v246
    %v1983 = vunpack.c.h.b16 %v246
    %v1984 = vunpack.c.l.b16 %v247
    %v1985 = vunpack.c.h.b16 %v247
    %v1986 = vunpack.c.l.b16 %v248
    %v1987 = vunpack.c.h.b16 %v248
    %v1988 = vunpack.c.l.b16 %v249
    %v1989 = vunpack.c.h.b16 %v249
    %v1990 = vunpack.c.l.b16 %v250
    %v1991 = vunpack.c.h.b16 %v250
    %v1992 = vunpack.c.l.b16 %v251
    %v1993 = vunpack.c.h.b16 %v251
    %v1994 = vunpack.c.l.b16 %v252
    %v1995 = vunpack.c.h.b16 %v252
    %v1996 = vunpack.c.l.b16 %v253
    %v1997 = vunpack.c.h.b16 %v253
    %v1998 = vunpack.c.l.b16 %v254
    %v1999 = vunpack.c.h.b16 %v254
    %v2000 = vunpack.c.l.b16 %v255
    %v2001 = vunpack.c.h.b16 %v255
    %v2002 = vunpack.c.l.b16 %v256
    %v2003 = vunpack.c.h.b16 %v256
    %v2004 = vunpack.c.l.b16 %v257
    %v2005 = vunpack.c.h.b16 %v257
    %v2006 = vunpack.c.l.b16 %v258
    %v2007 = vunpack.c.h.b16 %v258
    %v2008 = vunpack.c.l.b16 %v259
    %v2009 = vunpack.c.h.b16 %v259
    %v2010 = vunpack.c.l.b16 %v260
    %v2011 = vunpack.c.h.b16 %v260
    %v2012 = vunpack.c.l.b16 %v261
    %v2013 = vunpack.c.h.b16 %v261
    %v2014 = vunpack.c.l.b16 %v262
    %v2015 = vunpack.c.h.b16 %v262
    %v2016 = vunpack.c.l.b16 %v263
    %v2017 = vunpack.c.h.b16 %v263
    %v2018 = vunpack.c.l.b16 %v264
    %v2019 = vunpack.c.h.b16 %v264
    %v2020 = vunpack.c.l.b16 %v265
    %v2021 = vunpack.c.h.b16 %v265
    %v2022 = vunpack.c.l.b16 %v266
    %v2023 = vunpack.c.h.b16 %v266
    %v2024 = vunpack.c.l.b16 %v267
    %v2025 = vunpack.c.h.b16 %v267
    %v2026 = vunpack.c.l.b16 %v268
    %v2027 = vunpack.c.h.b16 %v268
    %v2028 = vunpack.c.l.b16 %v269
    %v2029 = vunpack.c.h.b16 %v269
    %v2030 = vunpack.c.l.b16 %v270
    %v2031 = vunpack.c.h.b16 %v270
    %v2032 = vunpack.c.l.b16 %v271
    %v2033 = vunpack.c.h.b16 %v271
    %v2034 = vunpack.c.l.b16 %v272
    %v2035 = vunpack.c.h.b16 %v272
    %v2036 = vunpack.c.l.b16 %v273
    %v2037 = vunpack.c.h.b16 %v273
    %v2038 = vunpack.c.l.b16 %v274
    %v2039 = vunpack.c.h.b16 %v274
    %v2040 = vunpack.c.l.b16 %v275
    %v2041 = vunpack.c.h.b16 %v275
    %v2042 = vunpack.c.l.b16 %v276
    %v2043 = vunpack.c.h.b16 %v276
    %v2044 = vunpack.c.l.b16 %v277
    %v2045 = vunpack.c.h.b16 %v277
    %v2046 = vunpack.c.l.b16 %v278
    %v2047 = vunpack.c.h.b16 %v278
    %v2048 = vunpack.c.l.b16 %v279
    %v2049 = vunpack.c.h.b16 %v279
    %v2050 = vunpack.c.l.b16 %v280
    %v2051 = vunpack.c.h.b16 %v280
    %v2052 = vunpack.c.l.b16 %v281
    %v2053 = vunpack.c.h.b16 %v281
    %v2054 = vunpack.c.l.b16 %v282
    %v2055 = vunpack.c.h.b16 %v282
    %v2056 = vunpack.c.l.b16 %v283
    %v2057 = vunpack.c.h.b16 %v283
    %v2058 = vunpack.c.l.b16 %v284
    %v2059 = vunpack.c.h.b16 %v284
    %v2060 = vunpack.c.l.b16 %v285
    %v2061 = vunpack.c.h.b16 %v285
    %v2062 = vunpack.c.l.b16 %v286
    %v2063 = vunpack.c.h.b16 %v286
    %v2064 = vunpack.c.l.b16 %v287
    %v2065 = vunpack.c.h.b16 %v287
    %v2066 = vunpack.c.l.b16 %v288
    %v2067 = vunpack.c.h.b16 %v288
    %v2068 = vunpack.c.l.b16 %v289
    %v2069 = vunpack.c.h.b16 %v289
    %v2070 = vunpack.c.l.b16 %v290
    %v2071 = vunpack.c.h.b16 %v290
    %v2072 = vunpack.c.l.b16 %v291
    %v2073 = vunpack.c.h.b16 %v291
    %v2074 = vunpack.c.l.b16 %v292
    %v2075 = vunpack.c.h.b16 %v292
    %v2076 = vunpack.c.l.b16 %v293
    %v2077 = vunpack.c.h.b16 %v293
    %v2078 = vunpack.c.l.b16 %v294
    %v2079 = vunpack.c.h.b16 %v294
    %v2080 = vunpack.c.l.b16 %v295
    %v2081 = vunpack.c.h.b16 %v295
    %v2082 = vunpack.c.l.b16 %v296
    %v2083 = vunpack.c.h.b16 %v296
    %v2084 = vunpack.c.l.b16 %v297
    %v2085 = vunpack.c.h.b16 %v297
    %v2086 = vunpack.c.l.b16 %v298
    %v2087 = vunpack.c.h.b16 %v298
    %v2088 = vunpack.c.l.b16 %v299
    %v2089 = vunpack.c.h.b16 %v299
    %v2090 = vunpack.c.l.b16 %v300
    %v2091 = vunpack.c.h.b16 %v300
    %v2092 = vunpack.c.l.b16 %v301
    %v2093 = vunpack.c.h.b16 %v301
    %v2094 = vunpack.c.l.b16 %v302
    %v2095 = vunpack.c.h.b16 %v302
    %v2096 = vunpack.c.l.b16 %v303
    %v2097 = vunpack.c.h.b16 %v303
    %v2098 = vunpack.c.l.b16 %v304
    %v2099 = vunpack.c.h.b16 %v304
    %v2100 = vunpack.c.l.b16 %v305
    %v2101 = vunpack.c.h.b16 %v305
    %v2102 = vunpack.c.l.b16 %v306
    %v2103 = vunpack.c.h.b16 %v306
    %v2104 = vunpack.c.l.b16 %v307
    %v2105 = vunpack.c.h.b16 %v307
    %v2106 = vunpack.c.l.b16 %v308
    %v2107 = vunpack.c.h.b16 %v308
    %v2108 = vunpack.c.l.b16 %v309
    %v2109 = vunpack.c.h.b16 %v309
    %v2110 = vunpack.c.l.b16 %v310
    %v2111 = vunpack.c.h.b16 %v310
    %v2112 = vunpack.c.l.b16 %v311
    %v2113 = vunpack.c.h.b16 %v311
    %v2114 = vunpack.c.l.b16 %v312
    %v2115 = vunpack.c.h.b16 %v312
    %v2116 = vunpack.c.l.b16 %v313
    %v2117 = vunpack.c.h.b16 %v313
    %v2118 = vunpack.c.l.b16 %v314
    %v2119 = vunpack.c.h.b16 %v314
    %v2120 = vunpack.c.l.b16 %v315
    %v2121 = vunpack.c.h.b16 %v315
    %v2122 = vunpack.c.l.b16 %v316
    %v2123 = vunpack.c.h.b16 %v316
    %v2124 = vunpack.c.l.b16 %v317
    %v2125 = vunpack.c.h.b16 %v317
    %v2126 = vunpack.c.l.b16 %v318
    %v2127 = vunpack.c.h.b16 %v318
    %v2128 = vunpack.c.l.b16 %v319
    %v2129 = vunpack.c.h.b16 %v319
    %v2130 = vunpack.c.l.b16 %v320
    %v2131 = vunpack.c.h.b16 %v320
    %v2132 = vpack.c.b16 %v1624, %v1620
    %v2133 = vpack.c.b16 %v1625, %v1621
    %v2134 = vpack.c.b16 %v1626, %v1622
    %v2135 = vpack.c.b16 %v1627, %v1623
    %v2136 = vpack.c.b16 %v1632, %v1628
    %v2137 = vpack.c.b16 %v1633, %v1629
    %v2138 = vpack.c.b16 %v1634, %v1630
    %v2139 = vpack.c.b16 %v1635, %v1631
    %v2140 = vpack.c.b16 %v1640, %v1636
    %v2141 = vpack.c.b16 %v1641, %v1637
    %v2142 = vpack.c.b16 %v1642, %v1638
    %v2143 = vpack.c.b16 %v1643, %v1639
    %v2144 = vpack.c.b16 %v1648, %v1644
    %v2145 = vpack.c.b16 %v1649, %v1645
    %v2146 = vpack.c.b16 %v1650, %v1646
    %v2147 = vpack.c.b16 %v1651, %v1647
    %v2148 = vpack.c.b16 %v1656, %v1652
    %v2149 = vpack.c.b16 %v1657, %v1653
    %v2150 = vpack.c.b16 %v1658, %v1654
    %v2151 = vpack.c.b16 %v1659, %v1655
    %v2152 = vpack.c.b16 %v1664, %v1660
    %v2153 = vpack.c.b16 %v1665, %v1661
    %v2154 = vpack.c.b16 %v1666, %v1662
    %v2155 = vpack.c.b16 %v1667, %v1663
    %v2156 = vpack.c.b16 %v1672, %v1668
    %v2157 = vpack.c.b16 %v1673, %v1669
    %v2158 = vpack.c.b16 %v1674, %v1670
    %v2159 = vpack.c.b16 %v1675, %v1671
    %v2160 = vpack.c.b16 %v1680, %v1676
    %v2161 = vpack.c.b16 %v1681, %v1677
    %v2162 = vpack.c.b16 %v1682, %v1678
    %v2163 = vpack.c.b16 %v1683, %v1679
    %v2164 = vpack.c.b16 %v1688, %v1684
    %v2165 = vpack.c.b16 %v1689, %v1685
    %v2166 = vpack.c.b16 %v1690, %v1686
    %v2167 = vpack.c.b16 %v1691, %v1687
    %v2168 = vpack.c.b16 %v1696, %v1692
    %v2169 = vpack.c.b16 %v1697, %v1693
    %v2170 = vpack.c.b16 %v1698, %v1694
    %v2171 = vpack.c.b16 %v1699, %v1695
    %v2172 = vpack.c.b16 %v1704, %v1700
    %v2173 = vpack.c.b16 %v1705, %v1701
    %v2174 = vpack.c.b16 %v1706, %v1702
    %v2175 = vpack.c.b16 %v1707, %v1703
    %v2176 = vpack.c.b16 %v1712, %v1708
    %v2177 = vpack.c.b16 %v1713, %v1709
    %v2178 = vpack.c.b16 %v1714, %v1710
    %v2179 = vpack.c.b16 %v1715, %v1711
    %v2180 = vpack.c.b16 %v1720, %v1716
    %v2181 = vpack.c.b16 %v1721, %v1717
    %v2182 = vpack.c.b16 %v1722, %v1718
    %v2183 = vpack.c.b16 %v1723, %v1719
    %v2184 = vpack.c.b16 %v1728, %v1724
    %v2185 = vpack.c.b16 %v1729, %v1725
    %v2186 = vpack.c.b16 %v1730, %v1726
    %v2187 = vpack.c.b16 %v1731, %v1727
    %v2188 = vpack.c.b16 %v1736, %v1732
    %v2189 = vpack.c.b16 %v1737, %v1733
    %v2190 = vpack.c.b16 %v1738, %v1734
    %v2191 = vpack.c.b16 %v1739, %v1735
    %v2192 = vpack.c.b16 %v1744, %v1740
    %v2193 = vpack.c.b16 %v1745, %v1741
    %v2194 = vpack.c.b16 %v1746, %v1742
    %v2195 = vpack.c.b16 %v1747, %v1743
    %v2196 = vpack.c.b16 %v1752, %v1748
    %v2197 = vpack.c.b16 %v1753, %v1749
    %v2198 = vpack.c.b16 %v1754, %v1750
    %v2199 = vpack.c.b16 %v1755, %v1751
    %v2200 = vpack.c.b16 %v1760, %v1756
    %v2201 = vpack.c.b16 %v1761, %v1757
    %v2202 = vpack.c.b16 %v1762, %v1758
    %v2203 = vpack.c.b16 %v1763, %v1759
    %v2204 = vpack.c.b16 %v1768, %v1764
    %v2205 = vpack.c.b16 %v1769, %v1765
    %v2206 = vpack.c.b16 %v1770, %v1766
    %v2207 = vpack.c.b16 %v1771, %v1767
    %v2208 = vpack.c.b16 %v1776, %v1772
    %v2209 = vpack.c.b16 %v1777, %v1773
    %v2210 = vpack.c.b16 %v1778, %v1774
    %v2211 = vpack.c.b16 %v1779, %v1775
    %v2212 = vpack.c.b16 %v1784, %v1780
    %v2213 = vpack.c.b16 %v1785, %v1781
    %v2214 = vpack.c.b16 %v1786, %v1782
    %v2215 = vpack.c.b16 %v1787, %v1783
    %v2216 = vpack.c.b16 %v1792, %v1788
    %v2217 = vpack.c.b16 %v1793, %v1789
    %v2218 = vpack.c.b16 %v1794, %v1790
    %v2219 = vpack.c.b16 %v1795, %v1791
    %v2220 = vpack.c.b16 %v1800, %v1796
    %v2221 = vpack.c.b16 %v1801, %v1797
    %v2222 = vpack.c.b16 %v1802, %v1798
    %v2223 = vpack.c.b16 %v1803, %v1799
    %v2224 = vpack.c.b16 %v1808, %v1804
    %v2225 = vpack.c.b16 %v1809, %v1805
    %v2226 = vpack.c.b16 %v1810, %v1806
    %v2227 = vpack.c.b16 %v1811, %v1807
    %v2228 = vpack.c.b16 %v1816, %v1812
    %v2229 = vpack.c.b16 %v1817, %v1813
    %v2230 = vpack.c.b16 %v1818, %v1814
    %v2231 = vpack.c.b16 %v1819, %v1815
    %v2232 = vpack.c.b16 %v1824, %v1820
    %v2233 = vpack.c.b16 %v1825, %v1821
    %v2234 = vpack.c.b16 %v1826, %v1822
    %v2235 = vpack.c.b16 %v1827, %v1823
    %v2236 = vpack.c.b16 %v1832, %v1828
    %v2237 = vpack.c.b16 %v1833, %v1829
    %v2238 = vpack.c.b16 %v1834, %v1830
    %v2239 = vpack.c.b16 %v1835, %v1831
    %v2240 = vpack.c.b16 %v1840, %v1836
    %v2241 = vpack.c.b16 %v1841, %v1837
    %v2242 = vpack.c.b16 %v1842, %v1838
    %v2243 = vpack.c.b16 %v1843, %v1839
    %v2244 = vpack.c.b16 %v1848, %v1844
    %v2245 = vpack.c.b16 %v1849, %v1845
    %v2246 = vpack.c.b16 %v1850, %v1846
    %v2247 = vpack.c.b16 %v1851, %v1847
    %v2248 = vpack.c.b16 %v1856, %v1852
    %v2249 = vpack.c.b16 %v1857, %v1853
    %v2250 = vpack.c.b16 %v1858, %v1854
    %v2251 = vpack.c.b16 %v1859, %v1855
    %v2252 = vpack.c.b16 %v1864, %v1860
    %v2253 = vpack.c.b16 %v1865, %v1861
    %v2254 = vpack.c.b16 %v1866, %v1862
    %v2255 = vpack.c.b16 %v1867, %v1863
    %v2256 = vpack.c.b16 %v1872, %v1868
    %v2257 = vpack.c.b16 %v1873, %v1869
    %v2258 = vpack.c.b16 %v1874, %v1870
    %v2259 = vpack.c.b16 %v1875, %v1871
    %v2260 = vpack.c.b16 %v1880, %v1876
    %v2261 = vpack.c.b16 %v1881, %v1877
    %v2262 = vpack.c.b16 %v1882, %v1878
    %v2263 = vpack.c.b16 %v1883, %v1879
    %v2264 = vpack.c.b16 %v1888, %v1884
    %v2265 = vpack.c.b16 %v1889, %v1885
    %v2266 = vpack.c.b16 %v1890, %v1886
    %v2267 = vpack.c.b16 %v1891, %v1887
    %v2268 = vpack.c.b16 %v1896, %v1892
    %v2269 = vpack.c.b16 %v1897, %v1893
    %v2270 = vpack.c.b16 %v1898, %v1894
    %v2271 = vpack.c.b16 %v1899, %v1895
    %v2272 = vpack.c.b16 %v1904, %v1900
    %v2273 = vpack.c.b16 %v1905, %v1901
    %v2274 = vpack.c.b16 %v1906, %v1902
    %v2275 = vpack.c.b16 %v1907, %v1903
    %v2276 = vpack.c.b16 %v1912, %v1908
    %v2277 = vpack.c.b16 %v1913, %v1909
    %v2278 = vpack.c.b16 %v1914, %v1910
    %v2279 = vpack.c.b16 %v1915, %v1911
    %v2280 = vpack.c.b16 %v1920, %v1916
    %v2281 = vpack.c.b16 %v1921, %v1917
    %v2282 = vpack.c.b16 %v1922, %v1918
    %v2283 = vpack.c.b16 %v1923, %v1919
    %v2284 = vpack.c.b16 %v1928, %v1924
    %v2285 = vpack.c.b16 %v1929, %v1925
    %v2286 = vpack.c.b16 %v1930, %v1926
    %v2287 = vpack.c.b16 %v1931, %v1927
    %v2288 = vpack.c.b16 %v1936, %v1932
    %v2289 = vpack.c.b16 %v1937, %v1933
    %v2290 = vpack.c.b16 %v1938, %v1934
    %v2291 = vpack.c.b16 %v1939, %v1935
    %v2292 = vpack.c.b16 %v1944, %v1940
    %v2293 = vpack.c.b16 %v1945, %v1941
    %v2294 = vpack.c.b16 %v1946, %v1942
    %v2295 = vpack.c.b16 %v1947, %v1943
    %v2296 = vpack.c.b16 %v1952, %v1948
    %v2297 = vpack.c.b16 %v1953, %v1949
    %v2298 = vpack.c.b16 %v1954, %v1950
    %v2299 = vpack.c.b16 %v1955, %v1951
    %v2300 = vpack.c.b16 %v1960, %v1956
    %v2301 = vpack.c.b16 %v1961, %v1957
    %v2302 = vpack.c.b16 %v1962, %v1958
    %v2303 = vpack.c.b16 %v1963, %v1959
    %v2304 = vpack.c.b16 %v1968, %v1964
    %v2305 = vpack.c.b16 %v1969, %v1965
    %v2306 = vpack.c.b16 %v1970, %v1966
    %v2307 = vpack.c.b16 %v1971, %v1967
    %v2308 = vpack.c.b16 %v1976, %v1972
    %v2309 = vpack.c.b16 %v1977, %v1973
    %v2310 = vpack.c.b16 %v1978, %v1974
    %v2311 = vpack.c.b16 %v1979, %v1975
    %v2312 = vpack.c.b16 %v1984, %v1980
    %v2313 = vpack.c.b16 %v1985, %v1981
    %v2314 = vpack.c.b16 %v1986, %v1982
    %v2315 = vpack.c.b16 %v1987, %v1983
    %v2316 = vpack.c.b16 %v1992, %v1988
    %v2317 = vpack.c.b16 %v1993, %v1989
    %v2318 = vpack.c.b16 %v1994, %v1990
    %v2319 = vpack.c.b16 %v1995, %v1991
    %v2320 = vpack.c.b16 %v2000, %v1996
    %v2321 = vpack.c.b16 %v2001, %v1997
    %v2322 = vpack.c.b16 %v2002, %v1998
    %v2323 = vpack.c.b16 %v2003, %v1999
    %v2324 = vpack.c.b16 %v2008, %v2004
    %v2325 = vpack.c.b16 %v2009, %v2005
    %v2326 = vpack.c.b16 %v2010, %v2006
    %v2327 = vpack.c.b16 %v2011, %v2007
    %v2328 = vpack.c.b16 %v2016, %v2012
    %v2329 = vpack.c.b16 %v2017, %v2013
    %v2330 = vpack.c.b16 %v2018, %v2014
    %v2331 = vpack.c.b16 %v2019, %v2015
    %v2332 = vpack.c.b16 %v2024, %v2020
    %v2333 = vpack.c.b16 %v2025, %v2021
    %v2334 = vpack.c.b16 %v2026, %v2022
    %v2335 = vpack.c.b16 %v2027, %v2023
    %v2336 = vpack.c.b16 %v2032, %v2028
    %v2337 = vpack.c.b16 %v2033, %v2029
    %v2338 = vpack.c.b16 %v2034, %v2030
    %v2339 = vpack.c.b16 %v2035, %v2031
    %v2340 = vpack.c.b16 %v2040, %v2036
    %v2341 = vpack.c.b16 %v2041, %v2037
    %v2342 = vpack.c.b16 %v2042, %v2038
    %v2343 = vpack.c.b16 %v2043, %v2039
    %v2344 = vpack.c.b16 %v2048, %v2044
    %v2345 = vpack.c.b16 %v2049, %v2045
    %v2346 = vpack.c.b16 %v2050, %v2046
    %v2347 = vpack.c.b16 %v2051, %v2047
    %v2348 = vpack.c.b16 %v2056, %v2052
    %v2349 = vpack.c.b16 %v2057, %v2053
    %v2350 = vpack.c.b16 %v2058, %v2054
    %v2351 = vpack.c.b16 %v2059, %v2055
    %v2352 = vpack.c.b16 %v2064, %v2060
    %v2353 = vpack.c.b16 %v2065, %v2061
    %v2354 = vpack.c.b16 %v2066, %v2062
    %v2355 = vpack.c.b16 %v2067, %v2063
    %v2356 = vpack.c.b16 %v2072, %v2068
    %v2357 = vpack.c.b16 %v2073, %v2069
    %v2358 = vpack.c.b16 %v2074, %v2070
    %v2359 = vpack.c.b16 %v2075, %v2071
    %v2360 = vpack.c.b16 %v2080, %v2076
    %v2361 = vpack.c.b16 %v2081, %v2077
    %v2362 = vpack.c.b16 %v2082, %v2078
    %v2363 = vpack.c.b16 %v2083, %v2079
    %v2364 = vpack.c.b16 %v2088, %v2084
    %v2365 = vpack.c.b16 %v2089, %v2085
    %v2366 = vpack.c.b16 %v2090, %v2086
    %v2367 = vpack.c.b16 %v2091, %v2087
    %v2368 = vpack.c.b16 %v2096, %v2092
    %v2369 = vpack.c.b16 %v2097, %v2093
    %v2370 = vpack.c.b16 %v2098, %v2094
    %v2371 = vpack.c.b16 %v2099, %v2095
    %v2372 = vpack.c.b16 %v2104, %v2100
    %v2373 = vpack.c.b16 %v2105, %v2101
    %v2374 = vpack.c.b16 %v2106, %v2102
    %v2375 = vpack.c.b16 %v2107, %v2103
    %v2376 = vpack.c.b16 %v2112, %v2108
    %v2377 = vpack.c.b16 %v2113, %v2109
    %v2378 = vpack.c.b16 %v2114, %v2110
    %v2379 = vpack.c.b16 %v2115, %v2111
    %v2380 = vpack.c.b16 %v2120, %v2116
    %v2381 = vpack.c.b16 %v2121, %v2117
    %v2382 = vpack.c.b16 %v2122, %v2118
    %v2383 = vpack.c.b16 %v2123, %v2119
    %v2384 = vpack.c.b16 %v2128, %v2124
    %v2385 = vpack.c.b16 %v2129, %v2125
    %v2386 = vpack.c.b16 %v2130, %v2126
    %v2387 = vpack.c.b16 %v2131, %v2127
    %2644 = vmatprep.subr.bf16.mxu0 %v2133
    %2645 = vmatpush1.bf16.msra.mxu0 %v2132
    %2646 = vmatprep.subr.bf16.mxu0 %v2137
    %2647 = vmatpush1.bf16.msra.mxu0 %v2136
    %2648 = vmatprep.subr.bf16.mxu0 %v2141
    %2649 = vmatpush1.bf16.msra.mxu0 %v2140
    %2650 = vmatprep.subr.bf16.mxu0 %v2145
    %2651 = vmatpush1.bf16.msra.mxu0 %v2144
    %2652 = vmatprep.subr.bf16.mxu0 %v2149
    %2653 = vmatpush1.bf16.msra.mxu0 %v2148
    %2654 = vmatprep.subr.bf16.mxu0 %v2153
    %2655 = vmatpush1.bf16.msra.mxu0 %v2152
    %2656 = vmatprep.subr.bf16.mxu0 %v2157
    %2657 = vmatpush1.bf16.msra.mxu0 %v2156
    %2658 = vmatprep.subr.bf16.mxu0 %v2161
    %2659 = vmatpush1.bf16.msra.mxu0 %v2160
    %2660 = vmatprep.subr.bf16.mxu0 %v2165
    %2661 = vmatpush1.bf16.msra.mxu0 %v2164
    %2662 = vmatprep.subr.bf16.mxu0 %v2169
    %2663 = vmatpush1.bf16.msra.mxu0 %v2168
    %2664 = vmatprep.subr.bf16.mxu0 %v2173
    %2665 = vmatpush1.bf16.msra.mxu0 %v2172
    %2666 = vmatprep.subr.bf16.mxu0 %v2177
    %2667 = vmatpush1.bf16.msra.mxu0 %v2176
    %2668 = vmatprep.subr.bf16.mxu0 %v2181
    %2669 = vmatpush1.bf16.msra.mxu0 %v2180
    %2670 = vmatprep.subr.bf16.mxu0 %v2185
    %2671 = vmatpush1.bf16.msra.mxu0 %v2184
    %2672 = vmatprep.subr.bf16.mxu0 %v2189
    %2673 = vmatpush1.bf16.msra.mxu0 %v2188
    %2674 = vmatprep.subr.bf16.mxu0 %v2193
    %2675 = vmatpush1.bf16.msra.mxu0 %v2192
    %2676 = vmatprep.mubr.bf16.mxu0 %v462
    %2677 = vmatmul.mubr.bf16.gmra.mrb[0].mxu0 %v461
    %v2678 = vpop.f32.mrb[0].mxu0
    %v2679 = vadd.f32 %v1336, %v2678
    %v2680 = vpop.f32.mrb[0].mxu0
    %v2681 = vadd.f32 %v1337, %v2680
    %v2682 = vpop.f32.mrb[0].mxu0
    %v2683 = vadd.f32 %v1340, %v2682
    %v2684 = vpop.f32.mrb[0].mxu0
    %v2685 = vadd.f32 %v1341, %v2684
    %2686 = vdwg.mxu0
    %2687 = vmatprep.subr.bf16.mxu0 %v2197
    %2688 = vmatpush1.bf16.msra.mxu0 %v2196
    %2689 = vmatprep.subr.bf16.mxu0 %v2201
    %2690 = vmatpush1.bf16.msra.mxu0 %v2200
    %2691 = vmatprep.subr.bf16.mxu0 %v2205
    %2692 = vmatpush1.bf16.msra.mxu0 %v2204
    %2693 = vmatprep.subr.bf16.mxu0 %v2209
    %2694 = vmatpush1.bf16.msra.mxu0 %v2208
    %2695 = vmatprep.subr.bf16.mxu0 %v2213
    %2696 = vmatpush1.bf16.msra.mxu0 %v2212
    %2697 = vmatprep.subr.bf16.mxu0 %v2217
    %2698 = vmatpush1.bf16.msra.mxu0 %v2216
    %2699 = vmatprep.subr.bf16.mxu0 %v2221
    %2700 = vmatpush1.bf16.msra.mxu0 %v2220
    %2701 = vmatprep.subr.bf16.mxu0 %v2225
    %2702 = vmatpush1.bf16.msra.mxu0 %v2224
    %2703 = vmatprep.subr.bf16.mxu0 %v2229
    %2704 = vmatpush1.bf16.msra.mxu0 %v2228
    %2705 = vmatprep.subr.bf16.mxu0 %v2233
    %2706 = vmatpush1.bf16.msra.mxu0 %v2232
    %2707 = vmatprep.subr.bf16.mxu0 %v2237
    %2708 = vmatpush1.bf16.msra.mxu0 %v2236
    %2709 = vmatprep.subr.bf16.mxu0 %v2241
    %2710 = vmatpush1.bf16.msra.mxu0 %v2240
    %2711 = vmatprep.subr.bf16.mxu0 %v2245
    %2712 = vmatpush1.bf16.msra.mxu0 %v2244
    %2713 = vmatprep.subr.bf16.mxu0 %v2249
    %2714 = vmatpush1.bf16.msra.mxu0 %v2248
    %2715 = vmatprep.subr.bf16.mxu0 %v2253
    %2716 = vmatpush1.bf16.msra.mxu0 %v2252
    %2717 = vmatprep.subr.bf16.mxu0 %v2257
    %2718 = vmatpush1.bf16.msra.mxu0 %v2256
    %2719 = vmatprep.mubr.bf16.mxu0 %v464
    %2720 = vmatmul.mubr.bf16.gmra.mrb[0].mxu0 %v463
    %v2721 = vpop.f32.mrb[0].mxu0
    %v2722 = vadd.f32 %v2679, %v2721
    %v2723 = vpop.f32.mrb[0].mxu0
    %v2724 = vadd.f32 %v2681, %v2723
    %v2725 = vpop.f32.mrb[0].mxu0
    %v2726 = vadd.f32 %v2683, %v2725
    %v2727 = vpop.f32.mrb[0].mxu0
    %v2728 = vadd.f32 %v2685, %v2727
    %2729 = vdwg.mxu0
    %2730 = vmatprep.subr.bf16.mxu0 %v2261
    %2731 = vmatpush1.bf16.msra.mxu0 %v2260
    %2732 = vmatprep.subr.bf16.mxu0 %v2265
    %2733 = vmatpush1.bf16.msra.mxu0 %v2264
    %2734 = vmatprep.subr.bf16.mxu0 %v2269
    %2735 = vmatpush1.bf16.msra.mxu0 %v2268
    %2736 = vmatprep.subr.bf16.mxu0 %v2273
    %2737 = vmatpush1.bf16.msra.mxu0 %v2272
    %2738 = vmatprep.subr.bf16.mxu0 %v2277
    %2739 = vmatpush1.bf16.msra.mxu0 %v2276
    %2740 = vmatprep.subr.bf16.mxu0 %v2281
    %2741 = vmatpush1.bf16.msra.mxu0 %v2280
    %2742 = vmatprep.subr.bf16.mxu0 %v2285
    %2743 = vmatpush1.bf16.msra.mxu0 %v2284
    %2744 = vmatprep.subr.bf16.mxu0 %v2289
    %2745 = vmatpush1.bf16.msra.mxu0 %v2288
    %2746 = vmatprep.subr.bf16.mxu0 %v2293
    %2747 = vmatpush1.bf16.msra.mxu0 %v2292
    %2748 = vmatprep.subr.bf16.mxu0 %v2297
    %2749 = vmatpush1.bf16.msra.mxu0 %v2296
    %2750 = vmatprep.subr.bf16.mxu0 %v2301
    %2751 = vmatpush1.bf16.msra.mxu0 %v2300
    %2752 = vmatprep.subr.bf16.mxu0 %v2305
    %2753 = vmatpush1.bf16.msra.mxu0 %v2304
    %2754 = vmatprep.subr.bf16.mxu0 %v2309
    %2755 = vmatpush1.bf16.msra.mxu0 %v2308
    %2756 = vmatprep.subr.bf16.mxu0 %v2313
    %2757 = vmatpush1.bf16.msra.mxu0 %v2312
    %2758 = vmatprep.subr.bf16.mxu0 %v2317
    %2759 = vmatpush1.bf16.msra.mxu0 %v2316
    %2760 = vmatprep.subr.bf16.mxu0 %v2321
    %2761 = vmatpush1.bf16.msra.mxu0 %v2320
    %2762 = vmatprep.mubr.bf16.mxu0 %v1357
    %2763 = vmatmul.mubr.bf16.gmra.mrb[0].mxu0 %v1356
    %v2764 = vpop.f32.mrb[0].mxu0
    %v2765 = vadd.f32 %v2722, %v2764
    %v2766 = vpop.f32.mrb[0].mxu0
    %v2767 = vadd.f32 %v2724, %v2766
    %v2768 = vpop.f32.mrb[0].mxu0
    %v2769 = vadd.f32 %v2726, %v2768
    %v2770 = vpop.f32.mrb[0].mxu0
    %v2771 = vadd.f32 %v2728, %v2770
    %2772 = vdwg.mxu0
    %2773 = vmatprep.subr.bf16.mxu0 %v2325
    %2774 = vmatpush1.bf16.msra.mxu0 %v2324
    %2775 = vmatprep.subr.bf16.mxu0 %v2329
    %2776 = vmatpush1.bf16.msra.mxu0 %v2328
    %2777 = vmatprep.subr.bf16.mxu0 %v2333
    %2778 = vmatpush1.bf16.msra.mxu0 %v2332
    %2779 = vmatprep.subr.bf16.mxu0 %v2337
    %2780 = vmatpush1.bf16.msra.mxu0 %v2336
    %2781 = vmatprep.subr.bf16.mxu0 %v2341
    %2782 = vmatpush1.bf16.msra.mxu0 %v2340
    %2783 = vmatprep.subr.bf16.mxu0 %v2345
    %2784 = vmatpush1.bf16.msra.mxu0 %v2344
    %2785 = vmatprep.subr.bf16.mxu0 %v2349
    %2786 = vmatpush1.bf16.msra.mxu0 %v2348
    %2787 = vmatprep.subr.bf16.mxu0 %v2353
    %2788 = vmatpush1.bf16.msra.mxu0 %v2352
    %2789 = vmatprep.subr.bf16.mxu0 %v2357
    %2790 = vmatpush1.bf16.msra.mxu0 %v2356
    %2791 = vmatprep.subr.bf16.mxu0 %v2361
    %2792 = vmatpush1.bf16.msra.mxu0 %v2360
    %2793 = vmatprep.subr.bf16.mxu0 %v2365
    %2794 = vmatpush1.bf16.msra.mxu0 %v2364
    %2795 = vmatprep.subr.bf16.mxu0 %v2369
    %2796 = vmatpush1.bf16.msra.mxu0 %v2368
    %2797 = vmatprep.subr.bf16.mxu0 %v2373
    %2798 = vmatpush1.bf16.msra.mxu0 %v2372
    %2799 = vmatprep.subr.bf16.mxu0 %v2377
    %2800 = vmatpush1.bf16.msra.mxu0 %v2376
    %2801 = vmatprep.subr.bf16.mxu0 %v2381
    %2802 = vmatpush1.bf16.msra.mxu0 %v2380
    %2803 = vmatprep.subr.bf16.mxu0 %v2385
    %2804 = vmatpush1.bf16.msra.mxu0 %v2384
    %2805 = vmatprep.mubr.bf16.mxu0 %v1359
    %2806 = vmatmul.mubr.bf16.gmra.mrb[0].mxu0 %v1358
    %v2807 = vpop.f32.mrb[0].mxu0
    %v2808 = vadd.f32 %v2765, %v2807
    %v2809 = vpop.f32.mrb[0].mxu0
    %v2810 = vadd.f32 %v2767, %v2809
    %v2811 = vpop.f32.mrb[0].mxu0
    %v2812 = vadd.f32 %v2769, %v2811
    %v2813 = vpop.f32.mrb[0].mxu0
    %v2814 = vadd.f32 %v2771, %v2813
    %2815 = vdwg.mxu0
    %2816 = vmatprep.subr.bf16.mxu0 %v2135
    %2817 = vmatpush1.bf16.msra.mxu0 %v2134
    %2818 = vmatprep.subr.bf16.mxu0 %v2139
    %2819 = vmatpush1.bf16.msra.mxu0 %v2138
    %2820 = vmatprep.subr.bf16.mxu0 %v2143
    %2821 = vmatpush1.bf16.msra.mxu0 %v2142
    %2822 = vmatprep.subr.bf16.mxu0 %v2147
    %2823 = vmatpush1.bf16.msra.mxu0 %v2146
    %2824 = vmatprep.subr.bf16.mxu0 %v2151
    %2825 = vmatpush1.bf16.msra.mxu0 %v2150
    %2826 = vmatprep.subr.bf16.mxu0 %v2155
    %2827 = vmatpush1.bf16.msra.mxu0 %v2154
    %2828 = vmatprep.subr.bf16.mxu0 %v2159
    %2829 = vmatpush1.bf16.msra.mxu0 %v2158
    %2830 = vmatprep.subr.bf16.mxu0 %v2163
    %2831 = vmatpush1.bf16.msra.mxu0 %v2162
    %2832 = vmatprep.subr.bf16.mxu0 %v2167
    %2833 = vmatpush1.bf16.msra.mxu0 %v2166
    %2834 = vmatprep.subr.bf16.mxu0 %v2171
    %2835 = vmatpush1.bf16.msra.mxu0 %v2170
    %2836 = vmatprep.subr.bf16.mxu0 %v2175
    %2837 = vmatpush1.bf16.msra.mxu0 %v2174
    %2838 = vmatprep.subr.bf16.mxu0 %v2179
    %2839 = vmatpush1.bf16.msra.mxu0 %v2178
    %2840 = vmatprep.subr.bf16.mxu0 %v2183
    %2841 = vmatpush1.bf16.msra.mxu0 %v2182
    %2842 = vmatprep.subr.bf16.mxu0 %v2187
    %2843 = vmatpush1.bf16.msra.mxu0 %v2186
    %2844 = vmatprep.subr.bf16.mxu0 %v2191
    %2845 = vmatpush1.bf16.msra.mxu0 %v2190
    %2846 = vmatprep.subr.bf16.mxu0 %v2195
    %2847 = vmatpush1.bf16.msra.mxu0 %v2194
    %2848 = vmatprep.mubr.bf16.mxu0 %v462
    %2849 = vmatmul.mubr.bf16.gmra.mrb[0].mxu0 %v461
    %v2850 = vpop.f32.mrb[0].mxu0
    %v2851 = vadd.f32 %v1338, %v2850
    %v2852 = vpop.f32.mrb[0].mxu0
    %v2853 = vadd.f32 %v1339, %v2852
    %v2854 = vpop.f32.mrb[0].mxu0
    %v2855 = vadd.f32 %v1342, %v2854
    %v2856 = vpop.f32.mrb[0].mxu0
    %v2857 = vadd.f32 %v1343, %v2856
    %2858 = vdwg.mxu0
    %2859 = vmatprep.subr.bf16.mxu0 %v2199
    %2860 = vmatpush1.bf16.msra.mxu0 %v2198
    %2861 = vmatprep.subr.bf16.mxu0 %v2203
    %2862 = vmatpush1.bf16.msra.mxu0 %v2202
    %2863 = vmatprep.subr.bf16.mxu0 %v2207
    %2864 = vmatpush1.bf16.msra.mxu0 %v2206
    %2865 = vmatprep.subr.bf16.mxu0 %v2211
    %2866 = vmatpush1.bf16.msra.mxu0 %v2210
    %2867 = vmatprep.subr.bf16.mxu0 %v2215
    %2868 = vmatpush1.bf16.msra.mxu0 %v2214
    %2869 = vmatprep.subr.bf16.mxu0 %v2219
    %2870 = vmatpush1.bf16.msra.mxu0 %v2218
    %2871 = vmatprep.subr.bf16.mxu0 %v2223
    %2872 = vmatpush1.bf16.msra.mxu0 %v2222
    %2873 = vmatprep.subr.bf16.mxu0 %v2227
    %2874 = vmatpush1.bf16.msra.mxu0 %v2226
    %2875 = vmatprep.subr.bf16.mxu0 %v2231
    %2876 = vmatpush1.bf16.msra.mxu0 %v2230
    %2877 = vmatprep.subr.bf16.mxu0 %v2235
    %2878 = vmatpush1.bf16.msra.mxu0 %v2234
    %2879 = vmatprep.subr.bf16.mxu0 %v2239
    %2880 = vmatpush1.bf16.msra.mxu0 %v2238
    %2881 = vmatprep.subr.bf16.mxu0 %v2243
    %2882 = vmatpush1.bf16.msra.mxu0 %v2242
    %2883 = vmatprep.subr.bf16.mxu0 %v2247
    %2884 = vmatpush1.bf16.msra.mxu0 %v2246
    %2885 = vmatprep.subr.bf16.mxu0 %v2251
    %2886 = vmatpush1.bf16.msra.mxu0 %v2250
    %2887 = vmatprep.subr.bf16.mxu0 %v2255
    %2888 = vmatpush1.bf16.msra.mxu0 %v2254
    %2889 = vmatprep.subr.bf16.mxu0 %v2259
    %2890 = vmatpush1.bf16.msra.mxu0 %v2258
    %2891 = vmatprep.mubr.bf16.mxu0 %v464
    %2892 = vmatmul.mubr.bf16.gmra.mrb[0].mxu0 %v463
    %v2893 = vpop.f32.mrb[0].mxu0
    %v2894 = vadd.f32 %v2851, %v2893
    %v2895 = vpop.f32.mrb[0].mxu0
    %v2896 = vadd.f32 %v2853, %v2895
    %v2897 = vpop.f32.mrb[0].mxu0
    %v2898 = vadd.f32 %v2855, %v2897
    %v2899 = vpop.f32.mrb[0].mxu0
    %v2900 = vadd.f32 %v2857, %v2899
    %2901 = vdwg.mxu0
    %2902 = vmatprep.subr.bf16.mxu0 %v2263
    %2903 = vmatpush1.bf16.msra.mxu0 %v2262
    %2904 = vmatprep.subr.bf16.mxu0 %v2267
    %2905 = vmatpush1.bf16.msra.mxu0 %v2266
    %2906 = vmatprep.subr.bf16.mxu0 %v2271
    %2907 = vmatpush1.bf16.msra.mxu0 %v2270
    %2908 = vmatprep.subr.bf16.mxu0 %v2275
    %2909 = vmatpush1.bf16.msra.mxu0 %v2274
    %2910 = vmatprep.subr.bf16.mxu0 %v2279
    %2911 = vmatpush1.bf16.msra.mxu0 %v2278
    %2912 = vmatprep.subr.bf16.mxu0 %v2283
    %2913 = vmatpush1.bf16.msra.mxu0 %v2282
    %2914 = vmatprep.subr.bf16.mxu0 %v2287
    %2915 = vmatpush1.bf16.msra.mxu0 %v2286
    %2916 = vmatprep.subr.bf16.mxu0 %v2291
    %2917 = vmatpush1.bf16.msra.mxu0 %v2290
    %2918 = vmatprep.subr.bf16.mxu0 %v2295
    %2919 = vmatpush1.bf16.msra.mxu0 %v2294
    %2920 = vmatprep.subr.bf16.mxu0 %v2299
    %2921 = vmatpush1.bf16.msra.mxu0 %v2298
    %2922 = vmatprep.subr.bf16.mxu0 %v2303
    %2923 = vmatpush1.bf16.msra.mxu0 %v2302
    %2924 = vmatprep.subr.bf16.mxu0 %v2307
    %2925 = vmatpush1.bf16.msra.mxu0 %v2306
    %2926 = vmatprep.subr.bf16.mxu0 %v2311
    %2927 = vmatpush1.bf16.msra.mxu0 %v2310
    %2928 = vmatprep.subr.bf16.mxu0 %v2315
    %2929 = vmatpush1.bf16.msra.mxu0 %v2314
    %2930 = vmatprep.subr.bf16.mxu0 %v2319
    %2931 = vmatpush1.bf16.msra.mxu0 %v2318
    %2932 = vmatprep.subr.bf16.mxu0 %v2323
    %2933 = vmatpush1.bf16.msra.mxu0 %v2322
    %2934 = vmatprep.mubr.bf16.mxu0 %v1357
    %2935 = vmatmul.mubr.bf16.gmra.mrb[0].mxu0 %v1356
    %v2936 = vpop.f32.mrb[0].mxu0
    %v2937 = vadd.f32 %v2894, %v2936
    %v2938 = vpop.f32.mrb[0].mxu0
    %v2939 = vadd.f32 %v2896, %v2938
    %v2940 = vpop.f32.mrb[0].mxu0
    %v2941 = vadd.f32 %v2898, %v2940
    %v2942 = vpop.f32.mrb[0].mxu0
    %v2943 = vadd.f32 %v2900, %v2942
    %2944 = vdwg.mxu0
    %2945 = vmatprep.subr.bf16.mxu0 %v2327
    %2946 = vmatpush1.bf16.msra.mxu0 %v2326
    %2947 = vmatprep.subr.bf16.mxu0 %v2331
    %2948 = vmatpush1.bf16.msra.mxu0 %v2330
    %2949 = vmatprep.subr.bf16.mxu0 %v2335
    %2950 = vmatpush1.bf16.msra.mxu0 %v2334
    %2951 = vmatprep.subr.bf16.mxu0 %v2339
    %2952 = vmatpush1.bf16.msra.mxu0 %v2338
    %2953 = vmatprep.subr.bf16.mxu0 %v2343
    %2954 = vmatpush1.bf16.msra.mxu0 %v2342
    %2955 = vmatprep.subr.bf16.mxu0 %v2347
    %2956 = vmatpush1.bf16.msra.mxu0 %v2346
    %2957 = vmatprep.subr.bf16.mxu0 %v2351
    %2958 = vmatpush1.bf16.msra.mxu0 %v2350
    %2959 = vmatprep.subr.bf16.mxu0 %v2355
    %2960 = vmatpush1.bf16.msra.mxu0 %v2354
    %2961 = vmatprep.subr.bf16.mxu0 %v2359
    %2962 = vmatpush1.bf16.msra.mxu0 %v2358
    %2963 = vmatprep.subr.bf16.mxu0 %v2363
    %2964 = vmatpush1.bf16.msra.mxu0 %v2362
    %2965 = vmatprep.subr.bf16.mxu0 %v2367
    %2966 = vmatpush1.bf16.msra.mxu0 %v2366
    %2967 = vmatprep.subr.bf16.mxu0 %v2371
    %2968 = vmatpush1.bf16.msra.mxu0 %v2370
    %2969 = vmatprep.subr.bf16.mxu0 %v2375
    %2970 = vmatpush1.bf16.msra.mxu0 %v2374
    %2971 = vmatprep.subr.bf16.mxu0 %v2379
    %2972 = vmatpush1.bf16.msra.mxu0 %v2378
    %2973 = vmatprep.subr.bf16.mxu0 %v2383
    %2974 = vmatpush1.bf16.msra.mxu0 %v2382
    %2975 = vmatprep.subr.bf16.mxu0 %v2387
    %2976 = vmatpush1.bf16.msra.mxu0 %v2386
    %2977 = vmatprep.mubr.bf16.mxu0 %v1359
    %2978 = vmatmul.mubr.bf16.gmra.mrb[0].mxu0 %v1358
    %v2979 = vpop.f32.mrb[0].mxu0
    %v2980 = vadd.f32 %v2937, %v2979
    %v2981 = vpop.f32.mrb[0].mxu0
    %v2982 = vadd.f32 %v2939, %v2981
    %v2983 = vpop.f32.mrb[0].mxu0
    %v2984 = vadd.f32 %v2941, %v2983
    %v2985 = vpop.f32.mrb[0].mxu0
    %v2986 = vadd.f32 %v2943, %v2985
    %2987 = vdwg.mxu0
    %v2990 = vlaneseq
    %v2991 = vshrl.u32 %v2990, 7
    %v2992 = vsub.s32 0, %v2991
    %v2993 = vrot.slane %v55, %v2992
    %v2994 = vlaneseq
    %v2995 = vshrl.u32 %v2994, 7
    %v2996 = vsub.s32 4, %v2995
    %v2997 = vrot.slane %v55, %v2996
    %v2998 = vlaneseq
    %v2999 = vshrl.u32 %v2998, 7
    %v3000 = vsub.s32 0, %v2999
    %v3001 = vrot.slane %v56, %v3000
    %v3002 = vlaneseq
    %v3003 = vshrl.u32 %v3002, 7
    %v3004 = vsub.s32 4, %v3003
    %v3005 = vrot.slane %v56, %v3004
    %v3010 = vlaneseq
    %v3011 = vshrl.u32 %v3010, 7
    %v3012 = vsub.s32 0, %v3011
    %v3013 = vrot.slane %v2993, %v3012
    %v3014 = vlaneseq
    %v3015 = vshrl.u32 %v3014, 7
    %v3016 = vsub.s32 0, %v3015
    %v3017 = vrot.slane %v2997, %v3016
    %v3018 = vlaneseq
    %v3019 = vshrl.u32 %v3018, 7
    %v3020 = vsub.s32 0, %v3019
    %v3021 = vrot.slane %v3001, %v3020
    %v3022 = vlaneseq
    %v3023 = vshrl.u32 %v3022, 7
    %v3024 = vsub.s32 0, %v3023
    %v3025 = vrot.slane %v3005, %v3024
    %v3026 = vadd.f32 %v2808, %v3013
    %v3027 = vadd.f32 %v2810, %v3017
    %v3028 = vadd.f32 %v2980, %v3021
    %v3029 = vadd.f32 %v2982, %v3025
    %v3030 = vadd.f32 %v2812, %v3013
    %v3031 = vadd.f32 %v2814, %v3017
    %v3032 = vadd.f32 %v2984, %v3021
    %v3033 = vadd.f32 %v2986, %v3025
    %v3034 = vmul.u32 %v1315, 8
    %vm3035 = vcmp.ge.s32.totalorder %v1318, %v3034
    %v3036 = vadd.s32 %v3034, 8
    %vm3037 = vcmp.lt.s32.totalorder %v1318, %v3036
    %vm3038 = vmand %vm3035, %vm3037
    %v3039 = vsel %vm3038, 1, 0
    %v3040 = vcvt.s32.f32 %v3039
    %v3041 = vpack.c.bf16 %v3040, %v3040
    %v3042 = vpack.c.bf16 %v3030, %v3026
    %v3043 = vpack.c.bf16 %v3031, %v3027
    %v3044 = vpack.c.bf16 %v3032, %v3028
    %v3045 = vpack.c.bf16 %v3033, %v3029
    %vm3046 = vcmask 130048
    %v3048 = vsel %vm3046, %v3041, 0
    %3050 = vmatprep.subr.bf16.mxu0 %v3043
    %3051 = vmatpush1.bf16.msra.mxu0 %v3042
    %3052 = vmatprep.subr.bf16.mxu0 0
    %3053 = vmatpush1.bf16.msra.mxu0 0
    %3054 = vmatprep.subr.bf16.mxu0 0
    %3055 = vmatpush1.bf16.msra.mxu0 0
    %3056 = vmatprep.subr.bf16.mxu0 0
    %3057 = vmatpush1.bf16.msra.mxu0 0
    %3058 = vmatprep.subr.bf16.mxu0 0
    %3059 = vmatpush1.bf16.msra.mxu0 0
    %3060 = vmatprep.subr.bf16.mxu0 0
    %3061 = vmatpush1.bf16.msra.mxu0 0
    %3062 = vmatprep.subr.bf16.mxu0 0
    %3063 = vmatpush1.bf16.msra.mxu0 0
    %3064 = vmatprep.subr.bf16.mxu0 0
    %3065 = vmatpush1.bf16.msra.mxu0 0
    %3066 = vmatprep.subr.bf16.mxu0 0
    %3067 = vmatpush1.bf16.msra.mxu0 0
    %3068 = vmatprep.subr.bf16.mxu0 0
    %3069 = vmatpush1.bf16.msra.mxu0 0
    %3070 = vmatprep.subr.bf16.mxu0 0
    %3071 = vmatpush1.bf16.msra.mxu0 0
    %3072 = vmatprep.subr.bf16.mxu0 0
    %3073 = vmatpush1.bf16.msra.mxu0 0
    %3074 = vmatprep.subr.bf16.mxu0 0
    %3075 = vmatpush1.bf16.msra.mxu0 0
    %3076 = vmatprep.subr.bf16.mxu0 0
    %3077 = vmatpush1.bf16.msra.mxu0 0
    %3078 = vmatprep.subr.bf16.mxu0 0
    %3079 = vmatpush1.bf16.msra.mxu0 0
    %3080 = vmatprep.subr.bf16.mxu0 0
    %3081 = vmatpush1.bf16.msra.mxu0 0
    %3082 = vmatprep.mubr.bf16.mxu0 0
    %3083 = vmatmul.mubr.bf16.gmra.mrb[0].mxu0 %v3048
    %v3084 = vpop.f32.mrb[0].mxu0
    %v3085 = vadd.f32 0.0, %v3084
    %v3086 = vpop.f32.mrb[0].mxu0
    %v3087 = vadd.f32 0.0, %v3086
    %v3088 = vpop.f32.mrb[0].mxu0
    %v3089 = vpop.f32.mrb[0].mxu0
    %3090 = vdwg.mxu0
    %3091 = vmatprep.subr.bf16.mxu0 %v3045
    %3092 = vmatpush1.bf16.msra.mxu0 %v3044
    %3093 = vmatprep.subr.bf16.mxu0 0
    %3094 = vmatpush1.bf16.msra.mxu0 0
    %3095 = vmatprep.subr.bf16.mxu0 0
    %3096 = vmatpush1.bf16.msra.mxu0 0
    %3097 = vmatprep.subr.bf16.mxu0 0
    %3098 = vmatpush1.bf16.msra.mxu0 0
    %3099 = vmatprep.subr.bf16.mxu0 0
    %3100 = vmatpush1.bf16.msra.mxu0 0
    %3101 = vmatprep.subr.bf16.mxu0 0
    %3102 = vmatpush1.bf16.msra.mxu0 0
    %3103 = vmatprep.subr.bf16.mxu0 0
    %3104 = vmatpush1.bf16.msra.mxu0 0
    %3105 = vmatprep.subr.bf16.mxu0 0
    %3106 = vmatpush1.bf16.msra.mxu0 0
    %3107 = vmatprep.subr.bf16.mxu0 0
    %3108 = vmatpush1.bf16.msra.mxu0 0
    %3109 = vmatprep.subr.bf16.mxu0 0
    %3110 = vmatpush1.bf16.msra.mxu0 0
    %3111 = vmatprep.subr.bf16.mxu0 0
    %3112 = vmatpush1.bf16.msra.mxu0 0
    %3113 = vmatprep.subr.bf16.mxu0 0
    %3114 = vmatpush1.bf16.msra.mxu0 0
    %3115 = vmatprep.subr.bf16.mxu0 0
    %3116 = vmatpush1.bf16.msra.mxu0 0
    %3117 = vmatprep.subr.bf16.mxu0 0
    %3118 = vmatpush1.bf16.msra.mxu0 0
    %3119 = vmatprep.subr.bf16.mxu0 0
    %3120 = vmatpush1.bf16.msra.mxu0 0
    %3121 = vmatprep.subr.bf16.mxu0 0
    %3122 = vmatpush1.bf16.msra.mxu0 0
    %3123 = vmatprep.mubr.bf16.mxu0 0
    %3124 = vmatmul.mubr.bf16.gmra.mrb[0].mxu0 %v3048
    %v3125 = vpop.f32.mrb[0].mxu0
    %v3126 = vadd.f32 0.0, %v3125
    %v3127 = vpop.f32.mrb[0].mxu0
    %v3128 = vadd.f32 0.0, %v3127
    %v3129 = vpop.f32.mrb[0].mxu0
    %v3130 = vpop.f32.mrb[0].mxu0
    %3131 = vdwg.mxu0
    %v3132 = vmul.bf16 %v3042, %v3042
    %v3133 = vmul.bf16 %v3043, %v3043
    %v3134 = vmul.bf16 %v3044, %v3044
    %v3135 = vmul.bf16 %v3045, %v3045
    %3136 = vmatprep.subr.bf16.mxu0 %v3133
    %3137 = vmatpush1.bf16.msra.mxu0 %v3132
    %3138 = vmatprep.subr.bf16.mxu0 0
    %3139 = vmatpush1.bf16.msra.mxu0 0
    %3140 = vmatprep.subr.bf16.mxu0 0
    %3141 = vmatpush1.bf16.msra.mxu0 0
    %3142 = vmatprep.subr.bf16.mxu0 0
    %3143 = vmatpush1.bf16.msra.mxu0 0
    %3144 = vmatprep.subr.bf16.mxu0 0
    %3145 = vmatpush1.bf16.msra.mxu0 0
    %3146 = vmatprep.subr.bf16.mxu0 0
    %3147 = vmatpush1.bf16.msra.mxu0 0
    %3148 = vmatprep.subr.bf16.mxu0 0
    %3149 = vmatpush1.bf16.msra.mxu0 0
    %3150 = vmatprep.subr.bf16.mxu0 0
    %3151 = vmatpush1.bf16.msra.mxu0 0
    %3152 = vmatprep.subr.bf16.mxu0 0
    %3153 = vmatpush1.bf16.msra.mxu0 0
    %3154 = vmatprep.subr.bf16.mxu0 0
    %3155 = vmatpush1.bf16.msra.mxu0 0
    %3156 = vmatprep.subr.bf16.mxu0 0
    %3157 = vmatpush1.bf16.msra.mxu0 0
    %3158 = vmatprep.subr.bf16.mxu0 0
    %3159 = vmatpush1.bf16.msra.mxu0 0
    %3160 = vmatprep.subr.bf16.mxu0 0
    %3161 = vmatpush1.bf16.msra.mxu0 0
    %3162 = vmatprep.subr.bf16.mxu0 0
    %3163 = vmatpush1.bf16.msra.mxu0 0
    %3164 = vmatprep.subr.bf16.mxu0 0
    %3165 = vmatpush1.bf16.msra.mxu0 0
    %3166 = vmatprep.subr.bf16.mxu0 0
    %3167 = vmatpush1.bf16.msra.mxu0 0
    %3168 = vmatprep.mubr.bf16.mxu0 0
    %3169 = vmatmul.mubr.bf16.gmra.mrb[0].mxu0 %v3048
    %v3170 = vpop.f32.mrb[0].mxu0
    %v3171 = vadd.f32 0.0, %v3170
    %v3172 = vpop.f32.mrb[0].mxu0
    %v3173 = vadd.f32 0.0, %v3172
    %v3174 = vpop.f32.mrb[0].mxu0
    %v3175 = vpop.f32.mrb[0].mxu0
    %3176 = vdwg.mxu0
    %3177 = vmatprep.subr.bf16.mxu0 %v3135
    %3178 = vmatpush1.bf16.msra.mxu0 %v3134
    %3179 = vmatprep.subr.bf16.mxu0 0
    %3180 = vmatpush1.bf16.msra.mxu0 0
    %3181 = vmatprep.subr.bf16.mxu0 0
    %3182 = vmatpush1.bf16.msra.mxu0 0
    %3183 = vmatprep.subr.bf16.mxu0 0
    %3184 = vmatpush1.bf16.msra.mxu0 0
    %3185 = vmatprep.subr.bf16.mxu0 0
    %3186 = vmatpush1.bf16.msra.mxu0 0
    %3187 = vmatprep.subr.bf16.mxu0 0
    %3188 = vmatpush1.bf16.msra.mxu0 0
    %3189 = vmatprep.subr.bf16.mxu0 0
    %3190 = vmatpush1.bf16.msra.mxu0 0
    %3191 = vmatprep.subr.bf16.mxu0 0
    %3192 = vmatpush1.bf16.msra.mxu0 0
    %3193 = vmatprep.subr.bf16.mxu0 0
    %3194 = vmatpush1.bf16.msra.mxu0 0
    %3195 = vmatprep.subr.bf16.mxu0 0
    %3196 = vmatpush1.bf16.msra.mxu0 0
    %3197 = vmatprep.subr.bf16.mxu0 0
    %3198 = vmatpush1.bf16.msra.mxu0 0
    %3199 = vmatprep.subr.bf16.mxu0 0
    %3200 = vmatpush1.bf16.msra.mxu0 0
    %3201 = vmatprep.subr.bf16.mxu0 0
    %3202 = vmatpush1.bf16.msra.mxu0 0
    %3203 = vmatprep.subr.bf16.mxu0 0
    %3204 = vmatpush1.bf16.msra.mxu0 0
    %3205 = vmatprep.subr.bf16.mxu0 0
    %3206 = vmatpush1.bf16.msra.mxu0 0
    %3207 = vmatprep.subr.bf16.mxu0 0
    %3208 = vmatpush1.bf16.msra.mxu0 0
    %3209 = vmatprep.mubr.bf16.mxu0 0
    %3210 = vmatmul.mubr.bf16.gmra.mrb[0].mxu0 %v3048
    %v3211 = vpop.f32.mrb[0].mxu0
    %v3212 = vadd.f32 0.0, %v3211
    %v3213 = vpop.f32.mrb[0].mxu0
    %v3214 = vadd.f32 0.0, %v3213
    %v3215 = vpop.f32.mrb[0].mxu0
    %v3216 = vpop.f32.mrb[0].mxu0
    %3217 = vdwg.mxu0
    %v3218 = vadd.s32 %v1315, 16
    %v3219 = vadd.s32 %v1315, 24
    %v3220 = vadd.s32 %v1315, 32
    %v3221 = vadd.s32 %v1315, 40
    %v3222 = vadd.s32 %v1315, 48
    %v3223 = vadd.s32 %v1315, 56
    %v3224 = vadd.s32 %v1315, 64
    %v3225 = vadd.s32 %v1315, 72
    %v3226 = vadd.s32 %v1315, 80
    %v3227 = vadd.s32 %v1315, 88
    %v3228 = vadd.s32 %v1315, 96
    %v3229 = vadd.s32 %v1315, 104
    %v3230 = vadd.s32 %v1315, 112
    %v3231 = vadd.s32 %v1315, 120
    %v3232 = vadd.s32 %v1315, 128
    %v3233 = vadd.s32 %v1315, 136
    %v3234 = vadd.s32 %v1315, 144
    %v3235 = vadd.s32 %v1315, 152
    %v3236 = vadd.s32 %v1315, 160
    %v3237 = vadd.s32 %v1315, 168
    %v3238 = vadd.s32 %v1315, 176
    %v3239 = vadd.s32 %v1315, 184
    %v3240 = vadd.s32 %v1315, 192
    %v3241 = vadd.s32 %v1315, 200
    %v3242 = vadd.s32 %v1315, 208
    %v3243 = vadd.s32 %v1315, 216
    %v3244 = vadd.s32 %v1315, 224
    %v3245 = vadd.s32 %v1315, 232
    %v3246 = vadd.s32 %v1315, 240
    %v3247 = vadd.s32 %v1315, 248
    %v3248 = vadd.s32 %v1315, 256
    %v3249 = vadd.s32 %v1315, 264
    %v3250 = vadd.s32 %v1315, 272
    %v3251 = vadd.s32 %v1315, 280
    %v3252 = vadd.s32 %v1315, 288
    %v3253 = vadd.s32 %v1315, 296
    %v3254 = vadd.s32 %v1315, 304
    %v3255 = vadd.s32 %v1315, 312
    %v3256 = vadd.s32 %v1315, 320
    %v3257 = vadd.s32 %v1315, 328
    %v3258 = vadd.s32 %v1315, 336
    %v3259 = vadd.s32 %v1315, 344
    %v3260 = vadd.s32 %v1315, 352
    %v3261 = vadd.s32 %v1315, 360
    %v3262 = vadd.s32 %v1315, 368
    %v3263 = vadd.s32 %v1315, 376
    %v3264 = vadd.s32 %v1315, 384
    %v3265 = vadd.s32 %v1315, 392
    %v3266 = vadd.s32 %v1315, 400
    %v3267 = vadd.s32 %v1315, 408
    %v3268 = vadd.s32 %v1315, 416
    %v3269 = vadd.s32 %v1315, 424
    %v3270 = vadd.s32 %v1315, 432
    %v3271 = vadd.s32 %v1315, 440
    %v3272 = vadd.s32 %v1315, 448
    %v3273 = vadd.s32 %v1315, 456
    %v3274 = vadd.s32 %v1315, 464
    %v3275 = vadd.s32 %v1315, 472
    %v3276 = vadd.s32 %v1315, 480
    %v3277 = vadd.s32 %v1315, 488
    %v3278 = vadd.s32 %v1315, 496
    %v3279 = vadd.s32 %v1315, 504
    %v3280 = vmul.u32 %v1318, 16
    %vm3281 = vcmp.ge.s32.totalorder %v1315, %v3280
    %vm3282 = vcmp.ge.s32.totalorder %v1316, %v3280
    %vm3283 = vcmp.ge.s32.totalorder %v3218, %v3280
    %vm3284 = vcmp.ge.s32.totalorder %v3219, %v3280
    %vm3285 = vcmp.ge.s32.totalorder %v3220, %v3280
    %vm3286 = vcmp.ge.s32.totalorder %v3221, %v3280
    %vm3287 = vcmp.ge.s32.totalorder %v3222, %v3280
    %vm3288 = vcmp.ge.s32.totalorder %v3223, %v3280
    %vm3289 = vcmp.ge.s32.totalorder %v3224, %v3280
    %vm3290 = vcmp.ge.s32.totalorder %v3225, %v3280
    %vm3291 = vcmp.ge.s32.totalorder %v3226, %v3280
    %vm3292 = vcmp.ge.s32.totalorder %v3227, %v3280
    %vm3293 = vcmp.ge.s32.totalorder %v3228, %v3280
    %vm3294 = vcmp.ge.s32.totalorder %v3229, %v3280
    %vm3295 = vcmp.ge.s32.totalorder %v3230, %v3280
    %vm3296 = vcmp.ge.s32.totalorder %v3231, %v3280
    %vm3297 = vcmp.ge.s32.totalorder %v3232, %v3280
    %vm3298 = vcmp.ge.s32.totalorder %v3233, %v3280
    %vm3299 = vcmp.ge.s32.totalorder %v3234, %v3280
    %vm3300 = vcmp.ge.s32.totalorder %v3235, %v3280
    %vm3301 = vcmp.ge.s32.totalorder %v3236, %v3280
    %vm3302 = vcmp.ge.s32.totalorder %v3237, %v3280
    %vm3303 = vcmp.ge.s32.totalorder %v3238, %v3280
    %vm3304 = vcmp.ge.s32.totalorder %v3239, %v3280
    %vm3305 = vcmp.ge.s32.totalorder %v3240, %v3280
    %vm3306 = vcmp.ge.s32.totalorder %v3241, %v3280
    %vm3307 = vcmp.ge.s32.totalorder %v3242, %v3280
    %vm3308 = vcmp.ge.s32.totalorder %v3243, %v3280
    %vm3309 = vcmp.ge.s32.totalorder %v3244, %v3280
    %vm3310 = vcmp.ge.s32.totalorder %v3245, %v3280
    %vm3311 = vcmp.ge.s32.totalorder %v3246, %v3280
    %vm3312 = vcmp.ge.s32.totalorder %v3247, %v3280
    %vm3313 = vcmp.ge.s32.totalorder %v3248, %v3280
    %vm3314 = vcmp.ge.s32.totalorder %v3249, %v3280
    %vm3315 = vcmp.ge.s32.totalorder %v3250, %v3280
    %vm3316 = vcmp.ge.s32.totalorder %v3251, %v3280
    %vm3317 = vcmp.ge.s32.totalorder %v3252, %v3280
    %vm3318 = vcmp.ge.s32.totalorder %v3253, %v3280
    %vm3319 = vcmp.ge.s32.totalorder %v3254, %v3280
    %vm3320 = vcmp.ge.s32.totalorder %v3255, %v3280
    %vm3321 = vcmp.ge.s32.totalorder %v3256, %v3280
    %vm3322 = vcmp.ge.s32.totalorder %v3257, %v3280
    %vm3323 = vcmp.ge.s32.totalorder %v3258, %v3280
    %vm3324 = vcmp.ge.s32.totalorder %v3259, %v3280
    %vm3325 = vcmp.ge.s32.totalorder %v3260, %v3280
    %vm3326 = vcmp.ge.s32.totalorder %v3261, %v3280
    %vm3327 = vcmp.ge.s32.totalorder %v3262, %v3280
    %vm3328 = vcmp.ge.s32.totalorder %v3263, %v3280
    %vm3329 = vcmp.ge.s32.totalorder %v3264, %v3280
    %vm3330 = vcmp.ge.s32.totalorder %v3265, %v3280
    %vm3331 = vcmp.ge.s32.totalorder %v3266, %v3280
    %vm3332 = vcmp.ge.s32.totalorder %v3267, %v3280
    %vm3333 = vcmp.ge.s32.totalorder %v3268, %v3280
    %vm3334 = vcmp.ge.s32.totalorder %v3269, %v3280
    %vm3335 = vcmp.ge.s32.totalorder %v3270, %v3280
    %vm3336 = vcmp.ge.s32.totalorder %v3271, %v3280
    %vm3337 = vcmp.ge.s32.totalorder %v3272, %v3280
    %vm3338 = vcmp.ge.s32.totalorder %v3273, %v3280
    %vm3339 = vcmp.ge.s32.totalorder %v3274, %v3280
    %vm3340 = vcmp.ge.s32.totalorder %v3275, %v3280
    %vm3341 = vcmp.ge.s32.totalorder %v3276, %v3280
    %vm3342 = vcmp.ge.s32.totalorder %v3277, %v3280
    %vm3343 = vcmp.ge.s32.totalorder %v3278, %v3280
    %vm3344 = vcmp.ge.s32.totalorder %v3279, %v3280
    %v3345 = vadd.s32 %v3280, 16
    %vm3346 = vcmp.lt.s32.totalorder %v1315, %v3345
    %vm3347 = vcmp.lt.s32.totalorder %v1316, %v3345
    %vm3348 = vcmp.lt.s32.totalorder %v3218, %v3345
    %vm3349 = vcmp.lt.s32.totalorder %v3219, %v3345
    %vm3350 = vcmp.lt.s32.totalorder %v3220, %v3345
    %vm3351 = vcmp.lt.s32.totalorder %v3221, %v3345
    %vm3352 = vcmp.lt.s32.totalorder %v3222, %v3345
    %vm3353 = vcmp.lt.s32.totalorder %v3223, %v3345
    %vm3354 = vcmp.lt.s32.totalorder %v3224, %v3345
    %vm3355 = vcmp.lt.s32.totalorder %v3225, %v3345
    %vm3356 = vcmp.lt.s32.totalorder %v3226, %v3345
    %vm3357 = vcmp.lt.s32.totalorder %v3227, %v3345
    %vm3358 = vcmp.lt.s32.totalorder %v3228, %v3345
    %vm3359 = vcmp.lt.s32.totalorder %v3229, %v3345
    %vm3360 = vcmp.lt.s32.totalorder %v3230, %v3345
    %vm3361 = vcmp.lt.s32.totalorder %v3231, %v3345
    %vm3362 = vcmp.lt.s32.totalorder %v3232, %v3345
    %vm3363 = vcmp.lt.s32.totalorder %v3233, %v3345
    %vm3364 = vcmp.lt.s32.totalorder %v3234, %v3345
    %vm3365 = vcmp.lt.s32.totalorder %v3235, %v3345
    %vm3366 = vcmp.lt.s32.totalorder %v3236, %v3345
    %vm3367 = vcmp.lt.s32.totalorder %v3237, %v3345
    %vm3368 = vcmp.lt.s32.totalorder %v3238, %v3345
    %vm3369 = vcmp.lt.s32.totalorder %v3239, %v3345
    %vm3370 = vcmp.lt.s32.totalorder %v3240, %v3345
    %vm3371 = vcmp.lt.s32.totalorder %v3241, %v3345
    %vm3372 = vcmp.lt.s32.totalorder %v3242, %v3345
    %vm3373 = vcmp.lt.s32.totalorder %v3243, %v3345
    %vm3374 = vcmp.lt.s32.totalorder %v3244, %v3345
    %vm3375 = vcmp.lt.s32.totalorder %v3245, %v3345
    %vm3376 = vcmp.lt.s32.totalorder %v3246, %v3345
    %vm3377 = vcmp.lt.s32.totalorder %v3247, %v3345
    %vm3378 = vcmp.lt.s32.totalorder %v3248, %v3345
    %vm3379 = vcmp.lt.s32.totalorder %v3249, %v3345
    %vm3380 = vcmp.lt.s32.totalorder %v3250, %v3345
    %vm3381 = vcmp.lt.s32.totalorder %v3251, %v3345
    %vm3382 = vcmp.lt.s32.totalorder %v3252, %v3345
    %vm3383 = vcmp.lt.s32.totalorder %v3253, %v3345
    %vm3384 = vcmp.lt.s32.totalorder %v3254, %v3345
    %vm3385 = vcmp.lt.s32.totalorder %v3255, %v3345
    %vm3386 = vcmp.lt.s32.totalorder %v3256, %v3345
    %vm3387 = vcmp.lt.s32.totalorder %v3257, %v3345
    %vm3388 = vcmp.lt.s32.totalorder %v3258, %v3345
    %vm3389 = vcmp.lt.s32.totalorder %v3259, %v3345
    %vm3390 = vcmp.lt.s32.totalorder %v3260, %v3345
    %vm3391 = vcmp.lt.s32.totalorder %v3261, %v3345
    %vm3392 = vcmp.lt.s32.totalorder %v3262, %v3345
    %vm3393 = vcmp.lt.s32.totalorder %v3263, %v3345
    %vm3394 = vcmp.lt.s32.totalorder %v3264, %v3345
    %vm3395 = vcmp.lt.s32.totalorder %v3265, %v3345
    %vm3396 = vcmp.lt.s32.totalorder %v3266, %v3345
    %vm3397 = vcmp.lt.s32.totalorder %v3267, %v3345
    %vm3398 = vcmp.lt.s32.totalorder %v3268, %v3345
    %vm3399 = vcmp.lt.s32.totalorder %v3269, %v3345
    %vm3400 = vcmp.lt.s32.totalorder %v3270, %v3345
    %vm3401 = vcmp.lt.s32.totalorder %v3271, %v3345
    %vm3402 = vcmp.lt.s32.totalorder %v3272, %v3345
    %vm3403 = vcmp.lt.s32.totalorder %v3273, %v3345
    %vm3404 = vcmp.lt.s32.totalorder %v3274, %v3345
    %vm3405 = vcmp.lt.s32.totalorder %v3275, %v3345
    %vm3406 = vcmp.lt.s32.totalorder %v3276, %v3345
    %vm3407 = vcmp.lt.s32.totalorder %v3277, %v3345
    %vm3408 = vcmp.lt.s32.totalorder %v3278, %v3345
    %vm3409 = vcmp.lt.s32.totalorder %v3279, %v3345
    %vm3410 = vmand %vm3281, %vm3346
    %vm3411 = vmand %vm3282, %vm3347
    %vm3412 = vmand %vm3283, %vm3348
    %vm3413 = vmand %vm3284, %vm3349
    %vm3414 = vmand %vm3285, %vm3350
    %vm3415 = vmand %vm3286, %vm3351
    %vm3416 = vmand %vm3287, %vm3352
    %vm3417 = vmand %vm3288, %vm3353
    %vm3418 = vmand %vm3289, %vm3354
    %vm3419 = vmand %vm3290, %vm3355
    %vm3420 = vmand %vm3291, %vm3356
    %vm3421 = vmand %vm3292, %vm3357
    %vm3422 = vmand %vm3293, %vm3358
    %vm3423 = vmand %vm3294, %vm3359
    %vm3424 = vmand %vm3295, %vm3360
    %vm3425 = vmand %vm3296, %vm3361
    %vm3426 = vmand %vm3297, %vm3362
    %vm3427 = vmand %vm3298, %vm3363
    %vm3428 = vmand %vm3299, %vm3364
    %vm3429 = vmand %vm3300, %vm3365
    %vm3430 = vmand %vm3301, %vm3366
    %vm3431 = vmand %vm3302, %vm3367
    %vm3432 = vmand %vm3303, %vm3368
    %vm3433 = vmand %vm3304, %vm3369
    %vm3434 = vmand %vm3305, %vm3370
    %vm3435 = vmand %vm3306, %vm3371
    %vm3436 = vmand %vm3307, %vm3372
    %vm3437 = vmand %vm3308, %vm3373
    %vm3438 = vmand %vm3309, %vm3374
    %vm3439 = vmand %vm3310, %vm3375
    %vm3440 = vmand %vm3311, %vm3376
    %vm3441 = vmand %vm3312, %vm3377
    %vm3442 = vmand %vm3313, %vm3378
    %vm3443 = vmand %vm3314, %vm3379
    %vm3444 = vmand %vm3315, %vm3380
    %vm3445 = vmand %vm3316, %vm3381
    %vm3446 = vmand %vm3317, %vm3382
    %vm3447 = vmand %vm3318, %vm3383
    %vm3448 = vmand %vm3319, %vm3384
    %vm3449 = vmand %vm3320, %vm3385
    %vm3450 = vmand %vm3321, %vm3386
    %vm3451 = vmand %vm3322, %vm3387
    %vm3452 = vmand %vm3323, %vm3388
    %vm3453 = vmand %vm3324, %vm3389
    %vm3454 = vmand %vm3325, %vm3390
    %vm3455 = vmand %vm3326, %vm3391
    %vm3456 = vmand %vm3327, %vm3392
    %vm3457 = vmand %vm3328, %vm3393
    %vm3458 = vmand %vm3329, %vm3394
    %vm3459 = vmand %vm3330, %vm3395
    %vm3460 = vmand %vm3331, %vm3396
    %vm3461 = vmand %vm3332, %vm3397
    %vm3462 = vmand %vm3333, %vm3398
    %vm3463 = vmand %vm3334, %vm3399
    %vm3464 = vmand %vm3335, %vm3400
    %vm3465 = vmand %vm3336, %vm3401
    %vm3466 = vmand %vm3337, %vm3402
    %vm3467 = vmand %vm3338, %vm3403
    %vm3468 = vmand %vm3339, %vm3404
    %vm3469 = vmand %vm3340, %vm3405
    %vm3470 = vmand %vm3341, %vm3406
    %vm3471 = vmand %vm3342, %vm3407
    %vm3472 = vmand %vm3343, %vm3408
    %vm3473 = vmand %vm3344, %vm3409
    %v3474 = vsel %vm3410, 1, 0
    %v3475 = vsel %vm3411, 1, 0
    %v3476 = vsel %vm3412, 1, 0
    %v3477 = vsel %vm3413, 1, 0
    %v3478 = vsel %vm3414, 1, 0
    %v3479 = vsel %vm3415, 1, 0
    %v3480 = vsel %vm3416, 1, 0
    %v3481 = vsel %vm3417, 1, 0
    %v3482 = vsel %vm3418, 1, 0
    %v3483 = vsel %vm3419, 1, 0
    %v3484 = vsel %vm3420, 1, 0
    %v3485 = vsel %vm3421, 1, 0
    %v3486 = vsel %vm3422, 1, 0
    %v3487 = vsel %vm3423, 1, 0
    %v3488 = vsel %vm3424, 1, 0
    %v3489 = vsel %vm3425, 1, 0
    %v3490 = vsel %vm3426, 1, 0
    %v3491 = vsel %vm3427, 1, 0
    %v3492 = vsel %vm3428, 1, 0
    %v3493 = vsel %vm3429, 1, 0
    %v3494 = vsel %vm3430, 1, 0
    %v3495 = vsel %vm3431, 1, 0
    %v3496 = vsel %vm3432, 1, 0
    %v3497 = vsel %vm3433, 1, 0
    %v3498 = vsel %vm3434, 1, 0
    %v3499 = vsel %vm3435, 1, 0
    %v3500 = vsel %vm3436, 1, 0
    %v3501 = vsel %vm3437, 1, 0
    %v3502 = vsel %vm3438, 1, 0
    %v3503 = vsel %vm3439, 1, 0
    %v3504 = vsel %vm3440, 1, 0
    %v3505 = vsel %vm3441, 1, 0
    %v3506 = vsel %vm3442, 1, 0
    %v3507 = vsel %vm3443, 1, 0
    %v3508 = vsel %vm3444, 1, 0
    %v3509 = vsel %vm3445, 1, 0
    %v3510 = vsel %vm3446, 1, 0
    %v3511 = vsel %vm3447, 1, 0
    %v3512 = vsel %vm3448, 1, 0
    %v3513 = vsel %vm3449, 1, 0
    %v3514 = vsel %vm3450, 1, 0
    %v3515 = vsel %vm3451, 1, 0
    %v3516 = vsel %vm3452, 1, 0
    %v3517 = vsel %vm3453, 1, 0
    %v3518 = vsel %vm3454, 1, 0
    %v3519 = vsel %vm3455, 1, 0
    %v3520 = vsel %vm3456, 1, 0
    %v3521 = vsel %vm3457, 1, 0
    %v3522 = vsel %vm3458, 1, 0
    %v3523 = vsel %vm3459, 1, 0
    %v3524 = vsel %vm3460, 1, 0
    %v3525 = vsel %vm3461, 1, 0
    %v3526 = vsel %vm3462, 1, 0
    %v3527 = vsel %vm3463, 1, 0
    %v3528 = vsel %vm3464, 1, 0
    %v3529 = vsel %vm3465, 1, 0
    %v3530 = vsel %vm3466, 1, 0
    %v3531 = vsel %vm3467, 1, 0
    %v3532 = vsel %vm3468, 1, 0
    %v3533 = vsel %vm3469, 1, 0
    %v3534 = vsel %vm3470, 1, 0
    %v3535 = vsel %vm3471, 1, 0
    %v3536 = vsel %vm3472, 1, 0
    %v3537 = vsel %vm3473, 1, 0
    %v3538 = vcvt.s32.f32 %v3474
    %v3539 = vcvt.s32.f32 %v3475
    %v3540 = vcvt.s32.f32 %v3476
    %v3541 = vcvt.s32.f32 %v3477
    %v3542 = vcvt.s32.f32 %v3478
    %v3543 = vcvt.s32.f32 %v3479
    %v3544 = vcvt.s32.f32 %v3480
    %v3545 = vcvt.s32.f32 %v3481
    %v3546 = vcvt.s32.f32 %v3482
    %v3547 = vcvt.s32.f32 %v3483
    %v3548 = vcvt.s32.f32 %v3484
    %v3549 = vcvt.s32.f32 %v3485
    %v3550 = vcvt.s32.f32 %v3486
    %v3551 = vcvt.s32.f32 %v3487
    %v3552 = vcvt.s32.f32 %v3488
    %v3553 = vcvt.s32.f32 %v3489
    %v3554 = vcvt.s32.f32 %v3490
    %v3555 = vcvt.s32.f32 %v3491
    %v3556 = vcvt.s32.f32 %v3492
    %v3557 = vcvt.s32.f32 %v3493
    %v3558 = vcvt.s32.f32 %v3494
    %v3559 = vcvt.s32.f32 %v3495
    %v3560 = vcvt.s32.f32 %v3496
    %v3561 = vcvt.s32.f32 %v3497
    %v3562 = vcvt.s32.f32 %v3498
    %v3563 = vcvt.s32.f32 %v3499
    %v3564 = vcvt.s32.f32 %v3500
    %v3565 = vcvt.s32.f32 %v3501
    %v3566 = vcvt.s32.f32 %v3502
    %v3567 = vcvt.s32.f32 %v3503
    %v3568 = vcvt.s32.f32 %v3504
    %v3569 = vcvt.s32.f32 %v3505
    %v3570 = vcvt.s32.f32 %v3506
    %v3571 = vcvt.s32.f32 %v3507
    %v3572 = vcvt.s32.f32 %v3508
    %v3573 = vcvt.s32.f32 %v3509
    %v3574 = vcvt.s32.f32 %v3510
    %v3575 = vcvt.s32.f32 %v3511
    %v3576 = vcvt.s32.f32 %v3512
    %v3577 = vcvt.s32.f32 %v3513
    %v3578 = vcvt.s32.f32 %v3514
    %v3579 = vcvt.s32.f32 %v3515
    %v3580 = vcvt.s32.f32 %v3516
    %v3581 = vcvt.s32.f32 %v3517
    %v3582 = vcvt.s32.f32 %v3518
    %v3583 = vcvt.s32.f32 %v3519
    %v3584 = vcvt.s32.f32 %v3520
    %v3585 = vcvt.s32.f32 %v3521
    %v3586 = vcvt.s32.f32 %v3522
    %v3587 = vcvt.s32.f32 %v3523
    %v3588 = vcvt.s32.f32 %v3524
    %v3589 = vcvt.s32.f32 %v3525
    %v3590 = vcvt.s32.f32 %v3526
    %v3591 = vcvt.s32.f32 %v3527
    %v3592 = vcvt.s32.f32 %v3528
    %v3593 = vcvt.s32.f32 %v3529
    %v3594 = vcvt.s32.f32 %v3530
    %v3595 = vcvt.s32.f32 %v3531
    %v3596 = vcvt.s32.f32 %v3532
    %v3597 = vcvt.s32.f32 %v3533
    %v3598 = vcvt.s32.f32 %v3534
    %v3599 = vcvt.s32.f32 %v3535
    %v3600 = vcvt.s32.f32 %v3536
    %v3601 = vcvt.s32.f32 %v3537
    %v3602 = vadd.s32 %v1318, 128
    %v3603 = vadd.s32 %v1318, 256
    %v3604 = vadd.s32 %v1318, 384
    %v3605 = vmul.u32 %v1315, 16
    %v3606 = vmul.u32 %v1316, 16
    %v3607 = vmul.u32 %v3218, 16
    %v3608 = vmul.u32 %v3219, 16
    %vm3609 = vcmp.ge.s32.totalorder %v1318, %v3605
    %vm3610 = vcmp.ge.s32.totalorder %v3602, %v3605
    %vm3611 = vcmp.ge.s32.totalorder %v3603, %v3605
    %vm3612 = vcmp.ge.s32.totalorder %v3604, %v3605
    %vm3613 = vcmp.ge.s32.totalorder %v1318, %v3606
    %vm3614 = vcmp.ge.s32.totalorder %v3602, %v3606
    %vm3615 = vcmp.ge.s32.totalorder %v3603, %v3606
    %vm3616 = vcmp.ge.s32.totalorder %v3604, %v3606
    %vm3617 = vcmp.ge.s32.totalorder %v1318, %v3607
    %vm3618 = vcmp.ge.s32.totalorder %v3602, %v3607
    %vm3619 = vcmp.ge.s32.totalorder %v3603, %v3607
    %vm3620 = vcmp.ge.s32.totalorder %v3604, %v3607
    %vm3621 = vcmp.ge.s32.totalorder %v1318, %v3608
    %vm3622 = vcmp.ge.s32.totalorder %v3602, %v3608
    %vm3623 = vcmp.ge.s32.totalorder %v3603, %v3608
    %vm3624 = vcmp.ge.s32.totalorder %v3604, %v3608
    %v3625 = vadd.s32 %v3605, 16
    %v3626 = vadd.s32 %v3606, 16
    %v3627 = vadd.s32 %v3607, 16
    %v3628 = vadd.s32 %v3608, 16
    %vm3629 = vcmp.lt.s32.totalorder %v1318, %v3625
    %vm3630 = vcmp.lt.s32.totalorder %v3602, %v3625
    %vm3631 = vcmp.lt.s32.totalorder %v3603, %v3625
    %vm3632 = vcmp.lt.s32.totalorder %v3604, %v3625
    %vm3633 = vcmp.lt.s32.totalorder %v1318, %v3626
    %vm3634 = vcmp.lt.s32.totalorder %v3602, %v3626
    %vm3635 = vcmp.lt.s32.totalorder %v3603, %v3626
    %vm3636 = vcmp.lt.s32.totalorder %v3604, %v3626
    %vm3637 = vcmp.lt.s32.totalorder %v1318, %v3627
    %vm3638 = vcmp.lt.s32.totalorder %v3602, %v3627
    %vm3639 = vcmp.lt.s32.totalorder %v3603, %v3627
    %vm3640 = vcmp.lt.s32.totalorder %v3604, %v3627
    %vm3641 = vcmp.lt.s32.totalorder %v1318, %v3628
    %vm3642 = vcmp.lt.s32.totalorder %v3602, %v3628
    %vm3643 = vcmp.lt.s32.totalorder %v3603, %v3628
    %vm3644 = vcmp.lt.s32.totalorder %v3604, %v3628
    %vm3645 = vmand %vm3609, %vm3629
    %vm3646 = vmand %vm3610, %vm3630
    %vm3647 = vmand %vm3611, %vm3631
    %vm3648 = vmand %vm3612, %vm3632
    %vm3649 = vmand %vm3613, %vm3633
    %vm3650 = vmand %vm3614, %vm3634
    %vm3651 = vmand %vm3615, %vm3635
    %vm3652 = vmand %vm3616, %vm3636
    %vm3653 = vmand %vm3617, %vm3637
    %vm3654 = vmand %vm3618, %vm3638
    %vm3655 = vmand %vm3619, %vm3639
    %vm3656 = vmand %vm3620, %vm3640
    %vm3657 = vmand %vm3621, %vm3641
    %vm3658 = vmand %vm3622, %vm3642
    %vm3659 = vmand %vm3623, %vm3643
    %vm3660 = vmand %vm3624, %vm3644
    %v3661 = vsel %vm3645, 1, 0
    %v3662 = vsel %vm3646, 1, 0
    %v3663 = vsel %vm3647, 1, 0
    %v3664 = vsel %vm3648, 1, 0
    %v3665 = vsel %vm3649, 1, 0
    %v3666 = vsel %vm3650, 1, 0
    %v3667 = vsel %vm3651, 1, 0
    %v3668 = vsel %vm3652, 1, 0
    %v3669 = vsel %vm3653, 1, 0
    %v3670 = vsel %vm3654, 1, 0
    %v3671 = vsel %vm3655, 1, 0
    %v3672 = vsel %vm3656, 1, 0
    %v3673 = vsel %vm3657, 1, 0
    %v3674 = vsel %vm3658, 1, 0
    %v3675 = vsel %vm3659, 1, 0
    %v3676 = vsel %vm3660, 1, 0
    %v3677 = vcvt.s32.f32 %v3661
    %v3678 = vcvt.s32.f32 %v3662
    %v3679 = vcvt.s32.f32 %v3663
    %v3680 = vcvt.s32.f32 %v3664
    %v3681 = vcvt.s32.f32 %v3665
    %v3682 = vcvt.s32.f32 %v3666
    %v3683 = vcvt.s32.f32 %v3667
    %v3684 = vcvt.s32.f32 %v3668
    %v3685 = vcvt.s32.f32 %v3669
    %v3686 = vcvt.s32.f32 %v3670
    %v3687 = vcvt.s32.f32 %v3671
    %v3688 = vcvt.s32.f32 %v3672
    %v3689 = vcvt.s32.f32 %v3673
    %v3690 = vcvt.s32.f32 %v3674
    %v3691 = vcvt.s32.f32 %v3675
    %v3692 = vcvt.s32.f32 %v3676
    %3693 = vmatprep.subr.mxu0 0.0
    %3694 = vmatpush1.msra.mxu0 %v3538
    %3695 = vmatprep.subr.mxu0 0.0
    %3696 = vmatpush1.msra.mxu0 %v3539
    %3697 = vmatprep.subr.mxu0 0.0
    %3698 = vmatpush1.msra.mxu0 %v3540
    %3699 = vmatprep.subr.mxu0 0.0
    %3700 = vmatpush1.msra.mxu0 %v3541
    %3701 = vmatprep.subr.mxu0 0.0
    %3702 = vmatpush1.msra.mxu0 %v3542
    %3703 = vmatprep.subr.mxu0 0.0
    %3704 = vmatpush1.msra.mxu0 %v3543
    %3705 = vmatprep.subr.mxu0 0.0
    %3706 = vmatpush1.msra.mxu0 %v3544
    %3707 = vmatprep.subr.mxu0 0.0
    %3708 = vmatpush1.msra.mxu0 %v3545
    %3709 = vmatprep.subr.mxu0 0.0
    %3710 = vmatpush1.msra.mxu0 %v3546
    %3711 = vmatprep.subr.mxu0 0.0
    %3712 = vmatpush1.msra.mxu0 %v3547
    %3713 = vmatprep.subr.mxu0 0.0
    %3714 = vmatpush1.msra.mxu0 %v3548
    %3715 = vmatprep.subr.mxu0 0.0
    %3716 = vmatpush1.msra.mxu0 %v3549
    %3717 = vmatprep.subr.mxu0 0.0
    %3718 = vmatpush1.msra.mxu0 %v3550
    %3719 = vmatprep.subr.mxu0 0.0
    %3720 = vmatpush1.msra.mxu0 %v3551
    %3721 = vmatprep.subr.mxu0 0.0
    %3722 = vmatpush1.msra.mxu0 %v3552
    %3723 = vmatprep.subr.mxu0 0.0
    %3724 = vmatpush1.msra.mxu0 %v3553
    %3725 = vmatprep.subr.mxu0 0.0
    %3726 = vmatpush1.msra.mxu0 %v3554
    %3727 = vmatprep.subr.mxu0 0.0
    %3728 = vmatpush1.msra.mxu0 %v3555
    %3729 = vmatprep.subr.mxu0 0.0
    %3730 = vmatpush1.msra.mxu0 %v3556
    %3731 = vmatprep.subr.mxu0 0.0
    %3732 = vmatpush1.msra.mxu0 %v3557
    %3733 = vmatprep.subr.mxu0 0.0
    %3734 = vmatpush1.msra.mxu0 %v3558
    %3735 = vmatprep.subr.mxu0 0.0
    %3736 = vmatpush1.msra.mxu0 %v3559
    %3737 = vmatprep.subr.mxu0 0.0
    %3738 = vmatpush1.msra.mxu0 %v3560
    %3739 = vmatprep.subr.mxu0 0.0
    %3740 = vmatpush1.msra.mxu0 %v3561
    %3741 = vmatprep.subr.mxu0 0.0
    %3742 = vmatpush1.msra.mxu0 %v3562
    %3743 = vmatprep.subr.mxu0 0.0
    %3744 = vmatpush1.msra.mxu0 %v3563
    %3745 = vmatprep.subr.mxu0 0.0
    %3746 = vmatpush1.msra.mxu0 %v3564
    %3747 = vmatprep.subr.mxu0 0.0
    %3748 = vmatpush1.msra.mxu0 %v3565
    %3749 = vmatprep.subr.mxu0 0.0
    %3750 = vmatpush1.msra.mxu0 %v3566
    %3751 = vmatprep.subr.mxu0 0.0
    %3752 = vmatpush1.msra.mxu0 %v3567
    %3753 = vmatprep.subr.mxu0 0.0
    %3754 = vmatpush1.msra.mxu0 %v3568
    %3755 = vmatprep.subr.mxu0 0.0
    %3756 = vmatpush1.msra.mxu0 %v3569
    %3757 = vmatprep.mubr.f32.mxu0 %v3087
    %3758 = vmatmul.mubr.f32.gmra.mrb[0].mxu0 %v3085
    %v3759 = vpop.f32.mrb[0].mxu0
    %v3760 = vadd.f32 0.0, %v3759
    %v3761 = vpop.f32.mrb[0].mxu0
    %3762 = vdwg.mxu0
    %3763 = vmatprep.subr.mxu0 0.0
    %3764 = vmatpush1.msra.mxu0 %v3570
    %3765 = vmatprep.subr.mxu0 0.0
    %3766 = vmatpush1.msra.mxu0 %v3571
    %3767 = vmatprep.subr.mxu0 0.0
    %3768 = vmatpush1.msra.mxu0 %v3572
    %3769 = vmatprep.subr.mxu0 0.0
    %3770 = vmatpush1.msra.mxu0 %v3573
    %3771 = vmatprep.subr.mxu0 0.0
    %3772 = vmatpush1.msra.mxu0 %v3574
    %3773 = vmatprep.subr.mxu0 0.0
    %3774 = vmatpush1.msra.mxu0 %v3575
    %3775 = vmatprep.subr.mxu0 0.0
    %3776 = vmatpush1.msra.mxu0 %v3576
    %3777 = vmatprep.subr.mxu0 0.0
    %3778 = vmatpush1.msra.mxu0 %v3577
    %3779 = vmatprep.subr.mxu0 0.0
    %3780 = vmatpush1.msra.mxu0 %v3578
    %3781 = vmatprep.subr.mxu0 0.0
    %3782 = vmatpush1.msra.mxu0 %v3579
    %3783 = vmatprep.subr.mxu0 0.0
    %3784 = vmatpush1.msra.mxu0 %v3580
    %3785 = vmatprep.subr.mxu0 0.0
    %3786 = vmatpush1.msra.mxu0 %v3581
    %3787 = vmatprep.subr.mxu0 0.0
    %3788 = vmatpush1.msra.mxu0 %v3582
    %3789 = vmatprep.subr.mxu0 0.0
    %3790 = vmatpush1.msra.mxu0 %v3583
    %3791 = vmatprep.subr.mxu0 0.0
    %3792 = vmatpush1.msra.mxu0 %v3584
    %3793 = vmatprep.subr.mxu0 0.0
    %3794 = vmatpush1.msra.mxu0 %v3585
    %3795 = vmatprep.subr.mxu0 0.0
    %3796 = vmatpush1.msra.mxu0 %v3586
    %3797 = vmatprep.subr.mxu0 0.0
    %3798 = vmatpush1.msra.mxu0 %v3587
    %3799 = vmatprep.subr.mxu0 0.0
    %3800 = vmatpush1.msra.mxu0 %v3588
    %3801 = vmatprep.subr.mxu0 0.0
    %3802 = vmatpush1.msra.mxu0 %v3589
    %3803 = vmatprep.subr.mxu0 0.0
    %3804 = vmatpush1.msra.mxu0 %v3590
    %3805 = vmatprep.subr.mxu0 0.0
    %3806 = vmatpush1.msra.mxu0 %v3591
    %3807 = vmatprep.subr.mxu0 0.0
    %3808 = vmatpush1.msra.mxu0 %v3592
    %3809 = vmatprep.subr.mxu0 0.0
    %3810 = vmatpush1.msra.mxu0 %v3593
    %3811 = vmatprep.subr.mxu0 0.0
    %3812 = vmatpush1.msra.mxu0 %v3594
    %3813 = vmatprep.subr.mxu0 0.0
    %3814 = vmatpush1.msra.mxu0 %v3595
    %3815 = vmatprep.subr.mxu0 0.0
    %3816 = vmatpush1.msra.mxu0 %v3596
    %3817 = vmatprep.subr.mxu0 0.0
    %3818 = vmatpush1.msra.mxu0 %v3597
    %3819 = vmatprep.subr.mxu0 0.0
    %3820 = vmatpush1.msra.mxu0 %v3598
    %3821 = vmatprep.subr.mxu0 0.0
    %3822 = vmatpush1.msra.mxu0 %v3599
    %3823 = vmatprep.subr.mxu0 0.0
    %3824 = vmatpush1.msra.mxu0 %v3600
    %3825 = vmatprep.subr.mxu0 0.0
    %3826 = vmatpush1.msra.mxu0 %v3601
    %3827 = vmatprep.mubr.f32.mxu0 %v3128
    %3828 = vmatmul.mubr.f32.gmra.mrb[0].mxu0 %v3126
    %v3829 = vpop.f32.mrb[0].mxu0
    %v3830 = vadd.f32 %v3760, %v3829
    %v3831 = vpop.f32.mrb[0].mxu0
    %3832 = vdwg.mxu0
    %v3833 = vrcp.pop 128.0
    %v3834 = vmul.f32 %v3830, %v3833
    %3835 = vmatprep.subr.mxu0 0.0
    %3836 = vmatpush1.msra.mxu0 %v3538
    %3837 = vmatprep.subr.mxu0 0.0
    %3838 = vmatpush1.msra.mxu0 %v3539
    %3839 = vmatprep.subr.mxu0 0.0
    %3840 = vmatpush1.msra.mxu0 %v3540
    %3841 = vmatprep.subr.mxu0 0.0
    %3842 = vmatpush1.msra.mxu0 %v3541
    %3843 = vmatprep.subr.mxu0 0.0
    %3844 = vmatpush1.msra.mxu0 %v3542
    %3845 = vmatprep.subr.mxu0 0.0
    %3846 = vmatpush1.msra.mxu0 %v3543
    %3847 = vmatprep.subr.mxu0 0.0
    %3848 = vmatpush1.msra.mxu0 %v3544
    %3849 = vmatprep.subr.mxu0 0.0
    %3850 = vmatpush1.msra.mxu0 %v3545
    %3851 = vmatprep.subr.mxu0 0.0
    %3852 = vmatpush1.msra.mxu0 %v3546
    %3853 = vmatprep.subr.mxu0 0.0
    %3854 = vmatpush1.msra.mxu0 %v3547
    %3855 = vmatprep.subr.mxu0 0.0
    %3856 = vmatpush1.msra.mxu0 %v3548
    %3857 = vmatprep.subr.mxu0 0.0
    %3858 = vmatpush1.msra.mxu0 %v3549
    %3859 = vmatprep.subr.mxu0 0.0
    %3860 = vmatpush1.msra.mxu0 %v3550
    %3861 = vmatprep.subr.mxu0 0.0
    %3862 = vmatpush1.msra.mxu0 %v3551
    %3863 = vmatprep.subr.mxu0 0.0
    %3864 = vmatpush1.msra.mxu0 %v3552
    %3865 = vmatprep.subr.mxu0 0.0
    %3866 = vmatpush1.msra.mxu0 %v3553
    %3867 = vmatprep.subr.mxu0 0.0
    %3868 = vmatpush1.msra.mxu0 %v3554
    %3869 = vmatprep.subr.mxu0 0.0
    %3870 = vmatpush1.msra.mxu0 %v3555
    %3871 = vmatprep.subr.mxu0 0.0
    %3872 = vmatpush1.msra.mxu0 %v3556
    %3873 = vmatprep.subr.mxu0 0.0
    %3874 = vmatpush1.msra.mxu0 %v3557
    %3875 = vmatprep.subr.mxu0 0.0
    %3876 = vmatpush1.msra.mxu0 %v3558
    %3877 = vmatprep.subr.mxu0 0.0
    %3878 = vmatpush1.msra.mxu0 %v3559
    %3879 = vmatprep.subr.mxu0 0.0
    %3880 = vmatpush1.msra.mxu0 %v3560
    %3881 = vmatprep.subr.mxu0 0.0
    %3882 = vmatpush1.msra.mxu0 %v3561
    %3883 = vmatprep.subr.mxu0 0.0
    %3884 = vmatpush1.msra.mxu0 %v3562
    %3885 = vmatprep.subr.mxu0 0.0
    %3886 = vmatpush1.msra.mxu0 %v3563
    %3887 = vmatprep.subr.mxu0 0.0
    %3888 = vmatpush1.msra.mxu0 %v3564
    %3889 = vmatprep.subr.mxu0 0.0
    %3890 = vmatpush1.msra.mxu0 %v3565
    %3891 = vmatprep.subr.mxu0 0.0
    %3892 = vmatpush1.msra.mxu0 %v3566
    %3893 = vmatprep.subr.mxu0 0.0
    %3894 = vmatpush1.msra.mxu0 %v3567
    %3895 = vmatprep.subr.mxu0 0.0
    %3896 = vmatpush1.msra.mxu0 %v3568
    %3897 = vmatprep.subr.mxu0 0.0
    %3898 = vmatpush1.msra.mxu0 %v3569
    %3899 = vmatprep.mubr.f32.mxu0 %v3173
    %3900 = vmatmul.mubr.f32.gmra.mrb[0].mxu0 %v3171
    %v3901 = vpop.f32.mrb[0].mxu0
    %v3902 = vadd.f32 0.0, %v3901
    %v3903 = vpop.f32.mrb[0].mxu0
    %3904 = vdwg.mxu0
    %3905 = vmatprep.subr.mxu0 0.0
    %3906 = vmatpush1.msra.mxu0 %v3570
    %3907 = vmatprep.subr.mxu0 0.0
    %3908 = vmatpush1.msra.mxu0 %v3571
    %3909 = vmatprep.subr.mxu0 0.0
    %3910 = vmatpush1.msra.mxu0 %v3572
    %3911 = vmatprep.subr.mxu0 0.0
    %3912 = vmatpush1.msra.mxu0 %v3573
    %3913 = vmatprep.subr.mxu0 0.0
    %3914 = vmatpush1.msra.mxu0 %v3574
    %3915 = vmatprep.subr.mxu0 0.0
    %3916 = vmatpush1.msra.mxu0 %v3575
    %3917 = vmatprep.subr.mxu0 0.0
    %3918 = vmatpush1.msra.mxu0 %v3576
    %3919 = vmatprep.subr.mxu0 0.0
    %3920 = vmatpush1.msra.mxu0 %v3577
    %3921 = vmatprep.subr.mxu0 0.0
    %3922 = vmatpush1.msra.mxu0 %v3578
    %3923 = vmatprep.subr.mxu0 0.0
    %3924 = vmatpush1.msra.mxu0 %v3579
    %3925 = vmatprep.subr.mxu0 0.0
    %3926 = vmatpush1.msra.mxu0 %v3580
    %3927 = vmatprep.subr.mxu0 0.0
    %3928 = vmatpush1.msra.mxu0 %v3581
    %3929 = vmatprep.subr.mxu0 0.0
    %3930 = vmatpush1.msra.mxu0 %v3582
    %3931 = vmatprep.subr.mxu0 0.0
    %3932 = vmatpush1.msra.mxu0 %v3583
    %3933 = vmatprep.subr.mxu0 0.0
    %3934 = vmatpush1.msra.mxu0 %v3584
    %3935 = vmatprep.subr.mxu0 0.0
    %3936 = vmatpush1.msra.mxu0 %v3585
    %3937 = vmatprep.subr.mxu0 0.0
    %3938 = vmatpush1.msra.mxu0 %v3586
    %3939 = vmatprep.subr.mxu0 0.0
    %3940 = vmatpush1.msra.mxu0 %v3587
    %3941 = vmatprep.subr.mxu0 0.0
    %3942 = vmatpush1.msra.mxu0 %v3588
    %3943 = vmatprep.subr.mxu0 0.0
    %3944 = vmatpush1.msra.mxu0 %v3589
    %3945 = vmatprep.subr.mxu0 0.0
    %3946 = vmatpush1.msra.mxu0 %v3590
    %3947 = vmatprep.subr.mxu0 0.0
    %3948 = vmatpush1.msra.mxu0 %v3591
    %3949 = vmatprep.subr.mxu0 0.0
    %3950 = vmatpush1.msra.mxu0 %v3592
    %3951 = vmatprep.subr.mxu0 0.0
    %3952 = vmatpush1.msra.mxu0 %v3593
    %3953 = vmatprep.subr.mxu0 0.0
    %3954 = vmatpush1.msra.mxu0 %v3594
    %3955 = vmatprep.subr.mxu0 0.0
    %3956 = vmatpush1.msra.mxu0 %v3595
    %3957 = vmatprep.subr.mxu0 0.0
    %3958 = vmatpush1.msra.mxu0 %v3596
    %3959 = vmatprep.subr.mxu0 0.0
    %3960 = vmatpush1.msra.mxu0 %v3597
    %3961 = vmatprep.subr.mxu0 0.0
    %3962 = vmatpush1.msra.mxu0 %v3598
    %3963 = vmatprep.subr.mxu0 0.0
    %3964 = vmatpush1.msra.mxu0 %v3599
    %3965 = vmatprep.subr.mxu0 0.0
    %3966 = vmatpush1.msra.mxu0 %v3600
    %3967 = vmatprep.subr.mxu0 0.0
    %3968 = vmatpush1.msra.mxu0 %v3601
    %3969 = vmatprep.mubr.f32.mxu0 %v3214
    %3970 = vmatmul.mubr.f32.gmra.mrb[0].mxu0 %v3212
    %v3971 = vpop.f32.mrb[0].mxu0
    %v3972 = vadd.f32 %v3902, %v3971
    %v3973 = vpop.f32.mrb[0].mxu0
    %3974 = vdwg.mxu0
    %v3975 = vmul.f32 %v3972, %v3833
    %v3976 = vmul.f32 %v3834, %v3834
    %v3977 = vsub.f32 %v3975, %v3976
    %v3978 = vmax.f32 %v3977, 0.0
    %v3979 = vadd.f32 %v3978, 1e-05
    %v3980 = vrsqrt.pop %v3979
    %vm3981 = vcmask 261120
    %v3983 = vsel %vm3981, %v3980, 0
    %3985 = vmatprep.subr.mxu0 %v3678
    %3986 = vmatpush1.msra.mxu0 %v3677
    %3987 = vmatprep.subr.mxu0 %v3682
    %3988 = vmatpush1.msra.mxu0 %v3681
    %3989 = vmatprep.subr.mxu0 %v3686
    %3990 = vmatpush1.msra.mxu0 %v3685
    %3991 = vmatprep.subr.mxu0 %v3690
    %3992 = vmatpush1.msra.mxu0 %v3689
    %3993 = vmatprep.subr.mxu0 0.0
    %3994 = vmatpush1.msra.mxu0 0.0
    %3995 = vmatprep.subr.mxu0 0.0
    %3996 = vmatpush1.msra.mxu0 0.0
    %3997 = vmatprep.subr.mxu0 0.0
    %3998 = vmatpush1.msra.mxu0 0.0
    %3999 = vmatprep.subr.mxu0 0.0
    %4000 = vmatpush1.msra.mxu0 0.0
    %4001 = vmatprep.subr.mxu0 0.0
    %4002 = vmatpush1.msra.mxu0 0.0
    %4003 = vmatprep.subr.mxu0 0.0
    %4004 = vmatpush1.msra.mxu0 0.0
    %4005 = vmatprep.subr.mxu0 0.0
    %4006 = vmatpush1.msra.mxu0 0.0
    %4007 = vmatprep.subr.mxu0 0.0
    %4008 = vmatpush1.msra.mxu0 0.0
    %4009 = vmatprep.subr.mxu0 0.0
    %4010 = vmatpush1.msra.mxu0 0.0
    %4011 = vmatprep.subr.mxu0 0.0
    %4012 = vmatpush1.msra.mxu0 0.0
    %4013 = vmatprep.subr.mxu0 0.0
    %4014 = vmatpush1.msra.mxu0 0.0
    %4015 = vmatprep.subr.mxu0 0.0
    %4016 = vmatpush1.msra.mxu0 0.0
    %4017 = vmatprep.subr.mxu0 0.0
    %4018 = vmatpush1.msra.mxu0 0.0
    %4019 = vmatprep.subr.mxu0 0.0
    %4020 = vmatpush1.msra.mxu0 0.0
    %4021 = vmatprep.subr.mxu0 0.0
    %4022 = vmatpush1.msra.mxu0 0.0
    %4023 = vmatprep.subr.mxu0 0.0
    %4024 = vmatpush1.msra.mxu0 0.0
    %4025 = vmatprep.subr.mxu0 0.0
    %4026 = vmatpush1.msra.mxu0 0.0
    %4027 = vmatprep.subr.mxu0 0.0
    %4028 = vmatpush1.msra.mxu0 0.0
    %4029 = vmatprep.subr.mxu0 0.0
    %4030 = vmatpush1.msra.mxu0 0.0
    %4031 = vmatprep.subr.mxu0 0.0
    %4032 = vmatpush1.msra.mxu0 0.0
    %4033 = vmatprep.subr.mxu0 0.0
    %4034 = vmatpush1.msra.mxu0 0.0
    %4035 = vmatprep.subr.mxu0 0.0
    %4036 = vmatpush1.msra.mxu0 0.0
    %4037 = vmatprep.subr.mxu0 0.0
    %4038 = vmatpush1.msra.mxu0 0.0
    %4039 = vmatprep.subr.mxu0 0.0
    %4040 = vmatpush1.msra.mxu0 0.0
    %4041 = vmatprep.subr.mxu0 0.0
    %4042 = vmatpush1.msra.mxu0 0.0
    %4043 = vmatprep.subr.mxu0 0.0
    %4044 = vmatpush1.msra.mxu0 0.0
    %4045 = vmatprep.subr.mxu0 0.0
    %4046 = vmatpush1.msra.mxu0 0.0
    %4047 = vmatprep.subr.mxu0 0.0
    %4048 = vmatpush1.msra.mxu0 0.0
    %4049 = vmatprep.mubr.f32.mxu0 0.0
    %4050 = vmatmul.mubr.f32.gmra.mrb[0].mxu0 %v3983
    %v4051 = vpop.f32.mrb[0].mxu0
    %v4052 = vadd.f32 0.0, %v4051
    %v4053 = vpop.f32.mrb[0].mxu0
    %v4054 = vadd.f32 0.0, %v4053
    %4055 = vdwg.mxu0
    %4056 = vmatprep.subr.mxu0 %v3680
    %4057 = vmatpush1.msra.mxu0 %v3679
    %4058 = vmatprep.subr.mxu0 %v3684
    %4059 = vmatpush1.msra.mxu0 %v3683
    %4060 = vmatprep.subr.mxu0 %v3688
    %4061 = vmatpush1.msra.mxu0 %v3687
    %4062 = vmatprep.subr.mxu0 %v3692
    %4063 = vmatpush1.msra.mxu0 %v3691
    %4064 = vmatprep.subr.mxu0 0.0
    %4065 = vmatpush1.msra.mxu0 0.0
    %4066 = vmatprep.subr.mxu0 0.0
    %4067 = vmatpush1.msra.mxu0 0.0
    %4068 = vmatprep.subr.mxu0 0.0
    %4069 = vmatpush1.msra.mxu0 0.0
    %4070 = vmatprep.subr.mxu0 0.0
    %4071 = vmatpush1.msra.mxu0 0.0
    %4072 = vmatprep.subr.mxu0 0.0
    %4073 = vmatpush1.msra.mxu0 0.0
    %4074 = vmatprep.subr.mxu0 0.0
    %4075 = vmatpush1.msra.mxu0 0.0
    %4076 = vmatprep.subr.mxu0 0.0
    %4077 = vmatpush1.msra.mxu0 0.0
    %4078 = vmatprep.subr.mxu0 0.0
    %4079 = vmatpush1.msra.mxu0 0.0
    %4080 = vmatprep.subr.mxu0 0.0
    %4081 = vmatpush1.msra.mxu0 0.0
    %4082 = vmatprep.subr.mxu0 0.0
    %4083 = vmatpush1.msra.mxu0 0.0
    %4084 = vmatprep.subr.mxu0 0.0
    %4085 = vmatpush1.msra.mxu0 0.0
    %4086 = vmatprep.subr.mxu0 0.0
    %4087 = vmatpush1.msra.mxu0 0.0
    %4088 = vmatprep.subr.mxu0 0.0
    %4089 = vmatpush1.msra.mxu0 0.0
    %4090 = vmatprep.subr.mxu0 0.0
    %4091 = vmatpush1.msra.mxu0 0.0
    %4092 = vmatprep.subr.mxu0 0.0
    %4093 = vmatpush1.msra.mxu0 0.0
    %4094 = vmatprep.subr.mxu0 0.0
    %4095 = vmatpush1.msra.mxu0 0.0
    %4096 = vmatprep.subr.mxu0 0.0
    %4097 = vmatpush1.msra.mxu0 0.0
    %4098 = vmatprep.subr.mxu0 0.0
    %4099 = vmatpush1.msra.mxu0 0.0
    %4100 = vmatprep.subr.mxu0 0.0
    %4101 = vmatpush1.msra.mxu0 0.0
    %4102 = vmatprep.subr.mxu0 0.0
    %4103 = vmatpush1.msra.mxu0 0.0
    %4104 = vmatprep.subr.mxu0 0.0
    %4105 = vmatpush1.msra.mxu0 0.0
    %4106 = vmatprep.subr.mxu0 0.0
    %4107 = vmatpush1.msra.mxu0 0.0
    %4108 = vmatprep.subr.mxu0 0.0
    %4109 = vmatpush1.msra.mxu0 0.0
    %4110 = vmatprep.subr.mxu0 0.0
    %4111 = vmatpush1.msra.mxu0 0.0
    %4112 = vmatprep.subr.mxu0 0.0
    %4113 = vmatpush1.msra.mxu0 0.0
    %4114 = vmatprep.subr.mxu0 0.0
    %4115 = vmatpush1.msra.mxu0 0.0
    %4116 = vmatprep.subr.mxu0 0.0
    %4117 = vmatpush1.msra.mxu0 0.0
    %4118 = vmatprep.subr.mxu0 0.0
    %4119 = vmatpush1.msra.mxu0 0.0
    %4120 = vmatprep.mubr.f32.mxu0 0.0
    %4121 = vmatmul.mubr.f32.gmra.mrb[0].mxu0 %v3983
    %v4122 = vpop.f32.mrb[0].mxu0
    %v4123 = vadd.f32 0.0, %v4122
    %v4124 = vpop.f32.mrb[0].mxu0
    %v4125 = vadd.f32 0.0, %v4124
    %4126 = vdwg.mxu0
    %v4128 = vsel %vm3981, %v3834, 0
    %4130 = vmatprep.subr.mxu0 %v3678
    %4131 = vmatpush1.msra.mxu0 %v3677
    %4132 = vmatprep.subr.mxu0 %v3682
    %4133 = vmatpush1.msra.mxu0 %v3681
    %4134 = vmatprep.subr.mxu0 %v3686
    %4135 = vmatpush1.msra.mxu0 %v3685
    %4136 = vmatprep.subr.mxu0 %v3690
    %4137 = vmatpush1.msra.mxu0 %v3689
    %4138 = vmatprep.subr.mxu0 0.0
    %4139 = vmatpush1.msra.mxu0 0.0
    %4140 = vmatprep.subr.mxu0 0.0
    %4141 = vmatpush1.msra.mxu0 0.0
    %4142 = vmatprep.subr.mxu0 0.0
    %4143 = vmatpush1.msra.mxu0 0.0
    %4144 = vmatprep.subr.mxu0 0.0
    %4145 = vmatpush1.msra.mxu0 0.0
    %4146 = vmatprep.subr.mxu0 0.0
    %4147 = vmatpush1.msra.mxu0 0.0
    %4148 = vmatprep.subr.mxu0 0.0
    %4149 = vmatpush1.msra.mxu0 0.0
    %4150 = vmatprep.subr.mxu0 0.0
    %4151 = vmatpush1.msra.mxu0 0.0
    %4152 = vmatprep.subr.mxu0 0.0
    %4153 = vmatpush1.msra.mxu0 0.0
    %4154 = vmatprep.subr.mxu0 0.0
    %4155 = vmatpush1.msra.mxu0 0.0
    %4156 = vmatprep.subr.mxu0 0.0
    %4157 = vmatpush1.msra.mxu0 0.0
    %4158 = vmatprep.subr.mxu0 0.0
    %4159 = vmatpush1.msra.mxu0 0.0
    %4160 = vmatprep.subr.mxu0 0.0
    %4161 = vmatpush1.msra.mxu0 0.0
    %4162 = vmatprep.subr.mxu0 0.0
    %4163 = vmatpush1.msra.mxu0 0.0
    %4164 = vmatprep.subr.mxu0 0.0
    %4165 = vmatpush1.msra.mxu0 0.0
    %4166 = vmatprep.subr.mxu0 0.0
    %4167 = vmatpush1.msra.mxu0 0.0
    %4168 = vmatprep.subr.mxu0 0.0
    %4169 = vmatpush1.msra.mxu0 0.0
    %4170 = vmatprep.subr.mxu0 0.0
    %4171 = vmatpush1.msra.mxu0 0.0
    %4172 = vmatprep.subr.mxu0 0.0
    %4173 = vmatpush1.msra.mxu0 0.0
    %4174 = vmatprep.subr.mxu0 0.0
    %4175 = vmatpush1.msra.mxu0 0.0
    %4176 = vmatprep.subr.mxu0 0.0
    %4177 = vmatpush1.msra.mxu0 0.0
    %4178 = vmatprep.subr.mxu0 0.0
    %4179 = vmatpush1.msra.mxu0 0.0
    %4180 = vmatprep.subr.mxu0 0.0
    %4181 = vmatpush1.msra.mxu0 0.0
    %4182 = vmatprep.subr.mxu0 0.0
    %4183 = vmatpush1.msra.mxu0 0.0
    %4184 = vmatprep.subr.mxu0 0.0
    %4185 = vmatpush1.msra.mxu0 0.0
    %4186 = vmatprep.subr.mxu0 0.0
    %4187 = vmatpush1.msra.mxu0 0.0
    %4188 = vmatprep.subr.mxu0 0.0
    %4189 = vmatpush1.msra.mxu0 0.0
    %4190 = vmatprep.subr.mxu0 0.0
    %4191 = vmatpush1.msra.mxu0 0.0
    %4192 = vmatprep.subr.mxu0 0.0
    %4193 = vmatpush1.msra.mxu0 0.0
    %4194 = vmatprep.mubr.f32.mxu0 0.0
    %4195 = vmatmul.mubr.f32.gmra.mrb[0].mxu0 %v4128
    %v4196 = vpop.f32.mrb[0].mxu0
    %v4197 = vadd.f32 0.0, %v4196
    %v4198 = vpop.f32.mrb[0].mxu0
    %v4199 = vadd.f32 0.0, %v4198
    %4200 = vdwg.mxu0
    %4201 = vmatprep.subr.mxu0 %v3680
    %4202 = vmatpush1.msra.mxu0 %v3679
    %4203 = vmatprep.subr.mxu0 %v3684
    %4204 = vmatpush1.msra.mxu0 %v3683
    %4205 = vmatprep.subr.mxu0 %v3688
    %4206 = vmatpush1.msra.mxu0 %v3687
    %4207 = vmatprep.subr.mxu0 %v3692
    %4208 = vmatpush1.msra.mxu0 %v3691
    %4209 = vmatprep.subr.mxu0 0.0
    %4210 = vmatpush1.msra.mxu0 0.0
    %4211 = vmatprep.subr.mxu0 0.0
    %4212 = vmatpush1.msra.mxu0 0.0
    %4213 = vmatprep.subr.mxu0 0.0
    %4214 = vmatpush1.msra.mxu0 0.0
    %4215 = vmatprep.subr.mxu0 0.0
    %4216 = vmatpush1.msra.mxu0 0.0
    %4217 = vmatprep.subr.mxu0 0.0
    %4218 = vmatpush1.msra.mxu0 0.0
    %4219 = vmatprep.subr.mxu0 0.0
    %4220 = vmatpush1.msra.mxu0 0.0
    %4221 = vmatprep.subr.mxu0 0.0
    %4222 = vmatpush1.msra.mxu0 0.0
    %4223 = vmatprep.subr.mxu0 0.0
    %4224 = vmatpush1.msra.mxu0 0.0
    %4225 = vmatprep.subr.mxu0 0.0
    %4226 = vmatpush1.msra.mxu0 0.0
    %4227 = vmatprep.subr.mxu0 0.0
    %4228 = vmatpush1.msra.mxu0 0.0
    %4229 = vmatprep.subr.mxu0 0.0
    %4230 = vmatpush1.msra.mxu0 0.0
    %4231 = vmatprep.subr.mxu0 0.0
    %4232 = vmatpush1.msra.mxu0 0.0
    %4233 = vmatprep.subr.mxu0 0.0
    %4234 = vmatpush1.msra.mxu0 0.0
    %4235 = vmatprep.subr.mxu0 0.0
    %4236 = vmatpush1.msra.mxu0 0.0
    %4237 = vmatprep.subr.mxu0 0.0
    %4238 = vmatpush1.msra.mxu0 0.0
    %4239 = vmatprep.subr.mxu0 0.0
    %4240 = vmatpush1.msra.mxu0 0.0
    %4241 = vmatprep.subr.mxu0 0.0
    %4242 = vmatpush1.msra.mxu0 0.0
    %4243 = vmatprep.subr.mxu0 0.0
    %4244 = vmatpush1.msra.mxu0 0.0
    %4245 = vmatprep.subr.mxu0 0.0
    %4246 = vmatpush1.msra.mxu0 0.0
    %4247 = vmatprep.subr.mxu0 0.0
    %4248 = vmatpush1.msra.mxu0 0.0
    %4249 = vmatprep.subr.mxu0 0.0
    %4250 = vmatpush1.msra.mxu0 0.0
    %4251 = vmatprep.subr.mxu0 0.0
    %4252 = vmatpush1.msra.mxu0 0.0
    %4253 = vmatprep.subr.mxu0 0.0
    %4254 = vmatpush1.msra.mxu0 0.0
    %4255 = vmatprep.subr.mxu0 0.0
    %4256 = vmatpush1.msra.mxu0 0.0
    %4257 = vmatprep.subr.mxu0 0.0
    %4258 = vmatpush1.msra.mxu0 0.0
    %4259 = vmatprep.subr.mxu0 0.0
    %4260 = vmatpush1.msra.mxu0 0.0
    %4261 = vmatprep.subr.mxu0 0.0
    %4262 = vmatpush1.msra.mxu0 0.0
    %4263 = vmatprep.subr.mxu0 0.0
    %4264 = vmatpush1.msra.mxu0 0.0
    %4265 = vmatprep.mubr.f32.mxu0 0.0
    %4266 = vmatmul.mubr.f32.gmra.mrb[0].mxu0 %v4128
    %v4267 = vpop.f32.mrb[0].mxu0
    %v4268 = vadd.f32 0.0, %v4267
    %v4269 = vpop.f32.mrb[0].mxu0
    %v4270 = vadd.f32 0.0, %v4269
    %4271 = vdwg.mxu0
    %v4272 = vlaneseq
    %v4273 = vshrl.u32 %v4272, 7
    %v4274 = vsub.s32 1, %v4273
    %v4275 = vrot.slane %v55, %v4274
    %v4276 = vlaneseq
    %v4277 = vshrl.u32 %v4276, 7
    %v4278 = vsub.s32 5, %v4277
    %v4279 = vrot.slane %v55, %v4278
    %v4280 = vlaneseq
    %v4281 = vshrl.u32 %v4280, 7
    %v4282 = vsub.s32 1, %v4281
    %v4283 = vrot.slane %v56, %v4282
    %v4284 = vlaneseq
    %v4285 = vshrl.u32 %v4284, 7
    %v4286 = vsub.s32 5, %v4285
    %v4287 = vrot.slane %v56, %v4286
    %v4292 = vlaneseq
    %v4293 = vshrl.u32 %v4292, 7
    %v4294 = vsub.s32 1, %v4293
    %v4295 = vrot.slane %v4275, %v4294
    %v4296 = vlaneseq
    %v4297 = vshrl.u32 %v4296, 7
    %v4298 = vsub.s32 1, %v4297
    %v4299 = vrot.slane %v4279, %v4298
    %v4300 = vlaneseq
    %v4301 = vshrl.u32 %v4300, 7
    %v4302 = vsub.s32 1, %v4301
    %v4303 = vrot.slane %v4283, %v4302
    %v4304 = vlaneseq
    %v4305 = vshrl.u32 %v4304, 7
    %v4306 = vsub.s32 1, %v4305
    %v4307 = vrot.slane %v4287, %v4306
    %v4308 = vmul.f32 %v4052, %v4295
    %v4309 = vmul.f32 %v4054, %v4299
    %v4310 = vmul.f32 %v4123, %v4303
    %v4311 = vmul.f32 %v4125, %v4307
    %v4312 = vmul.f32 %v4197, %v4308
    %v4313 = vmul.f32 %v4199, %v4309
    %v4314 = vmul.f32 %v4268, %v4310
    %v4315 = vmul.f32 %v4270, %v4311
    %v4316 = vlaneseq
    %v4317 = vshrl.u32 %v4316, 7
    %v4318 = vsub.s32 2, %v4317
    %v4319 = vrot.slane %v55, %v4318
    %v4320 = vlaneseq
    %v4321 = vshrl.u32 %v4320, 7
    %v4322 = vsub.s32 6, %v4321
    %v4323 = vrot.slane %v55, %v4322
    %v4324 = vlaneseq
    %v4325 = vshrl.u32 %v4324, 7
    %v4326 = vsub.s32 2, %v4325
    %v4327 = vrot.slane %v56, %v4326
    %v4328 = vlaneseq
    %v4329 = vshrl.u32 %v4328, 7
    %v4330 = vsub.s32 6, %v4329
    %v4331 = vrot.slane %v56, %v4330
    %v4336 = vlaneseq
    %v4337 = vshrl.u32 %v4336, 7
    %v4338 = vsub.s32 2, %v4337
    %v4339 = vrot.slane %v4319, %v4338
    %v4340 = vlaneseq
    %v4341 = vshrl.u32 %v4340, 7
    %v4342 = vsub.s32 2, %v4341
    %v4343 = vrot.slane %v4323, %v4342
    %v4344 = vlaneseq
    %v4345 = vshrl.u32 %v4344, 7
    %v4346 = vsub.s32 2, %v4345
    %v4347 = vrot.slane %v4327, %v4346
    %v4348 = vlaneseq
    %v4349 = vshrl.u32 %v4348, 7
    %v4350 = vsub.s32 2, %v4349
    %v4351 = vrot.slane %v4331, %v4350
    %v4352 = vsub.f32 %v4339, %v4312
    %v4353 = vsub.f32 %v4343, %v4313
    %v4354 = vsub.f32 %v4347, %v4314
    %v4355 = vsub.f32 %v4351, %v4315
    %vm4356 = vcmp.ge.s32.totalorder %v1315, %v1319
    %vm4357 = vcmp.ge.s32.totalorder %v1316, %v1319
    %v4358 = vadd.s32 %v1319, 8
    %vm4359 = vcmp.lt.s32.totalorder %v1315, %v4358
    %vm4360 = vcmp.lt.s32.totalorder %v1316, %v4358
    %vm4361 = vmand %vm4356, %vm4359
    %vm4362 = vmand %vm4357, %vm4360
    %v4363 = vsel %vm4361, 1, 0
    %v4364 = vsel %vm4362, 1, 0
    %v4365 = vcvt.s32.f32 %v4363
    %v4366 = vcvt.s32.f32 %v4364
    %v4368 = vsel %vm1327, %v4365, 0
    %v4371 = vsel %vm1327, %v4366, 0
    %4373 = vmatprep.subr.mxu0 %v4309
    %4374 = vmatpush1.msra.mxu0 %v4308
    %4375 = vmatprep.subr.mxu0 0.0
    %4376 = vmatpush1.msra.mxu0 0.0
    %4377 = vmatprep.subr.mxu0 0.0
    %4378 = vmatpush1.msra.mxu0 0.0
    %4379 = vmatprep.subr.mxu0 0.0
    %4380 = vmatpush1.msra.mxu0 0.0
    %4381 = vmatprep.subr.mxu0 0.0
    %4382 = vmatpush1.msra.mxu0 0.0
    %4383 = vmatprep.subr.mxu0 0.0
    %4384 = vmatpush1.msra.mxu0 0.0
    %4385 = vmatprep.subr.mxu0 0.0
    %4386 = vmatpush1.msra.mxu0 0.0
    %4387 = vmatprep.subr.mxu0 0.0
    %4388 = vmatpush1.msra.mxu0 0.0
    %4389 = vmatprep.subr.mxu0 0.0
    %4390 = vmatpush1.msra.mxu0 0.0
    %4391 = vmatprep.subr.mxu0 0.0
    %4392 = vmatpush1.msra.mxu0 0.0
    %4393 = vmatprep.subr.mxu0 0.0
    %4394 = vmatpush1.msra.mxu0 0.0
    %4395 = vmatprep.subr.mxu0 0.0
    %4396 = vmatpush1.msra.mxu0 0.0
    %4397 = vmatprep.subr.mxu0 0.0
    %4398 = vmatpush1.msra.mxu0 0.0
    %4399 = vmatprep.subr.mxu0 0.0
    %4400 = vmatpush1.msra.mxu0 0.0
    %4401 = vmatprep.subr.mxu0 0.0
    %4402 = vmatpush1.msra.mxu0 0.0
    %4403 = vmatprep.subr.mxu0 0.0
    %4404 = vmatpush1.msra.mxu0 0.0
    %4405 = vmatprep.subr.mxu0 0.0
    %4406 = vmatpush1.msra.mxu0 0.0
    %4407 = vmatprep.subr.mxu0 0.0
    %4408 = vmatpush1.msra.mxu0 0.0
    %4409 = vmatprep.subr.mxu0 0.0
    %4410 = vmatpush1.msra.mxu0 0.0
    %4411 = vmatprep.subr.mxu0 0.0
    %4412 = vmatpush1.msra.mxu0 0.0
    %4413 = vmatprep.subr.mxu0 0.0
    %4414 = vmatpush1.msra.mxu0 0.0
    %4415 = vmatprep.subr.mxu0 0.0
    %4416 = vmatpush1.msra.mxu0 0.0
    %4417 = vmatprep.subr.mxu0 0.0
    %4418 = vmatpush1.msra.mxu0 0.0
    %4419 = vmatprep.subr.mxu0 0.0
    %4420 = vmatpush1.msra.mxu0 0.0
    %4421 = vmatprep.subr.mxu0 0.0
    %4422 = vmatpush1.msra.mxu0 0.0
    %4423 = vmatprep.subr.mxu0 0.0
    %4424 = vmatpush1.msra.mxu0 0.0
    %4425 = vmatprep.subr.mxu0 0.0
    %4426 = vmatpush1.msra.mxu0 0.0
    %4427 = vmatprep.subr.mxu0 0.0
    %4428 = vmatpush1.msra.mxu0 0.0
    %4429 = vmatprep.subr.mxu0 0.0
    %4430 = vmatpush1.msra.mxu0 0.0
    %4431 = vmatprep.subr.mxu0 0.0
    %4432 = vmatpush1.msra.mxu0 0.0
    %4433 = vmatprep.subr.mxu0 0.0
    %4434 = vmatpush1.msra.mxu0 0.0
    %4435 = vmatprep.subr.mxu0 0.0
    %4436 = vmatpush1.msra.mxu0 0.0
    %4437 = vmatprep.mubr.f32.mxu0 0.0
    %4438 = vmatmul.mubr.f32.gmra.mrb[0].mxu0 %v4368
    %v4439 = vpop.f32.mrb[0].mxu0
    %v4440 = vadd.f32 0.0, %v4439
    %v4441 = vpop.f32.mrb[0].mxu0
    %v4442 = vadd.f32 0.0, %v4441
    %4443 = vmatprep.mubr.f32.mxu0 0.0
    %4444 = vmatmul.mubr.f32.gmra.mrb[0].mxu0 %v4371
    %v4445 = vpop.f32.mrb[0].mxu0
    %v4446 = vadd.f32 0.0, %v4445
    %v4447 = vpop.f32.mrb[0].mxu0
    %v4448 = vadd.f32 0.0, %v4447
    %4449 = vdwg.mxu0
    %4450 = vmatprep.subr.mxu0 %v4311
    %4451 = vmatpush1.msra.mxu0 %v4310
    %4452 = vmatprep.subr.mxu0 0.0
    %4453 = vmatpush1.msra.mxu0 0.0
    %4454 = vmatprep.subr.mxu0 0.0
    %4455 = vmatpush1.msra.mxu0 0.0
    %4456 = vmatprep.subr.mxu0 0.0
    %4457 = vmatpush1.msra.mxu0 0.0
    %4458 = vmatprep.subr.mxu0 0.0
    %4459 = vmatpush1.msra.mxu0 0.0
    %4460 = vmatprep.subr.mxu0 0.0
    %4461 = vmatpush1.msra.mxu0 0.0
    %4462 = vmatprep.subr.mxu0 0.0
    %4463 = vmatpush1.msra.mxu0 0.0
    %4464 = vmatprep.subr.mxu0 0.0
    %4465 = vmatpush1.msra.mxu0 0.0
    %4466 = vmatprep.subr.mxu0 0.0
    %4467 = vmatpush1.msra.mxu0 0.0
    %4468 = vmatprep.subr.mxu0 0.0
    %4469 = vmatpush1.msra.mxu0 0.0
    %4470 = vmatprep.subr.mxu0 0.0
    %4471 = vmatpush1.msra.mxu0 0.0
    %4472 = vmatprep.subr.mxu0 0.0
    %4473 = vmatpush1.msra.mxu0 0.0
    %4474 = vmatprep.subr.mxu0 0.0
    %4475 = vmatpush1.msra.mxu0 0.0
    %4476 = vmatprep.subr.mxu0 0.0
    %4477 = vmatpush1.msra.mxu0 0.0
    %4478 = vmatprep.subr.mxu0 0.0
    %4479 = vmatpush1.msra.mxu0 0.0
    %4480 = vmatprep.subr.mxu0 0.0
    %4481 = vmatpush1.msra.mxu0 0.0
    %4482 = vmatprep.subr.mxu0 0.0
    %4483 = vmatpush1.msra.mxu0 0.0
    %4484 = vmatprep.subr.mxu0 0.0
    %4485 = vmatpush1.msra.mxu0 0.0
    %4486 = vmatprep.subr.mxu0 0.0
    %4487 = vmatpush1.msra.mxu0 0.0
    %4488 = vmatprep.subr.mxu0 0.0
    %4489 = vmatpush1.msra.mxu0 0.0
    %4490 = vmatprep.subr.mxu0 0.0
    %4491 = vmatpush1.msra.mxu0 0.0
    %4492 = vmatprep.subr.mxu0 0.0
    %4493 = vmatpush1.msra.mxu0 0.0
    %4494 = vmatprep.subr.mxu0 0.0
    %4495 = vmatpush1.msra.mxu0 0.0
    %4496 = vmatprep.subr.mxu0 0.0
    %4497 = vmatpush1.msra.mxu0 0.0
    %4498 = vmatprep.subr.mxu0 0.0
    %4499 = vmatpush1.msra.mxu0 0.0
    %4500 = vmatprep.subr.mxu0 0.0
    %4501 = vmatpush1.msra.mxu0 0.0
    %4502 = vmatprep.subr.mxu0 0.0
    %4503 = vmatpush1.msra.mxu0 0.0
    %4504 = vmatprep.subr.mxu0 0.0
    %4505 = vmatpush1.msra.mxu0 0.0
    %4506 = vmatprep.subr.mxu0 0.0
    %4507 = vmatpush1.msra.mxu0 0.0
    %4508 = vmatprep.subr.mxu0 0.0
    %4509 = vmatpush1.msra.mxu0 0.0
    %4510 = vmatprep.subr.mxu0 0.0
    %4511 = vmatpush1.msra.mxu0 0.0
    %4512 = vmatprep.subr.mxu0 0.0
    %4513 = vmatpush1.msra.mxu0 0.0
    %4514 = vmatprep.mubr.f32.mxu0 0.0
    %4515 = vmatmul.mubr.f32.gmra.mrb[0].mxu0 %v4368
    %v4516 = vpop.f32.mrb[0].mxu0
    %v4517 = vadd.f32 0.0, %v4516
    %v4518 = vpop.f32.mrb[0].mxu0
    %v4519 = vadd.f32 0.0, %v4518
    %4520 = vmatprep.mubr.f32.mxu0 0.0
    %4521 = vmatmul.mubr.f32.gmra.mrb[0].mxu0 %v4371
    %v4522 = vpop.f32.mrb[0].mxu0
    %v4523 = vadd.f32 0.0, %v4522
    %v4524 = vpop.f32.mrb[0].mxu0
    %v4525 = vadd.f32 0.0, %v4524
    %4526 = vdwg.mxu0
    %4527 = vmatprep.subr.mxu0 %v4353
    %4528 = vmatpush1.msra.mxu0 %v4352
    %4529 = vmatprep.subr.mxu0 0.0
    %4530 = vmatpush1.msra.mxu0 0.0
    %4531 = vmatprep.subr.mxu0 0.0
    %4532 = vmatpush1.msra.mxu0 0.0
    %4533 = vmatprep.subr.mxu0 0.0
    %4534 = vmatpush1.msra.mxu0 0.0
    %4535 = vmatprep.subr.mxu0 0.0
    %4536 = vmatpush1.msra.mxu0 0.0
    %4537 = vmatprep.subr.mxu0 0.0
    %4538 = vmatpush1.msra.mxu0 0.0
    %4539 = vmatprep.subr.mxu0 0.0
    %4540 = vmatpush1.msra.mxu0 0.0
    %4541 = vmatprep.subr.mxu0 0.0
    %4542 = vmatpush1.msra.mxu0 0.0
    %4543 = vmatprep.subr.mxu0 0.0
    %4544 = vmatpush1.msra.mxu0 0.0
    %4545 = vmatprep.subr.mxu0 0.0
    %4546 = vmatpush1.msra.mxu0 0.0
    %4547 = vmatprep.subr.mxu0 0.0
    %4548 = vmatpush1.msra.mxu0 0.0
    %4549 = vmatprep.subr.mxu0 0.0
    %4550 = vmatpush1.msra.mxu0 0.0
    %4551 = vmatprep.subr.mxu0 0.0
    %4552 = vmatpush1.msra.mxu0 0.0
    %4553 = vmatprep.subr.mxu0 0.0
    %4554 = vmatpush1.msra.mxu0 0.0
    %4555 = vmatprep.subr.mxu0 0.0
    %4556 = vmatpush1.msra.mxu0 0.0
    %4557 = vmatprep.subr.mxu0 0.0
    %4558 = vmatpush1.msra.mxu0 0.0
    %4559 = vmatprep.subr.mxu0 0.0
    %4560 = vmatpush1.msra.mxu0 0.0
    %4561 = vmatprep.subr.mxu0 0.0
    %4562 = vmatpush1.msra.mxu0 0.0
    %4563 = vmatprep.subr.mxu0 0.0
    %4564 = vmatpush1.msra.mxu0 0.0
    %4565 = vmatprep.subr.mxu0 0.0
    %4566 = vmatpush1.msra.mxu0 0.0
    %4567 = vmatprep.subr.mxu0 0.0
    %4568 = vmatpush1.msra.mxu0 0.0
    %4569 = vmatprep.subr.mxu0 0.0
    %4570 = vmatpush1.msra.mxu0 0.0
    %4571 = vmatprep.subr.mxu0 0.0
    %4572 = vmatpush1.msra.mxu0 0.0
    %4573 = vmatprep.subr.mxu0 0.0
    %4574 = vmatpush1.msra.mxu0 0.0
    %4575 = vmatprep.subr.mxu0 0.0
    %4576 = vmatpush1.msra.mxu0 0.0
    %4577 = vmatprep.subr.mxu0 0.0
    %4578 = vmatpush1.msra.mxu0 0.0
    %4579 = vmatprep.subr.mxu0 0.0
    %4580 = vmatpush1.msra.mxu0 0.0
    %4581 = vmatprep.subr.mxu0 0.0
    %4582 = vmatpush1.msra.mxu0 0.0
    %4583 = vmatprep.subr.mxu0 0.0
    %4584 = vmatpush1.msra.mxu0 0.0
    %4585 = vmatprep.subr.mxu0 0.0
    %4586 = vmatpush1.msra.mxu0 0.0
    %4587 = vmatprep.subr.mxu0 0.0
    %4588 = vmatpush1.msra.mxu0 0.0
    %4589 = vmatprep.subr.mxu0 0.0
    %4590 = vmatpush1.msra.mxu0 0.0
    %4591 = vmatprep.mubr.f32.mxu0 0.0
    %4592 = vmatmul.mubr.f32.gmra.mrb[0].mxu0 %v4368
    %v4593 = vpop.f32.mrb[0].mxu0
    %v4594 = vadd.f32 0.0, %v4593
    %v4595 = vpop.f32.mrb[0].mxu0
    %v4596 = vadd.f32 0.0, %v4595
    %4597 = vmatprep.mubr.f32.mxu0 0.0
    %4598 = vmatmul.mubr.f32.gmra.mrb[0].mxu0 %v4371
    %v4599 = vpop.f32.mrb[0].mxu0
    %v4600 = vadd.f32 0.0, %v4599
    %v4601 = vpop.f32.mrb[0].mxu0
    %v4602 = vadd.f32 0.0, %v4601
    %4603 = vdwg.mxu0
    %4604 = vmatprep.subr.mxu0 %v4355
    %4605 = vmatpush1.msra.mxu0 %v4354
    %4606 = vmatprep.subr.mxu0 0.0
    %4607 = vmatpush1.msra.mxu0 0.0
    %4608 = vmatprep.subr.mxu0 0.0
    %4609 = vmatpush1.msra.mxu0 0.0
    %4610 = vmatprep.subr.mxu0 0.0
    %4611 = vmatpush1.msra.mxu0 0.0
    %4612 = vmatprep.subr.mxu0 0.0
    %4613 = vmatpush1.msra.mxu0 0.0
    %4614 = vmatprep.subr.mxu0 0.0
    %4615 = vmatpush1.msra.mxu0 0.0
    %4616 = vmatprep.subr.mxu0 0.0
    %4617 = vmatpush1.msra.mxu0 0.0
    %4618 = vmatprep.subr.mxu0 0.0
    %4619 = vmatpush1.msra.mxu0 0.0
    %4620 = vmatprep.subr.mxu0 0.0
    %4621 = vmatpush1.msra.mxu0 0.0
    %4622 = vmatprep.subr.mxu0 0.0
    %4623 = vmatpush1.msra.mxu0 0.0
    %4624 = vmatprep.subr.mxu0 0.0
    %4625 = vmatpush1.msra.mxu0 0.0
    %4626 = vmatprep.subr.mxu0 0.0
    %4627 = vmatpush1.msra.mxu0 0.0
    %4628 = vmatprep.subr.mxu0 0.0
    %4629 = vmatpush1.msra.mxu0 0.0
    %4630 = vmatprep.subr.mxu0 0.0
    %4631 = vmatpush1.msra.mxu0 0.0
    %4632 = vmatprep.subr.mxu0 0.0
    %4633 = vmatpush1.msra.mxu0 0.0
    %4634 = vmatprep.subr.mxu0 0.0
    %4635 = vmatpush1.msra.mxu0 0.0
    %4636 = vmatprep.subr.mxu0 0.0
    %4637 = vmatpush1.msra.mxu0 0.0
    %4638 = vmatprep.subr.mxu0 0.0
    %4639 = vmatpush1.msra.mxu0 0.0
    %4640 = vmatprep.subr.mxu0 0.0
    %4641 = vmatpush1.msra.mxu0 0.0
    %4642 = vmatprep.subr.mxu0 0.0
    %4643 = vmatpush1.msra.mxu0 0.0
    %4644 = vmatprep.subr.mxu0 0.0
    %4645 = vmatpush1.msra.mxu0 0.0
    %4646 = vmatprep.subr.mxu0 0.0
    %4647 = vmatpush1.msra.mxu0 0.0
    %4648 = vmatprep.subr.mxu0 0.0
    %4649 = vmatpush1.msra.mxu0 0.0
    %4650 = vmatprep.subr.mxu0 0.0
    %4651 = vmatpush1.msra.mxu0 0.0
    %4652 = vmatprep.subr.mxu0 0.0
    %4653 = vmatpush1.msra.mxu0 0.0
    %4654 = vmatprep.subr.mxu0 0.0
    %4655 = vmatpush1.msra.mxu0 0.0
    %4656 = vmatprep.subr.mxu0 0.0
    %4657 = vmatpush1.msra.mxu0 0.0
    %4658 = vmatprep.subr.mxu0 0.0
    %4659 = vmatpush1.msra.mxu0 0.0
    %4660 = vmatprep.subr.mxu0 0.0
    %4661 = vmatpush1.msra.mxu0 0.0
    %4662 = vmatprep.subr.mxu0 0.0
    %4663 = vmatpush1.msra.mxu0 0.0
    %4664 = vmatprep.subr.mxu0 0.0
    %4665 = vmatpush1.msra.mxu0 0.0
    %4666 = vmatprep.subr.mxu0 0.0
    %4667 = vmatpush1.msra.mxu0 0.0
    %4668 = vmatprep.mubr.f32.mxu0 0.0
    %4669 = vmatmul.mubr.f32.gmra.mrb[0].mxu0 %v4368
    %v4670 = vpop.f32.mrb[0].mxu0
    %v4671 = vadd.f32 0.0, %v4670
    %v4672 = vpop.f32.mrb[0].mxu0
    %v4673 = vadd.f32 0.0, %v4672
    %4674 = vmatprep.mubr.f32.mxu0 0.0
    %4675 = vmatmul.mubr.f32.gmra.mrb[0].mxu0 %v4371
    %v4676 = vpop.f32.mrb[0].mxu0
    %v4677 = vadd.f32 0.0, %v4676
    %v4678 = vpop.f32.mrb[0].mxu0
    %v4679 = vadd.f32 0.0, %v4678
    %4680 = vdwg.mxu0
    %v4681 = vmul.f32 %v3026, %v4440
    %v4682 = vmul.f32 %v3027, %v4442
    %v4683 = vmul.f32 %v3028, %v4517
    %v4684 = vmul.f32 %v3029, %v4519
    %v4685 = vmul.f32 %v3030, %v4446
    %v4686 = vmul.f32 %v3031, %v4448
    %v4687 = vmul.f32 %v3032, %v4523
    %v4688 = vmul.f32 %v3033, %v4525
    %v4689 = vadd.f32 %v4681, %v4594
    %v4690 = vadd.f32 %v4682, %v4596
    %v4691 = vadd.f32 %v4683, %v4671
    %v4692 = vadd.f32 %v4684, %v4673
    %v4693 = vadd.f32 %v4685, %v4600
    %v4694 = vadd.f32 %v4686, %v4602
    %v4695 = vadd.f32 %v4687, %v4677
    %v4696 = vadd.f32 %v4688, %v4679
    %v4697 = vmax.f32 %v4689, 0.0
    %v4698 = vmax.f32 %v4690, 0.0
    %v4699 = vmax.f32 %v4691, 0.0
    %v4700 = vmax.f32 %v4692, 0.0
    %v4701 = vmax.f32 %v4693, 0.0
    %v4702 = vmax.f32 %v4694, 0.0
    %v4703 = vmax.f32 %v4695, 0.0
    %v4704 = vmax.f32 %v4696, 0.0
    %4705 = vst [vmem:[#allocation8] sm:$0xff] %v4697
    %4706 = vst [vmem:[#allocation8 + $0x8] sm:$0xff] %v4698
    %4707 = vst [vmem:[#allocation8 + $0x10] sm:$0xff] %v4699
    %4708 = vst [vmem:[#allocation8 + $0x18] sm:$0xff] %v4700
    %4709 = vst [vmem:[#allocation8 + $0x20] sm:$0xff] %v4701
    %4710 = vst [vmem:[#allocation8 + $0x28] sm:$0xff] %v4702
    %4711 = vst [vmem:[#allocation8 + $0x30] sm:$0xff] %v4703
    %4712 = vst [vmem:[#allocation8 + $0x38] sm:$0xff] %v4704
    // Predicated region
    $region26: #{tpu_custom_call.1} parent=1 // pred_check
      _
    $region27: #{tpu_custom_call.1} parent=1 // pred_check_branch
      %4714 = sbr.rel (0) target = $region29
    $region28: #{tpu_custom_call.1} parent=1 // pred_region
      %s4716 = ssub.s32 1024, 1024
      %4717 = vsyncadd [#allocation4], %s4716
      %s4718 = sshll.u32 [#allocation8], 4
      %s4719 = int_to_ptr.vmem [resolvable:$true] %s4718
      %4724 = dma.vmem_to_hbm [thread:$0]  %s4719, 1024, %s3, [#allocation4], 512, 512, 32
    $region29: #{tpu_custom_call.1} parent=1 // pred_fallthru
      _
    // Predicated region
    $region30: #{tpu_custom_call.1} parent=1 // pred_check
      _
    $region31: #{tpu_custom_call.1} parent=1 // pred_check_branch
      %4726 = sbr.rel (0) target = $region33
    $region32: #{tpu_custom_call.1} parent=1 // pred_region
      %4727 = dma.done [#allocation4], 1024
    $region33: #{tpu_custom_call.1} parent=1 // pred_fallthru
      _
    %4728 = vsyncpa [#allocation3], 1
    %4729 = vsyncpa [#allocation6], 1
    %4730 = vsyncpa [#allocation4], 1

</llo_original>
